<compile_context>
chip_gen: v7x
topology: tpu7x:2x2x1
jax: 0.10.0
libtpu: 0.0.40
codegen_flags: <defaults>
</compile_context>

<pallas_src>
import functools
import math

import jax
import jax.numpy as jnp
from jax.experimental import pallas as pl
from jax.experimental.pallas import tpu as pltpu


# --------------------------------------------------------------------------- #
# Pallas GEMM: (M, K) bf16 x (K, N) bf16 -> (M, N), f32 MXU accumulation.
# K (= Cin*kh*kw) is small, so a single full-K block is used: no reduction
# grid axis, no accumulator scratch, no init/finalize branches.
# --------------------------------------------------------------------------- #
def _gemm_kernel(a_ref, w_ref, o_ref):
    o_ref[...] = jnp.dot(a_ref[...], w_ref[...],
                         preferred_element_type=jnp.float32).astype(o_ref.dtype)


def _pick_tm(m, max_tm=512):
    tm = max_tm
    while tm >= 8:
        if m % tm == 0:
            return tm
        tm //= 2
    return None


def gemm_pallas(a, b, out_dtype=jnp.bfloat16):
    M, K = a.shape
    K2, N = b.shape
    assert K == K2
    a = a.astype(jnp.bfloat16)
    b = b.astype(jnp.bfloat16)

    tm = _pick_tm(M)
    pad_m = 0
    if tm is None:
        # Fallback only if M is not a multiple of 8 (never hit at these shapes).
        pad_m = (-M) % 8
        a = jnp.pad(a, ((0, pad_m), (0, 0)))
        tm = _pick_tm(M + pad_m)
    Mp = M + pad_m

    out = pl.pallas_call(
        _gemm_kernel,
        out_shape=jax.ShapeDtypeStruct((Mp, N), out_dtype),
        grid=(Mp // tm,),
        in_specs=[pl.BlockSpec((tm, K), lambda i: (i, 0)),
                  pl.BlockSpec((K, N), lambda i: (0, 0))],
        out_specs=pl.BlockSpec((tm, N), lambda i: (i, 0)),
        compiler_params=pltpu.CompilerParams(
            dimension_semantics=("parallel",)),
    )(a, b)
    return out[:M] if pad_m else out


# --------------------------------------------------------------------------- #
# Fused BatchNorm (batch statistics) + optional residual add + optional ReLU.
# Channels sit on the lane axis; the mean/var reduction is over sublanes.
# --------------------------------------------------------------------------- #
def _bn_act_kernel(*refs, has_res, relu, eps):
    if has_res:
        x_ref, g_ref, b_ref, r_ref, o_ref = refs
    else:
        x_ref, g_ref, b_ref, o_ref = refs
    x = x_ref[...].astype(jnp.float32)
    mean = jnp.mean(x, axis=0, keepdims=True)
    var = jnp.mean(jnp.square(x - mean), axis=0, keepdims=True)  # biased (torch)
    y = (x - mean) * jax.lax.rsqrt(var + eps)
    y = y * g_ref[...] + b_ref[...]
    if has_res:
        y = y + r_ref[...].astype(jnp.float32)
    if relu:
        y = jnp.maximum(y, 0.0)
    o_ref[...] = y.astype(o_ref.dtype)


def bn_act_pallas(x2d, gamma, beta, residual=None, relu=True, eps=1e-5,
                  out_dtype=jnp.bfloat16):
    # TODO(synk): for very large B*H*W this single-block kernel should be
    # re-tiled over rows with a two-pass (sum / sumsq) reduction.
    M, C = x2d.shape
    args = [x2d,
            gamma.reshape(1, C).astype(jnp.float32),
            beta.reshape(1, C).astype(jnp.float32)]
    in_specs = [pl.BlockSpec((M, C), lambda i: (0, 0)),
                pl.BlockSpec((1, C), lambda i: (0, 0)),
                pl.BlockSpec((1, C), lambda i: (0, 0))]
    if residual is not None:
        args.append(residual)
        in_specs.append(pl.BlockSpec((M, C), lambda i: (0, 0)))
    kern = functools.partial(_bn_act_kernel, has_res=residual is not None,
                             relu=relu, eps=eps)
    return pl.pallas_call(
        kern,
        out_shape=jax.ShapeDtypeStruct((M, C), out_dtype),
        grid=(1,),
        in_specs=in_specs,
        out_specs=pl.BlockSpec((M, C), lambda i: (0, 0)),
    )(*args)


# --------------------------------------------------------------------------- #
# Convolutions lowered to the Pallas GEMM (NHWC, im2col patch matrix)
# --------------------------------------------------------------------------- #
def conv3x3_gemm(x_nhwc, w, stride=1):
    # x: (B, H, W, Cin) bf16 ; w: (Cout, Cin, 3, 3) PyTorch layout, bias=False.
    B, H, W, Cin = x_nhwc.shape
    Cout = w.shape[0]
    xp = jnp.pad(x_nhwc, ((0, 0), (1, 1), (1, 1), (0, 0)))      # zero pad=1
    Ho = (H + 2 - 3) // stride + 1
    Wo = (W + 2 - 3) // stride + 1
    # im2col: (B, Ho, Wo, Cin, 9) -> (B*Ho*Wo, Cin*9); feature index = c*9+k.
    # TODO(synk): for large activations form the 3x3 patches inside the kernel
    # (halo blocks / 9 shifted matmuls) instead of materializing im2col.
    patches = [xp[:, i:i + stride * Ho:stride, j:j + stride * Wo:stride, :]
               for i in range(3) for j in range(3)]
    a = jnp.stack(patches, axis=-1).reshape(B * Ho * Wo, Cin * 9)
    wm = w.transpose(1, 2, 3, 0).reshape(Cin * 9, Cout)         # [c*9+i*3+j, cout]
    y = gemm_pallas(a, wm)
    return y, (B, Ho, Wo)


def conv1x1_gemm(x_nhwc, w, stride=1):
    B, H, W, Cin = x_nhwc.shape
    Cout = w.shape[0]
    xs = x_nhwc[:, ::stride, ::stride, :]
    Ho, Wo = xs.shape[1], xs.shape[2]
    a = xs.reshape(B * Ho * Wo, Cin)
    wm = w.reshape(Cout, Cin).T
    y = gemm_pallas(a, wm)
    return y, (B, Ho, Wo)


# --------------------------------------------------------------------------- #
# BasicBlock parameters + forward
# --------------------------------------------------------------------------- #
def init_basic_block(key, inplanes, planes, with_downsample=False):
    ks = jax.random.split(key, 6)

    def conv_w(k, cout, cin, kh, kw):
        return (jax.random.normal(k, (cout, cin, kh, kw), jnp.float32)
                / math.sqrt(cin * kh * kw))

    p = {
        'conv1_w': conv_w(ks[0], planes, inplanes, 3, 3),
        'bn1_g': jnp.ones((planes,), jnp.float32)
                 + 0.1 * jax.random.normal(ks[1], (planes,), jnp.float32),
        'bn1_b': 0.1 * jax.random.normal(ks[2], (planes,), jnp.float32),
        'conv2_w': conv_w(ks[3], planes, planes, 3, 3),
        'bn2_g': jnp.ones((planes,), jnp.float32),
        'bn2_b': jnp.zeros((planes,), jnp.float32),
        'down': None,
    }
    if with_downsample:
        p['down'] = {
            'w': conv_w(ks[4], planes, inplanes, 1, 1),
            'g': jnp.ones((planes,), jnp.float32),
            'b': jnp.zeros((planes,), jnp.float32),
        }
    return p


def basic_block_forward(params, x_nchw, stride=1):
    # Matches BasicBlock.forward: relu(bn2(conv2(relu(bn1(conv1(x))))) + res)
    x = x_nchw.transpose(0, 2, 3, 1).astype(jnp.bfloat16)       # NCHW -> NHWC
    B, H, W, Cin = x.shape

    y1, (B, Ho, Wo) = conv3x3_gemm(x, params['conv1_w'], stride=stride)
    y1 = bn_act_pallas(y1, params['bn1_g'], params['bn1_b'], relu=True)
    h = y1.reshape(B, Ho, Wo, -1)

    y2, _ = conv3x3_gemm(h, params['conv2_w'], stride=1)

    if params['down'] is not None:
        r, _ = conv1x1_gemm(x, params['down']['w'], stride=stride)
        r = bn_act_pallas(r, params['down']['g'], params['down']['b'], relu=False)
    else:
        r = x.reshape(B * H * W, Cin)                            # identity path

    out = bn_act_pallas(y2, params['bn2_g'], params['bn2_b'],
                        residual=r, relu=True)
    return out.reshape(B, Ho, Wo, -1).transpose(0, 3, 1, 2)      # back to NCHW


# --------------------------------------------------------------------------- #
if __name__ == "__main__":
    key = jax.random.PRNGKey(0)
    kp, kx = jax.random.split(key)

    # Small shapes consistent with the module: inplanes = planes = 32,
    # stride = 1, downsample = None (the BasicBlock defaults).
    B, C, H, W = 2, 32, 16, 16
    x = jax.random.normal(kx, (B, C, H, W), jnp.float32)
    params = init_basic_block(kp, C, C, with_downsample=False)

    fwd = jax.jit(functools.partial(basic_block_forward, stride=1))
    out = jax.block_until_ready(fwd(params, x))

    out_f32 = out.astype(jnp.float32)
    assert out.shape == (B, C, H, W), out.shape
    assert bool(jnp.all(jnp.isfinite(out_f32)))
    assert bool(jnp.all(out_f32 >= 0.0))          # final ReLU
    print("KERNEL_OK")
</pallas_src>

<mosaic_0001>
module attributes {stable_mosaic.version = 11 : i64} {
  func.func @_gemm_kernel(%arg0: i32, %arg1: memref<512x288xbf16, #tpu.memory_space<vmem>>, %arg2: memref<288x32xbf16, #tpu.memory_space<vmem>>, %arg3: memref<512x32xbf16, #tpu.memory_space<vmem>>) attributes {dimension_semantics = [#tpu.dimension_semantics<parallel>], iteration_bounds = array<i64: 1>, scalar_prefetch = 0 : i64, scratch_operands = 0 : i64, tpu.core_type = #tpu.core_type<tc>, window_params = [{transform_indices = @transform_0, window_bounds = array<i64: 512, 288>}, {pipeline_mode = #tpu.pipeline_mode<synchronous>, transform_indices = @transform_1, window_bounds = array<i64: 288, 32>}, {transform_indices = @transform_2, window_bounds = array<i64: 512, 32>}]} {
    %c0 = arith.constant 0 : index
    %c0_0 = arith.constant 0 : index
    %0 = vector.load %arg1[%c0, %c0_0] : memref<512x288xbf16, #tpu.memory_space<vmem>>, vector<512x288xbf16>
    %c0_1 = arith.constant 0 : index
    %c0_2 = arith.constant 0 : index
    %1 = vector.load %arg2[%c0_1, %c0_2] : memref<288x32xbf16, #tpu.memory_space<vmem>>, vector<288x32xbf16>
    %cst = arith.constant dense<0.000000e+00> : vector<512x32xf32>
    %2 = tpu.matmul %0, %1, %cst {dimension_numbers = #tpu.dot_dimension_numbers<[1], [0], [0], [1], [0, 0, 1, 1], [], []>} : vector<512x288xbf16>, vector<288x32xbf16>, vector<512x32xf32> -> vector<512x32xf32>
    %3 = arith.truncf %2 : vector<512x32xf32> to vector<512x32xbf16>
    %c0_3 = arith.constant 0 : index
    %c0_4 = arith.constant 0 : index
    %4 = vector.load %arg3[%c0_3, %c0_4] : memref<512x32xbf16, #tpu.memory_space<vmem>>, vector<512x32xbf16>
    tpu.vector_store %arg3[%c0_3, %c0_4], %3 {strides = array<i32>} : memref<512x32xbf16, #tpu.memory_space<vmem>>, vector<512x32xbf16>,
    return
  }
  func.func @transform_0(%arg0: i32) -> (i32, i32) {
    %c0_i32 = arith.constant 0 : i32
    %c0_i32_0 = arith.constant 0 : i32
    return %arg0, %c0_i32 : i32, i32
  }
  func.func @transform_1(%arg0: i32) -> (i32, i32) {
    %c0_i32 = arith.constant 0 : i32
    %c0_i32_0 = arith.constant 0 : i32
    %c0_i32_1 = arith.constant 0 : i32
    return %c0_i32, %c0_i32_0 : i32, i32
  }
  func.func @transform_2(%arg0: i32) -> (i32, i32) {
    %c0_i32 = arith.constant 0 : i32
    %c0_i32_0 = arith.constant 0 : i32
    return %arg0, %c0_i32 : i32, i32
  }
}

module attributes {stable_mosaic.version = 11 : i64} {
  func.func @_bn_act_kernel(%arg0: i32, %arg1: memref<512x32xbf16, #tpu.memory_space<vmem>>, %arg2: memref<1x32xf32, #tpu.memory_space<vmem>>, %arg3: memref<1x32xf32, #tpu.memory_space<vmem>>, %arg4: memref<512x32xbf16, #tpu.memory_space<vmem>>) attributes {dimension_semantics = [#tpu.dimension_semantics<arbitrary>], iteration_bounds = array<i64: 1>, scalar_prefetch = 0 : i64, scratch_operands = 0 : i64, tpu.core_type = #tpu.core_type<tc>, window_params = [{pipeline_mode = #tpu.pipeline_mode<synchronous>, transform_indices = @transform_0, window_bounds = array<i64: 512, 32>}, {pipeline_mode = #tpu.pipeline_mode<synchronous>, transform_indices = @transform_1, window_bounds = array<i64: 1, 32>}, {pipeline_mode = #tpu.pipeline_mode<synchronous>, transform_indices = @transform_2, window_bounds = array<i64: 1, 32>}, {pipeline_mode = #tpu.pipeline_mode<synchronous>, transform_indices = @transform_3, window_bounds = array<i64: 512, 32>}]} {
    %c0 = arith.constant 0 : index
    %c0_0 = arith.constant 0 : index
    %0 = vector.load %arg1[%c0, %c0_0] : memref<512x32xbf16, #tpu.memory_space<vmem>>, vector<512x32xbf16>
    %1 = arith.extf %0 : vector<512x32xbf16> to vector<512x32xf32>
    %cst = arith.constant dense<0.000000e+00> : vector<32xf32>
    %2 = vector.multi_reduction <add>, %1, %cst [0] : vector<512x32xf32> to vector<32xf32>
    %3 = vector.shape_cast %2 : vector<32xf32> to vector<1x32xf32>
    %cst_1 = arith.constant 5.120000e+02 : f32
    %4 = vector.broadcast %cst_1 : f32 to vector<1x32xf32>
    %5 = arith.divf %3, %4 : vector<1x32xf32>
    %6 = vector.broadcast %5 : vector<1x32xf32> to vector<512x32xf32>
    %7 = arith.subf %1, %6 : vector<512x32xf32>
    %8 = arith.mulf %7, %7 : vector<512x32xf32>
    %cst_2 = arith.constant dense<0.000000e+00> : vector<32xf32>
    %9 = vector.multi_reduction <add>, %8, %cst_2 [0] : vector<512x32xf32> to vector<32xf32>
    %10 = vector.shape_cast %9 : vector<32xf32> to vector<1x32xf32>
    %cst_3 = arith.constant 5.120000e+02 : f32
    %11 = vector.broadcast %cst_3 : f32 to vector<1x32xf32>
    %12 = arith.divf %10, %11 : vector<1x32xf32>
    %13 = vector.broadcast %5 : vector<1x32xf32> to vector<512x32xf32>
    %14 = arith.subf %1, %13 : vector<512x32xf32>
    %cst_4 = arith.constant 9.99999974E-6 : f32
    %15 = vector.broadcast %cst_4 : f32 to vector<1x32xf32>
    %16 = arith.addf %12, %15 : vector<1x32xf32>
    %17 = math.rsqrt %16 : vector<1x32xf32>
    %18 = vector.broadcast %17 : vector<1x32xf32> to vector<512x32xf32>
    %19 = arith.mulf %14, %18 : vector<512x32xf32>
    %c0_5 = arith.constant 0 : index
    %c0_6 = arith.constant 0 : index
    %20 = vector.load %arg2[%c0_5, %c0_6] : memref<1x32xf32, #tpu.memory_space<vmem>>, vector<1x32xf32>
    %21 = vector.broadcast %20 : vector<1x32xf32> to vector<512x32xf32>
    %22 = arith.mulf %19, %21 : vector<512x32xf32>
    %c0_7 = arith.constant 0 : index
    %c0_8 = arith.constant 0 : index
    %23 = vector.load %arg3[%c0_7, %c0_8] : memref<1x32xf32, #tpu.memory_space<vmem>>, vector<1x32xf32>
    %24 = vector.broadcast %23 : vector<1x32xf32> to vector<512x32xf32>
    %25 = arith.addf %22, %24 : vector<512x32xf32>
    %cst_9 = arith.constant 0.000000e+00 : f32
    %26 = vector.broadcast %cst_9 : f32 to vector<512x32xf32>
    %27 = arith.maximumf %25, %26 : vector<512x32xf32>
    %28 = arith.truncf %27 : vector<512x32xf32> to vector<512x32xbf16>
    %c0_10 = arith.constant 0 : index
    %c0_11 = arith.constant 0 : index
    %29 = vector.load %arg4[%c0_10, %c0_11] : memref<512x32xbf16, #tpu.memory_space<vmem>>, vector<512x32xbf16>
    tpu.vector_store %arg4[%c0_10, %c0_11], %28 {strides = array<i32>} : memref<512x32xbf16, #tpu.memory_space<vmem>>, vector<512x32xbf16>,
    return
  }
  func.func @transform_0(%arg0: i32) -> (i32, i32) {
    %c0_i32 = arith.constant 0 : i32
    %c0_i32_0 = arith.constant 0 : i32
    %c0_i32_1 = arith.constant 0 : i32
    return %c0_i32, %c0_i32_0 : i32, i32
  }
  func.func @transform_1(%arg0: i32) -> (i32, i32) {
    %c0_i32 = arith.constant 0 : i32
    %c0_i32_0 = arith.constant 0 : i32
    %c0_i32_1 = arith.constant 0 : i32
    return %c0_i32, %c0_i32_0 : i32, i32
  }
  func.func @transform_2(%arg0: i32) -> (i32, i32) {
    %c0_i32 = arith.constant 0 : i32
    %c0_i32_0 = arith.constant 0 : i32
    %c0_i32_1 = arith.constant 0 : i32
    return %c0_i32, %c0_i32_0 : i32, i32
  }
  func.func @transform_3(%arg0: i32) -> (i32, i32) {
    %c0_i32 = arith.constant 0 : i32
    %c0_i32_0 = arith.constant 0 : i32
    %c0_i32_1 = arith.constant 0 : i32
    return %c0_i32, %c0_i32_0 : i32, i32
  }
}

module attributes {stable_mosaic.version = 11 : i64} {
  func.func @_bn_act_kernel(%arg0: i32, %arg1: memref<512x32xbf16, #tpu.memory_space<vmem>>, %arg2: memref<1x32xf32, #tpu.memory_space<vmem>>, %arg3: memref<1x32xf32, #tpu.memory_space<vmem>>, %arg4: memref<512x32xbf16, #tpu.memory_space<vmem>>, %arg5: memref<512x32xbf16, #tpu.memory_space<vmem>>) attributes {dimension_semantics = [#tpu.dimension_semantics<arbitrary>], iteration_bounds = array<i64: 1>, scalar_prefetch = 0 : i64, scratch_operands = 0 : i64, tpu.core_type = #tpu.core_type<tc>, window_params = [{pipeline_mode = #tpu.pipeline_mode<synchronous>, transform_indices = @transform_0, window_bounds = array<i64: 512, 32>}, {pipeline_mode = #tpu.pipeline_mode<synchronous>, transform_indices = @transform_1, window_bounds = array<i64: 1, 32>}, {pipeline_mode = #tpu.pipeline_mode<synchronous>, transform_indices = @transform_2, window_bounds = array<i64: 1, 32>}, {pipeline_mode = #tpu.pipeline_mode<synchronous>, transform_indices = @transform_3, window_bounds = array<i64: 512, 32>}, {pipeline_mode = #tpu.pipeline_mode<synchronous>, transform_indices = @transform_4, window_bounds = array<i64: 512, 32>}]} {
    %c0 = arith.constant 0 : index
    %c0_0 = arith.constant 0 : index
    %0 = vector.load %arg1[%c0, %c0_0] : memref<512x32xbf16, #tpu.memory_space<vmem>>, vector<512x32xbf16>
    %1 = arith.extf %0 : vector<512x32xbf16> to vector<512x32xf32>
    %cst = arith.constant dense<0.000000e+00> : vector<32xf32>
    %2 = vector.multi_reduction <add>, %1, %cst [0] : vector<512x32xf32> to vector<32xf32>
    %3 = vector.shape_cast %2 : vector<32xf32> to vector<1x32xf32>
    %cst_1 = arith.constant 5.120000e+02 : f32
    %4 = vector.broadcast %cst_1 : f32 to vector<1x32xf32>
    %5 = arith.divf %3, %4 : vector<1x32xf32>
    %6 = vector.broadcast %5 : vector<1x32xf32> to vector<512x32xf32>
    %7 = arith.subf %1, %6 : vector<512x32xf32>
    %8 = arith.mulf %7, %7 : vector<512x32xf32>
    %cst_2 = arith.constant dense<0.000000e+00> : vector<32xf32>
    %9 = vector.multi_reduction <add>, %8, %cst_2 [0] : vector<512x32xf32> to vector<32xf32>
    %10 = vector.shape_cast %9 : vector<32xf32> to vector<1x32xf32>
    %cst_3 = arith.constant 5.120000e+02 : f32
    %11 = vector.broadcast %cst_3 : f32 to vector<1x32xf32>
    %12 = arith.divf %10, %11 : vector<1x32xf32>
    %13 = vector.broadcast %5 : vector<1x32xf32> to vector<512x32xf32>
    %14 = arith.subf %1, %13 : vector<512x32xf32>
    %cst_4 = arith.constant 9.99999974E-6 : f32
    %15 = vector.broadcast %cst_4 : f32 to vector<1x32xf32>
    %16 = arith.addf %12, %15 : vector<1x32xf32>
    %17 = math.rsqrt %16 : vector<1x32xf32>
    %18 = vector.broadcast %17 : vector<1x32xf32> to vector<512x32xf32>
    %19 = arith.mulf %14, %18 : vector<512x32xf32>
    %c0_5 = arith.constant 0 : index
    %c0_6 = arith.constant 0 : index
    %20 = vector.load %arg2[%c0_5, %c0_6] : memref<1x32xf32, #tpu.memory_space<vmem>>, vector<1x32xf32>
    %21 = vector.broadcast %20 : vector<1x32xf32> to vector<512x32xf32>
    %22 = arith.mulf %19, %21 : vector<512x32xf32>
    %c0_7 = arith.constant 0 : index
    %c0_8 = arith.constant 0 : index
    %23 = vector.load %arg3[%c0_7, %c0_8] : memref<1x32xf32, #tpu.memory_space<vmem>>, vector<1x32xf32>
    %24 = vector.broadcast %23 : vector<1x32xf32> to vector<512x32xf32>
    %25 = arith.addf %22, %24 : vector<512x32xf32>
    %c0_9 = arith.constant 0 : index
    %c0_10 = arith.constant 0 : index
    %26 = vector.load %arg4[%c0_9, %c0_10] : memref<512x32xbf16, #tpu.memory_space<vmem>>, vector<512x32xbf16>
    %27 = arith.extf %26 : vector<512x32xbf16> to vector<512x32xf32>
    %28 = arith.addf %25, %27 : vector<512x32xf32>
    %cst_11 = arith.constant 0.000000e+00 : f32
    %29 = vector.broadcast %cst_11 : f32 to vector<512x32xf32>
    %30 = arith.maximumf %28, %29 : vector<512x32xf32>
    %31 = arith.truncf %30 : vector<512x32xf32> to vector<512x32xbf16>
    %c0_12 = arith.constant 0 : index
    %c0_13 = arith.constant 0 : index
    %32 = vector.load %arg5[%c0_12, %c0_13] : memref<512x32xbf16, #tpu.memory_space<vmem>>, vector<512x32xbf16>
    tpu.vector_store %arg5[%c0_12, %c0_13], %31 {strides = array<i32>} : memref<512x32xbf16, #tpu.memory_space<vmem>>, vector<512x32xbf16>,
    return
  }
  func.func @transform_0(%arg0: i32) -> (i32, i32) {
    %c0_i32 = arith.constant 0 : i32
    %c0_i32_0 = arith.constant 0 : i32
    %c0_i32_1 = arith.constant 0 : i32
    return %c0_i32, %c0_i32_0 : i32, i32
  }
  func.func @transform_1(%arg0: i32) -> (i32, i32) {
    %c0_i32 = arith.constant 0 : i32
    %c0_i32_0 = arith.constant 0 : i32
    %c0_i32_1 = arith.constant 0 : i32
    return %c0_i32, %c0_i32_0 : i32, i32
  }
  func.func @transform_2(%arg0: i32) -> (i32, i32) {
    %c0_i32 = arith.constant 0 : i32
    %c0_i32_0 = arith.constant 0 : i32
    %c0_i32_1 = arith.constant 0 : i32
    return %c0_i32, %c0_i32_0 : i32, i32
  }
  func.func @transform_3(%arg0: i32) -> (i32, i32) {
    %c0_i32 = arith.constant 0 : i32
    %c0_i32_0 = arith.constant 0 : i32
    %c0_i32_1 = arith.constant 0 : i32
    return %c0_i32, %c0_i32_0 : i32, i32
  }
  func.func @transform_4(%arg0: i32) -> (i32, i32) {
    %c0_i32 = arith.constant 0 : i32
    %c0_i32_0 = arith.constant 0 : i32
    %c0_i32_1 = arith.constant 0 : i32
    return %c0_i32, %c0_i32_0 : i32, i32
  }
}

</mosaic_0001>

<llo_original>
// kernel: basic_block_forward.4
$region0: #{basic_block_forward.4}
  #allocation0 [shape = 'u32[]', space=smem, size = 0x4, offset = 0x4, fixed_abs, tag = 'smem constant byte address 0x4 - core index']
  #allocation1 [shape = 'u32[144,128]{1,0:T(1,128)}', space=vmem, size = 0x12000, scoped, tag = 'internal scratch']
  %s0 = inlined_call_operand.vmem [shape: bf16[512,288], index: 0, kind: input, shape index: {}]
  %s1 = inlined_call_operand.vmem [shape: bf16[288,32], index: 1, kind: input, shape index: {}]
  %s2 = inlined_call_operand.vmem [shape: bf16[512,32], index: 2, kind: output, shape index: {}]
  %s3 = sld [smem:[#allocation0]]
  $region18: #{basic_block_forward.4} parent=0
    _
  %s5 = ssub.s32 1, %s3
  %s6 = scalar_select 0, %s5, %s3
  // Predicated region
  $region2: #{basic_block_forward.4} parent=0 // pred_check
    _
  $region3: #{basic_block_forward.4} parent=0 // pred_check_branch
    %8 = sbr.rel (0) target = $region5
  $region4: #{basic_block_forward.4} parent=0 // pred_region
    _
  $region5: #{basic_block_forward.4} parent=0 // pred_fallthru
    _
  // Predicated region
  $region6: #{basic_block_forward.4} parent=0 // pred_check
    _
  $region7: #{basic_block_forward.4} parent=0 // pred_check_branch
    %10 = sbr.rel (0) target = $region9
  $region8: #{basic_block_forward.4} parent=0 // pred_region
    _
  $region9: #{basic_block_forward.4} parent=0 // pred_fallthru
    _
  %v12 = vld [vmem:[%s0] sm:$0xff]
  %v13 = vld [vmem:[%s0 + $0x8] sm:$0xf]
  %v14 = vld [vmem:[%s0 + $0xc] sm:$0xff]
  %v15 = vld [vmem:[%s0 + $0x14] sm:$0xf]
  %v16 = vld [vmem:[%s0 + $0x18] sm:$0xff]
  %v17 = vld [vmem:[%s0 + $0x20] sm:$0xf]
  %v18 = vld [vmem:[%s0 + $0x24] sm:$0xff]
  %v19 = vld [vmem:[%s0 + $0x2c] sm:$0xf]
  %v20 = vld [vmem:[%s0 + $0x30] sm:$0xff]
  %v21 = vld [vmem:[%s0 + $0x38] sm:$0xf]
  %v22 = vld [vmem:[%s0 + $0x3c] sm:$0xff]
  %v23 = vld [vmem:[%s0 + $0x44] sm:$0xf]
  %v24 = vld [vmem:[%s0 + $0x48] sm:$0xff]
  %v25 = vld [vmem:[%s0 + $0x50] sm:$0xf]
  %v26 = vld [vmem:[%s0 + $0x54] sm:$0xff]
  %v27 = vld [vmem:[%s0 + $0x5c] sm:$0xf]
  %v28 = vld [vmem:[%s0 + $0x60] sm:$0xff]
  %v29 = vld [vmem:[%s0 + $0x68] sm:$0xf]
  %v30 = vld [vmem:[%s0 + $0x6c] sm:$0xff]
  %v31 = vld [vmem:[%s0 + $0x74] sm:$0xf]
  %v32 = vld [vmem:[%s0 + $0x78] sm:$0xff]
  %v33 = vld [vmem:[%s0 + $0x80] sm:$0xf]
  %v34 = vld [vmem:[%s0 + $0x84] sm:$0xff]
  %v35 = vld [vmem:[%s0 + $0x8c] sm:$0xf]
  %v36 = vld [vmem:[%s0 + $0x90] sm:$0xff]
  %v37 = vld [vmem:[%s0 + $0x98] sm:$0xf]
  %v38 = vld [vmem:[%s0 + $0x9c] sm:$0xff]
  %v39 = vld [vmem:[%s0 + $0xa4] sm:$0xf]
  %v40 = vld [vmem:[%s0 + $0xa8] sm:$0xff]
  %v41 = vld [vmem:[%s0 + $0xb0] sm:$0xf]
  %v42 = vld [vmem:[%s0 + $0xb4] sm:$0xff]
  %v43 = vld [vmem:[%s0 + $0xbc] sm:$0xf]
  %v44 = vld [vmem:[%s0 + $0xc0] sm:$0xff]
  %v45 = vld [vmem:[%s0 + $0xc8] sm:$0xf]
  %v46 = vld [vmem:[%s0 + $0xcc] sm:$0xff]
  %v47 = vld [vmem:[%s0 + $0xd4] sm:$0xf]
  %v48 = vld [vmem:[%s0 + $0xd8] sm:$0xff]
  %v49 = vld [vmem:[%s0 + $0xe0] sm:$0xf]
  %v50 = vld [vmem:[%s0 + $0xe4] sm:$0xff]
  %v51 = vld [vmem:[%s0 + $0xec] sm:$0xf]
  %v52 = vld [vmem:[%s0 + $0xf0] sm:$0xff]
  %v53 = vld [vmem:[%s0 + $0xf8] sm:$0xf]
  %v54 = vld [vmem:[%s0 + $0xfc] sm:$0xff]
  %v55 = vld [vmem:[%s0 + $0x104] sm:$0xf]
  %v56 = vld [vmem:[%s0 + $0x108] sm:$0xff]
  %v57 = vld [vmem:[%s0 + $0x110] sm:$0xf]
  %v58 = vld [vmem:[%s0 + $0x114] sm:$0xff]
  %v59 = vld [vmem:[%s0 + $0x11c] sm:$0xf]
  %v60 = vld [vmem:[%s0 + $0x120] sm:$0xff]
  %v61 = vld [vmem:[%s0 + $0x128] sm:$0xf]
  %v62 = vld [vmem:[%s0 + $0x12c] sm:$0xff]
  %v63 = vld [vmem:[%s0 + $0x134] sm:$0xf]
  %v64 = vld [vmem:[%s0 + $0x138] sm:$0xff]
  %v65 = vld [vmem:[%s0 + $0x140] sm:$0xf]
  %v66 = vld [vmem:[%s0 + $0x144] sm:$0xff]
  %v67 = vld [vmem:[%s0 + $0x14c] sm:$0xf]
  %v68 = vld [vmem:[%s0 + $0x150] sm:$0xff]
  %v69 = vld [vmem:[%s0 + $0x158] sm:$0xf]
  %v70 = vld [vmem:[%s0 + $0x15c] sm:$0xff]
  %v71 = vld [vmem:[%s0 + $0x164] sm:$0xf]
  %v72 = vld [vmem:[%s0 + $0x168] sm:$0xff]
  %v73 = vld [vmem:[%s0 + $0x170] sm:$0xf]
  %v74 = vld [vmem:[%s0 + $0x174] sm:$0xff]
  %v75 = vld [vmem:[%s0 + $0x17c] sm:$0xf]
  %v76 = vld [vmem:[%s0 + $0x180] sm:$0xff]
  %v77 = vld [vmem:[%s0 + $0x188] sm:$0xf]
  %v78 = vld [vmem:[%s0 + $0x18c] sm:$0xff]
  %v79 = vld [vmem:[%s0 + $0x194] sm:$0xf]
  %v80 = vld [vmem:[%s0 + $0x198] sm:$0xff]
  %v81 = vld [vmem:[%s0 + $0x1a0] sm:$0xf]
  %v82 = vld [vmem:[%s0 + $0x1a4] sm:$0xff]
  %v83 = vld [vmem:[%s0 + $0x1ac] sm:$0xf]
  %v84 = vld [vmem:[%s0 + $0x1b0] sm:$0xff]
  %v85 = vld [vmem:[%s0 + $0x1b8] sm:$0xf]
  %v86 = vld [vmem:[%s0 + $0x1bc] sm:$0xff]
  %v87 = vld [vmem:[%s0 + $0x1c4] sm:$0xf]
  %v88 = vld [vmem:[%s0 + $0x1c8] sm:$0xff]
  %v89 = vld [vmem:[%s0 + $0x1d0] sm:$0xf]
  %v90 = vld [vmem:[%s0 + $0x1d4] sm:$0xff]
  %v91 = vld [vmem:[%s0 + $0x1dc] sm:$0xf]
  %v92 = vld [vmem:[%s0 + $0x1e0] sm:$0xff]
  %v93 = vld [vmem:[%s0 + $0x1e8] sm:$0xf]
  %v94 = vld [vmem:[%s0 + $0x1ec] sm:$0xff]
  %v95 = vld [vmem:[%s0 + $0x1f4] sm:$0xf]
  %v96 = vld [vmem:[%s0 + $0x1f8] sm:$0xff]
  %v97 = vld [vmem:[%s0 + $0x200] sm:$0xf]
  %v98 = vld [vmem:[%s0 + $0x204] sm:$0xff]
  %v99 = vld [vmem:[%s0 + $0x20c] sm:$0xf]
  %v100 = vld [vmem:[%s0 + $0x210] sm:$0xff]
  %v101 = vld [vmem:[%s0 + $0x218] sm:$0xf]
  %v102 = vld [vmem:[%s0 + $0x21c] sm:$0xff]
  %v103 = vld [vmem:[%s0 + $0x224] sm:$0xf]
  %v104 = vld [vmem:[%s0 + $0x228] sm:$0xff]
  %v105 = vld [vmem:[%s0 + $0x230] sm:$0xf]
  %v106 = vld [vmem:[%s0 + $0x234] sm:$0xff]
  %v107 = vld [vmem:[%s0 + $0x23c] sm:$0xf]
  %v108 = vld [vmem:[%s0 + $0x240] sm:$0xff]
  %v109 = vld [vmem:[%s0 + $0x248] sm:$0xf]
  %v110 = vld [vmem:[%s0 + $0x24c] sm:$0xff]
  %v111 = vld [vmem:[%s0 + $0x254] sm:$0xf]
  %v112 = vld [vmem:[%s0 + $0x258] sm:$0xff]
  %v113 = vld [vmem:[%s0 + $0x260] sm:$0xf]
  %v114 = vld [vmem:[%s0 + $0x264] sm:$0xff]
  %v115 = vld [vmem:[%s0 + $0x26c] sm:$0xf]
  %v116 = vld [vmem:[%s0 + $0x270] sm:$0xff]
  %v117 = vld [vmem:[%s0 + $0x278] sm:$0xf]
  %v118 = vld [vmem:[%s0 + $0x27c] sm:$0xff]
  %v119 = vld [vmem:[%s0 + $0x284] sm:$0xf]
  %v120 = vld [vmem:[%s0 + $0x288] sm:$0xff]
  %v121 = vld [vmem:[%s0 + $0x290] sm:$0xf]
  %v122 = vld [vmem:[%s0 + $0x294] sm:$0xff]
  %v123 = vld [vmem:[%s0 + $0x29c] sm:$0xf]
  %v124 = vld [vmem:[%s0 + $0x2a0] sm:$0xff]
  %v125 = vld [vmem:[%s0 + $0x2a8] sm:$0xf]
  %v126 = vld [vmem:[%s0 + $0x2ac] sm:$0xff]
  %v127 = vld [vmem:[%s0 + $0x2b4] sm:$0xf]
  %v128 = vld [vmem:[%s0 + $0x2b8] sm:$0xff]
  %v129 = vld [vmem:[%s0 + $0x2c0] sm:$0xf]
  %v130 = vld [vmem:[%s0 + $0x2c4] sm:$0xff]
  %v131 = vld [vmem:[%s0 + $0x2cc] sm:$0xf]
  %v132 = vld [vmem:[%s0 + $0x2d0] sm:$0xff]
  %v133 = vld [vmem:[%s0 + $0x2d8] sm:$0xf]
  %v134 = vld [vmem:[%s0 + $0x2dc] sm:$0xff]
  %v135 = vld [vmem:[%s0 + $0x2e4] sm:$0xf]
  %v136 = vld [vmem:[%s0 + $0x2e8] sm:$0xff]
  %v137 = vld [vmem:[%s0 + $0x2f0] sm:$0xf]
  %v138 = vld [vmem:[%s0 + $0x2f4] sm:$0xff]
  %v139 = vld [vmem:[%s0 + $0x2fc] sm:$0xf]
  %v140 = vld [vmem:[%s1] sm:$0xf]
  %v141 = vld [vmem:[%s1 + $0x4] sm:$0xf]
  %v142 = vld [vmem:[%s1 + $0x8] sm:$0xf]
  %v143 = vld [vmem:[%s1 + $0xc] sm:$0xf]
  %v144 = vld [vmem:[%s1 + $0x10] sm:$0xf]
  %v145 = vld [vmem:[%s1 + $0x14] sm:$0xf]
  %v146 = vld [vmem:[%s1 + $0x18] sm:$0xf]
  %v147 = vld [vmem:[%s1 + $0x1c] sm:$0xf]
  %v148 = vld [vmem:[%s1 + $0x20] sm:$0xf]
  %v149 = vld [vmem:[%s1 + $0x24] sm:$0xf]
  %v150 = vld [vmem:[%s1 + $0x28] sm:$0xf]
  %v151 = vld [vmem:[%s1 + $0x2c] sm:$0xf]
  %v152 = vld [vmem:[%s1 + $0x30] sm:$0xf]
  %v153 = vld [vmem:[%s1 + $0x34] sm:$0xf]
  %v154 = vld [vmem:[%s1 + $0x38] sm:$0xf]
  %v155 = vld [vmem:[%s1 + $0x3c] sm:$0xf]
  %v156 = vld [vmem:[%s1 + $0x40] sm:$0xf]
  %v157 = vld [vmem:[%s1 + $0x44] sm:$0xf]
  %v158 = vld [vmem:[%s1 + $0x48] sm:$0xf]
  %v159 = vld [vmem:[%s1 + $0x4c] sm:$0xf]
  %v160 = vld [vmem:[%s1 + $0x50] sm:$0xf]
  %v161 = vld [vmem:[%s1 + $0x54] sm:$0xf]
  %v162 = vld [vmem:[%s1 + $0x58] sm:$0xf]
  %v163 = vld [vmem:[%s1 + $0x5c] sm:$0xf]
  %v164 = vld [vmem:[%s1 + $0x60] sm:$0xf]
  %v165 = vld [vmem:[%s1 + $0x64] sm:$0xf]
  %v166 = vld [vmem:[%s1 + $0x68] sm:$0xf]
  %v167 = vld [vmem:[%s1 + $0x6c] sm:$0xf]
  %v168 = vld [vmem:[%s1 + $0x70] sm:$0xf]
  %v169 = vld [vmem:[%s1 + $0x74] sm:$0xf]
  %v170 = vld [vmem:[%s1 + $0x78] sm:$0xf]
  %v171 = vld [vmem:[%s1 + $0x7c] sm:$0xf]
  %v172 = vld [vmem:[%s1 + $0x80] sm:$0xf]
  %v173 = vld [vmem:[%s1 + $0x84] sm:$0xf]
  %v174 = vld [vmem:[%s1 + $0x88] sm:$0xf]
  %v175 = vld [vmem:[%s1 + $0x8c] sm:$0xf]
  %v304 = vunpack.c.l.b16 %v12
  %v305 = vunpack.c.h.b16 %v12
  %v306 = vunpack.c.l.b16 %v13
  %v307 = vunpack.c.l.b16 %v14
  %v308 = vunpack.c.h.b16 %v14
  %v309 = vunpack.c.l.b16 %v15
  %v310 = vunpack.c.l.b16 %v16
  %v311 = vunpack.c.h.b16 %v16
  %v312 = vunpack.c.l.b16 %v17
  %v313 = vunpack.c.l.b16 %v18
  %v314 = vunpack.c.h.b16 %v18
  %v315 = vunpack.c.l.b16 %v19
  %v316 = vunpack.c.l.b16 %v20
  %v317 = vunpack.c.h.b16 %v20
  %v318 = vunpack.c.l.b16 %v21
  %v319 = vunpack.c.l.b16 %v22
  %v320 = vunpack.c.h.b16 %v22
  %v321 = vunpack.c.l.b16 %v23
  %v322 = vunpack.c.l.b16 %v24
  %v323 = vunpack.c.h.b16 %v24
  %v324 = vunpack.c.l.b16 %v25
  %v325 = vunpack.c.l.b16 %v26
  %v326 = vunpack.c.h.b16 %v26
  %v327 = vunpack.c.l.b16 %v27
  %v328 = vunpack.c.l.b16 %v28
  %v329 = vunpack.c.h.b16 %v28
  %v330 = vunpack.c.l.b16 %v29
  %v331 = vunpack.c.l.b16 %v30
  %v332 = vunpack.c.h.b16 %v30
  %v333 = vunpack.c.l.b16 %v31
  %v334 = vunpack.c.l.b16 %v32
  %v335 = vunpack.c.h.b16 %v32
  %v336 = vunpack.c.l.b16 %v33
  %v337 = vunpack.c.l.b16 %v34
  %v338 = vunpack.c.h.b16 %v34
  %v339 = vunpack.c.l.b16 %v35
  %v340 = vunpack.c.l.b16 %v36
  %v341 = vunpack.c.h.b16 %v36
  %v342 = vunpack.c.l.b16 %v37
  %v343 = vunpack.c.l.b16 %v38
  %v344 = vunpack.c.h.b16 %v38
  %v345 = vunpack.c.l.b16 %v39
  %v346 = vunpack.c.l.b16 %v40
  %v347 = vunpack.c.h.b16 %v40
  %v348 = vunpack.c.l.b16 %v41
  %v349 = vunpack.c.l.b16 %v42
  %v350 = vunpack.c.h.b16 %v42
  %v351 = vunpack.c.l.b16 %v43
  %v352 = vunpack.c.l.b16 %v44
  %v353 = vunpack.c.h.b16 %v44
  %v354 = vunpack.c.l.b16 %v45
  %v355 = vunpack.c.l.b16 %v46
  %v356 = vunpack.c.h.b16 %v46
  %v357 = vunpack.c.l.b16 %v47
  %v358 = vunpack.c.l.b16 %v48
  %v359 = vunpack.c.h.b16 %v48
  %v360 = vunpack.c.l.b16 %v49
  %v361 = vunpack.c.l.b16 %v50
  %v362 = vunpack.c.h.b16 %v50
  %v363 = vunpack.c.l.b16 %v51
  %v364 = vunpack.c.l.b16 %v52
  %v365 = vunpack.c.h.b16 %v52
  %v366 = vunpack.c.l.b16 %v53
  %v367 = vunpack.c.l.b16 %v54
  %v368 = vunpack.c.h.b16 %v54
  %v369 = vunpack.c.l.b16 %v55
  %v370 = vunpack.c.l.b16 %v56
  %v371 = vunpack.c.h.b16 %v56
  %v372 = vunpack.c.l.b16 %v57
  %v373 = vunpack.c.l.b16 %v58
  %v374 = vunpack.c.h.b16 %v58
  %v375 = vunpack.c.l.b16 %v59
  %v376 = vunpack.c.l.b16 %v60
  %v377 = vunpack.c.h.b16 %v60
  %v378 = vunpack.c.l.b16 %v61
  %v379 = vunpack.c.l.b16 %v62
  %v380 = vunpack.c.h.b16 %v62
  %v381 = vunpack.c.l.b16 %v63
  %v382 = vunpack.c.l.b16 %v64
  %v383 = vunpack.c.h.b16 %v64
  %v384 = vunpack.c.l.b16 %v65
  %v385 = vunpack.c.l.b16 %v66
  %v386 = vunpack.c.h.b16 %v66
  %v387 = vunpack.c.l.b16 %v67
  %v388 = vunpack.c.l.b16 %v68
  %v389 = vunpack.c.h.b16 %v68
  %v390 = vunpack.c.l.b16 %v69
  %v391 = vunpack.c.l.b16 %v70
  %v392 = vunpack.c.h.b16 %v70
  %v393 = vunpack.c.l.b16 %v71
  %v394 = vunpack.c.l.b16 %v72
  %v395 = vunpack.c.h.b16 %v72
  %v396 = vunpack.c.l.b16 %v73
  %v397 = vunpack.c.l.b16 %v74
  %v398 = vunpack.c.h.b16 %v74
  %v399 = vunpack.c.l.b16 %v75
  %v400 = vunpack.c.l.b16 %v76
  %v401 = vunpack.c.h.b16 %v76
  %v402 = vunpack.c.l.b16 %v77
  %v403 = vunpack.c.l.b16 %v78
  %v404 = vunpack.c.h.b16 %v78
  %v405 = vunpack.c.l.b16 %v79
  %v406 = vunpack.c.l.b16 %v80
  %v407 = vunpack.c.h.b16 %v80
  %v408 = vunpack.c.l.b16 %v81
  %v409 = vunpack.c.l.b16 %v82
  %v410 = vunpack.c.h.b16 %v82
  %v411 = vunpack.c.l.b16 %v83
  %v412 = vunpack.c.l.b16 %v84
  %v413 = vunpack.c.h.b16 %v84
  %v414 = vunpack.c.l.b16 %v85
  %v415 = vunpack.c.l.b16 %v86
  %v416 = vunpack.c.h.b16 %v86
  %v417 = vunpack.c.l.b16 %v87
  %v418 = vunpack.c.l.b16 %v88
  %v419 = vunpack.c.h.b16 %v88
  %v420 = vunpack.c.l.b16 %v89
  %v421 = vunpack.c.l.b16 %v90
  %v422 = vunpack.c.h.b16 %v90
  %v423 = vunpack.c.l.b16 %v91
  %v424 = vunpack.c.l.b16 %v92
  %v425 = vunpack.c.h.b16 %v92
  %v426 = vunpack.c.l.b16 %v93
  %v427 = vunpack.c.l.b16 %v94
  %v428 = vunpack.c.h.b16 %v94
  %v429 = vunpack.c.l.b16 %v95
  %v430 = vunpack.c.l.b16 %v96
  %v431 = vunpack.c.h.b16 %v96
  %v432 = vunpack.c.l.b16 %v97
  %v433 = vunpack.c.l.b16 %v98
  %v434 = vunpack.c.h.b16 %v98
  %v435 = vunpack.c.l.b16 %v99
  %v436 = vunpack.c.l.b16 %v100
  %v437 = vunpack.c.h.b16 %v100
  %v438 = vunpack.c.l.b16 %v101
  %v439 = vunpack.c.l.b16 %v102
  %v440 = vunpack.c.h.b16 %v102
  %v441 = vunpack.c.l.b16 %v103
  %v442 = vunpack.c.l.b16 %v104
  %v443 = vunpack.c.h.b16 %v104
  %v444 = vunpack.c.l.b16 %v105
  %v445 = vunpack.c.l.b16 %v106
  %v446 = vunpack.c.h.b16 %v106
  %v447 = vunpack.c.l.b16 %v107
  %v448 = vunpack.c.l.b16 %v108
  %v449 = vunpack.c.h.b16 %v108
  %v450 = vunpack.c.l.b16 %v109
  %v451 = vunpack.c.l.b16 %v110
  %v452 = vunpack.c.h.b16 %v110
  %v453 = vunpack.c.l.b16 %v111
  %v454 = vunpack.c.l.b16 %v112
  %v455 = vunpack.c.h.b16 %v112
  %v456 = vunpack.c.l.b16 %v113
  %v457 = vunpack.c.l.b16 %v114
  %v458 = vunpack.c.h.b16 %v114
  %v459 = vunpack.c.l.b16 %v115
  %v460 = vunpack.c.l.b16 %v116
  %v461 = vunpack.c.h.b16 %v116
  %v462 = vunpack.c.l.b16 %v117
  %v463 = vunpack.c.l.b16 %v118
  %v464 = vunpack.c.h.b16 %v118
  %v465 = vunpack.c.l.b16 %v119
  %v466 = vunpack.c.l.b16 %v120
  %v467 = vunpack.c.h.b16 %v120
  %v468 = vunpack.c.l.b16 %v121
  %v469 = vunpack.c.l.b16 %v122
  %v470 = vunpack.c.h.b16 %v122
  %v471 = vunpack.c.l.b16 %v123
  %v472 = vunpack.c.l.b16 %v124
  %v473 = vunpack.c.h.b16 %v124
  %v474 = vunpack.c.l.b16 %v125
  %v475 = vunpack.c.l.b16 %v126
  %v476 = vunpack.c.h.b16 %v126
  %v477 = vunpack.c.l.b16 %v127
  %v478 = vunpack.c.l.b16 %v128
  %v479 = vunpack.c.h.b16 %v128
  %v480 = vunpack.c.l.b16 %v129
  %v481 = vunpack.c.l.b16 %v130
  %v482 = vunpack.c.h.b16 %v130
  %v483 = vunpack.c.l.b16 %v131
  %v484 = vunpack.c.l.b16 %v132
  %v485 = vunpack.c.h.b16 %v132
  %v486 = vunpack.c.l.b16 %v133
  %v487 = vunpack.c.l.b16 %v134
  %v488 = vunpack.c.h.b16 %v134
  %v489 = vunpack.c.l.b16 %v135
  %v490 = vunpack.c.l.b16 %v136
  %v491 = vunpack.c.h.b16 %v136
  %v492 = vunpack.c.l.b16 %v137
  %v493 = vunpack.c.l.b16 %v138
  %v494 = vunpack.c.h.b16 %v138
  %v495 = vunpack.c.l.b16 %v139
  %v496 = vpack.c.b16 %v307, %v304
  %v497 = vpack.c.b16 %v308, %v305
  %v498 = vpack.c.b16 %v309, %v306
  %v499 = vpack.c.b16 %v313, %v310
  %v500 = vpack.c.b16 %v314, %v311
  %v501 = vpack.c.b16 %v315, %v312
  %v502 = vpack.c.b16 %v319, %v316
  %v503 = vpack.c.b16 %v320, %v317
  %v504 = vpack.c.b16 %v321, %v318
  %v505 = vpack.c.b16 %v325, %v322
  %v506 = vpack.c.b16 %v326, %v323
  %v507 = vpack.c.b16 %v327, %v324
  %v508 = vpack.c.b16 %v331, %v328
  %v509 = vpack.c.b16 %v332, %v329
  %v510 = vpack.c.b16 %v333, %v330
  %v511 = vpack.c.b16 %v337, %v334
  %v512 = vpack.c.b16 %v338, %v335
  %v513 = vpack.c.b16 %v339, %v336
  %v514 = vpack.c.b16 %v343, %v340
  %v515 = vpack.c.b16 %v344, %v341
  %v516 = vpack.c.b16 %v345, %v342
  %v517 = vpack.c.b16 %v349, %v346
  %v518 = vpack.c.b16 %v350, %v347
  %v519 = vpack.c.b16 %v351, %v348
  %v520 = vpack.c.b16 %v355, %v352
  %v521 = vpack.c.b16 %v356, %v353
  %v522 = vpack.c.b16 %v357, %v354
  %v523 = vpack.c.b16 %v361, %v358
  %v524 = vpack.c.b16 %v362, %v359
  %v525 = vpack.c.b16 %v363, %v360
  %v526 = vpack.c.b16 %v367, %v364
  %v527 = vpack.c.b16 %v368, %v365
  %v528 = vpack.c.b16 %v369, %v366
  %v529 = vpack.c.b16 %v373, %v370
  %v530 = vpack.c.b16 %v374, %v371
  %v531 = vpack.c.b16 %v375, %v372
  %v532 = vpack.c.b16 %v379, %v376
  %v533 = vpack.c.b16 %v380, %v377
  %v534 = vpack.c.b16 %v381, %v378
  %v535 = vpack.c.b16 %v385, %v382
  %v536 = vpack.c.b16 %v386, %v383
  %v537 = vpack.c.b16 %v387, %v384
  %v538 = vpack.c.b16 %v391, %v388
  %v539 = vpack.c.b16 %v392, %v389
  %v540 = vpack.c.b16 %v393, %v390
  %v541 = vpack.c.b16 %v397, %v394
  %v542 = vpack.c.b16 %v398, %v395
  %v543 = vpack.c.b16 %v399, %v396
  %v544 = vpack.c.b16 %v403, %v400
  %v545 = vpack.c.b16 %v404, %v401
  %v546 = vpack.c.b16 %v405, %v402
  %v547 = vpack.c.b16 %v409, %v406
  %v548 = vpack.c.b16 %v410, %v407
  %v549 = vpack.c.b16 %v411, %v408
  %v550 = vpack.c.b16 %v415, %v412
  %v551 = vpack.c.b16 %v416, %v413
  %v552 = vpack.c.b16 %v417, %v414
  %v553 = vpack.c.b16 %v421, %v418
  %v554 = vpack.c.b16 %v422, %v419
  %v555 = vpack.c.b16 %v423, %v420
  %v556 = vpack.c.b16 %v427, %v424
  %v557 = vpack.c.b16 %v428, %v425
  %v558 = vpack.c.b16 %v429, %v426
  %v559 = vpack.c.b16 %v433, %v430
  %v560 = vpack.c.b16 %v434, %v431
  %v561 = vpack.c.b16 %v435, %v432
  %v562 = vpack.c.b16 %v439, %v436
  %v563 = vpack.c.b16 %v440, %v437
  %v564 = vpack.c.b16 %v441, %v438
  %v565 = vpack.c.b16 %v445, %v442
  %v566 = vpack.c.b16 %v446, %v443
  %v567 = vpack.c.b16 %v447, %v444
  %v568 = vpack.c.b16 %v451, %v448
  %v569 = vpack.c.b16 %v452, %v449
  %v570 = vpack.c.b16 %v453, %v450
  %v571 = vpack.c.b16 %v457, %v454
  %v572 = vpack.c.b16 %v458, %v455
  %v573 = vpack.c.b16 %v459, %v456
  %v574 = vpack.c.b16 %v463, %v460
  %v575 = vpack.c.b16 %v464, %v461
  %v576 = vpack.c.b16 %v465, %v462
  %v577 = vpack.c.b16 %v469, %v466
  %v578 = vpack.c.b16 %v470, %v467
  %v579 = vpack.c.b16 %v471, %v468
  %v580 = vpack.c.b16 %v475, %v472
  %v581 = vpack.c.b16 %v476, %v473
  %v582 = vpack.c.b16 %v477, %v474
  %v583 = vpack.c.b16 %v481, %v478
  %v584 = vpack.c.b16 %v482, %v479
  %v585 = vpack.c.b16 %v483, %v480
  %v586 = vpack.c.b16 %v487, %v484
  %v587 = vpack.c.b16 %v488, %v485
  %v588 = vpack.c.b16 %v489, %v486
  %v589 = vpack.c.b16 %v493, %v490
  %v590 = vpack.c.b16 %v494, %v491
  %v591 = vpack.c.b16 %v495, %v492
  %v692 = vunpack.c.l.b16 %v140
  %v693 = vunpack.c.l.b16 %v141
  %v694 = vunpack.c.l.b16 %v142
  %v695 = vunpack.c.l.b16 %v143
  %v696 = vunpack.c.l.b16 %v144
  %v697 = vunpack.c.l.b16 %v145
  %v698 = vunpack.c.l.b16 %v146
  %v699 = vunpack.c.l.b16 %v147
  %v700 = vunpack.c.l.b16 %v148
  %v701 = vunpack.c.l.b16 %v149
  %v702 = vunpack.c.l.b16 %v150
  %v703 = vunpack.c.l.b16 %v151
  %v704 = vunpack.c.l.b16 %v152
  %v705 = vunpack.c.l.b16 %v153
  %v706 = vunpack.c.l.b16 %v154
  %v707 = vunpack.c.l.b16 %v155
  %v708 = vunpack.c.l.b16 %v156
  %v709 = vunpack.c.l.b16 %v157
  %v710 = vunpack.c.l.b16 %v158
  %v711 = vunpack.c.l.b16 %v159
  %v712 = vunpack.c.l.b16 %v160
  %v713 = vunpack.c.l.b16 %v161
  %v714 = vunpack.c.l.b16 %v162
  %v715 = vunpack.c.l.b16 %v163
  %v716 = vunpack.c.l.b16 %v164
  %v717 = vunpack.c.l.b16 %v165
  %v718 = vunpack.c.l.b16 %v166
  %v719 = vunpack.c.l.b16 %v167
  %v720 = vunpack.c.l.b16 %v168
  %v721 = vunpack.c.l.b16 %v169
  %v722 = vunpack.c.l.b16 %v170
  %v723 = vunpack.c.l.b16 %v171
  %v724 = vunpack.c.l.b16 %v172
  %v725 = vunpack.c.l.b16 %v173
  %v726 = vunpack.c.l.b16 %v174
  %v727 = vunpack.c.l.b16 %v175
  %v728 = vpack.c.b16 %v693, %v692
  %v729 = vpack.c.b16 %v695, %v694
  %v730 = vpack.c.b16 %v697, %v696
  %v731 = vpack.c.b16 %v699, %v698
  %v732 = vpack.c.b16 %v701, %v700
  %v733 = vpack.c.b16 %v703, %v702
  %v734 = vpack.c.b16 %v705, %v704
  %v735 = vpack.c.b16 %v707, %v706
  %v736 = vpack.c.b16 %v709, %v708
  %v737 = vpack.c.b16 %v711, %v710
  %v738 = vpack.c.b16 %v713, %v712
  %v739 = vpack.c.b16 %v715, %v714
  %v740 = vpack.c.b16 %v717, %v716
  %v741 = vpack.c.b16 %v719, %v718
  %v742 = vpack.c.b16 %v721, %v720
  %v743 = vpack.c.b16 %v723, %v722
  %v744 = vpack.c.b16 %v725, %v724
  %v745 = vpack.c.b16 %v727, %v726
  %vm764 = vcmask 261120
  %v766 = vsel %vm764, %v498, 0
  %v769 = vsel %vm764, %v501, 0
  %v772 = vsel %vm764, %v504, 0
  %v775 = vsel %vm764, %v507, 0
  %v778 = vsel %vm764, %v510, 0
  %v781 = vsel %vm764, %v513, 0
  %v784 = vsel %vm764, %v516, 0
  %v787 = vsel %vm764, %v519, 0
  %v790 = vsel %vm764, %v522, 0
  %v793 = vsel %vm764, %v525, 0
  %v796 = vsel %vm764, %v528, 0
  %v799 = vsel %vm764, %v531, 0
  %v802 = vsel %vm764, %v534, 0
  %v805 = vsel %vm764, %v537, 0
  %v808 = vsel %vm764, %v540, 0
  %v811 = vsel %vm764, %v543, 0
  %v814 = vsel %vm764, %v546, 0
  %v817 = vsel %vm764, %v549, 0
  %v820 = vsel %vm764, %v552, 0
  %v823 = vsel %vm764, %v555, 0
  %v826 = vsel %vm764, %v558, 0
  %v829 = vsel %vm764, %v561, 0
  %v832 = vsel %vm764, %v564, 0
  %v835 = vsel %vm764, %v567, 0
  %v838 = vsel %vm764, %v570, 0
  %v841 = vsel %vm764, %v573, 0
  %v844 = vsel %vm764, %v576, 0
  %v847 = vsel %vm764, %v579, 0
  %v850 = vsel %vm764, %v582, 0
  %v853 = vsel %vm764, %v585, 0
  %v856 = vsel %vm764, %v588, 0
  %v859 = vsel %vm764, %v591, 0
  %861 = vmatprep.subr.bf16.mxu0 0
  %862 = vmatpush1.bf16.msra.mxu0 %v728
  %863 = vmatprep.subr.bf16.mxu0 0
  %864 = vmatpush1.bf16.msra.mxu0 %v729
  %865 = vmatprep.subr.bf16.mxu0 0
  %866 = vmatpush1.bf16.msra.mxu0 %v730
  %867 = vmatprep.subr.bf16.mxu0 0
  %868 = vmatpush1.bf16.msra.mxu0 %v731
  %869 = vmatprep.subr.bf16.mxu0 0
  %870 = vmatpush1.bf16.msra.mxu0 %v732
  %871 = vmatprep.subr.bf16.mxu0 0
  %872 = vmatpush1.bf16.msra.mxu0 %v733
  %873 = vmatprep.subr.bf16.mxu0 0
  %874 = vmatpush1.bf16.msra.mxu0 %v734
  %875 = vmatprep.subr.bf16.mxu0 0
  %876 = vmatpush1.bf16.msra.mxu0 %v735
  %877 = vmatprep.subr.bf16.mxu0 0
  %878 = vmatpush1.bf16.msra.mxu0 %v736
  %879 = vmatprep.subr.bf16.mxu0 0
  %880 = vmatpush1.bf16.msra.mxu0 %v737
  %881 = vmatprep.subr.bf16.mxu0 0
  %882 = vmatpush1.bf16.msra.mxu0 %v738
  %883 = vmatprep.subr.bf16.mxu0 0
  %884 = vmatpush1.bf16.msra.mxu0 %v739
  %885 = vmatprep.subr.bf16.mxu0 0
  %886 = vmatpush1.bf16.msra.mxu0 %v740
  %887 = vmatprep.subr.bf16.mxu0 0
  %888 = vmatpush1.bf16.msra.mxu0 %v741
  %889 = vmatprep.subr.bf16.mxu0 0
  %890 = vmatpush1.bf16.msra.mxu0 %v742
  %891 = vmatprep.subr.bf16.mxu0 0
  %892 = vmatpush1.bf16.msra.mxu0 %v743
  %893 = vmatprep.mubr.bf16.mxu0 %v497
  %894 = vmatmul.mubr.bf16.gmra.mrb[0].mxu0 %v496
  %v895 = vpop.f32.mrb[0].mxu0
  %v896 = vadd.f32 0.0, %v895
  %v897 = vpop.f32.mrb[0].mxu0
  %v898 = vpop.f32.mrb[0].mxu0
  %v899 = vadd.f32 0.0, %v898
  %v900 = vpop.f32.mrb[0].mxu0
  %901 = vmatprep.mubr.bf16.mxu0 %v500
  %902 = vmatmul.mubr.bf16.gmra.mrb[0].mxu0 %v499
  %v903 = vpop.f32.mrb[0].mxu0
  %v904 = vadd.f32 0.0, %v903
  %v905 = vpop.f32.mrb[0].mxu0
  %v906 = vpop.f32.mrb[0].mxu0
  %v907 = vadd.f32 0.0, %v906
  %v908 = vpop.f32.mrb[0].mxu0
  %909 = vmatprep.mubr.bf16.mxu0 %v503
  %910 = vmatmul.mubr.bf16.gmra.mrb[0].mxu0 %v502
  %v911 = vpop.f32.mrb[0].mxu0
  %v912 = vadd.f32 0.0, %v911
  %v913 = vpop.f32.mrb[0].mxu0
  %v914 = vpop.f32.mrb[0].mxu0
  %v915 = vadd.f32 0.0, %v914
  %v916 = vpop.f32.mrb[0].mxu0
  %917 = vmatprep.mubr.bf16.mxu0 %v506
  %918 = vmatmul.mubr.bf16.gmra.mrb[0].mxu0 %v505
  %v919 = vpop.f32.mrb[0].mxu0
  %v920 = vadd.f32 0.0, %v919
  %v921 = vpop.f32.mrb[0].mxu0
  %v922 = vpop.f32.mrb[0].mxu0
  %v923 = vadd.f32 0.0, %v922
  %v924 = vpop.f32.mrb[0].mxu0
  %925 = vmatprep.mubr.bf16.mxu0 %v509
  %926 = vmatmul.mubr.bf16.gmra.mrb[0].mxu0 %v508
  %v927 = vpop.f32.mrb[0].mxu0
  %v928 = vadd.f32 0.0, %v927
  %v929 = vpop.f32.mrb[0].mxu0
  %v930 = vpop.f32.mrb[0].mxu0
  %v931 = vadd.f32 0.0, %v930
  %v932 = vpop.f32.mrb[0].mxu0
  %933 = vmatprep.mubr.bf16.mxu0 %v512
  %934 = vmatmul.mubr.bf16.gmra.mrb[0].mxu0 %v511
  %v935 = vpop.f32.mrb[0].mxu0
  %v936 = vadd.f32 0.0, %v935
  %v937 = vpop.f32.mrb[0].mxu0
  %v938 = vpop.f32.mrb[0].mxu0
  %v939 = vadd.f32 0.0, %v938
  %v940 = vpop.f32.mrb[0].mxu0
  %941 = vmatprep.mubr.bf16.mxu0 %v515
  %942 = vmatmul.mubr.bf16.gmra.mrb[0].mxu0 %v514
  %v943 = vpop.f32.mrb[0].mxu0
  %v944 = vadd.f32 0.0, %v943
  %v945 = vpop.f32.mrb[0].mxu0
  %v946 = vpop.f32.mrb[0].mxu0
  %v947 = vadd.f32 0.0, %v946
  %v948 = vpop.f32.mrb[0].mxu0
  %949 = vmatprep.mubr.bf16.mxu0 %v518
  %950 = vmatmul.mubr.bf16.gmra.mrb[0].mxu0 %v517
  %v951 = vpop.f32.mrb[0].mxu0
  %v952 = vadd.f32 0.0, %v951
  %v953 = vpop.f32.mrb[0].mxu0
  %v954 = vpop.f32.mrb[0].mxu0
  %v955 = vadd.f32 0.0, %v954
  %v956 = vpop.f32.mrb[0].mxu0
  %957 = vmatprep.mubr.bf16.mxu0 %v521
  %958 = vmatmul.mubr.bf16.gmra.mrb[0].mxu0 %v520
  %v959 = vpop.f32.mrb[0].mxu0
  %v960 = vadd.f32 0.0, %v959
  %v961 = vpop.f32.mrb[0].mxu0
  %v962 = vpop.f32.mrb[0].mxu0
  %v963 = vadd.f32 0.0, %v962
  %v964 = vpop.f32.mrb[0].mxu0
  %965 = vmatprep.mubr.bf16.mxu0 %v524
  %966 = vmatmul.mubr.bf16.gmra.mrb[0].mxu0 %v523
  %v967 = vpop.f32.mrb[0].mxu0
  %v968 = vadd.f32 0.0, %v967
  %v969 = vpop.f32.mrb[0].mxu0
  %v970 = vpop.f32.mrb[0].mxu0
  %v971 = vadd.f32 0.0, %v970
  %v972 = vpop.f32.mrb[0].mxu0
  %973 = vmatprep.mubr.bf16.mxu0 %v527
  %974 = vmatmul.mubr.bf16.gmra.mrb[0].mxu0 %v526
  %v975 = vpop.f32.mrb[0].mxu0
  %v976 = vadd.f32 0.0, %v975
  %v977 = vpop.f32.mrb[0].mxu0
  %v978 = vpop.f32.mrb[0].mxu0
  %v979 = vadd.f32 0.0, %v978
  %v980 = vpop.f32.mrb[0].mxu0
  %981 = vmatprep.mubr.bf16.mxu0 %v530
  %982 = vmatmul.mubr.bf16.gmra.mrb[0].mxu0 %v529
  %v983 = vpop.f32.mrb[0].mxu0
  %v984 = vadd.f32 0.0, %v983
  %v985 = vpop.f32.mrb[0].mxu0
  %v986 = vpop.f32.mrb[0].mxu0
  %v987 = vadd.f32 0.0, %v986
  %v988 = vpop.f32.mrb[0].mxu0
  %989 = vmatprep.mubr.bf16.mxu0 %v533
  %990 = vmatmul.mubr.bf16.gmra.mrb[0].mxu0 %v532
  %v991 = vpop.f32.mrb[0].mxu0
  %v992 = vadd.f32 0.0, %v991
  %v993 = vpop.f32.mrb[0].mxu0
  %v994 = vpop.f32.mrb[0].mxu0
  %v995 = vadd.f32 0.0, %v994
  %v996 = vpop.f32.mrb[0].mxu0
  %997 = vmatprep.mubr.bf16.mxu0 %v536
  %998 = vmatmul.mubr.bf16.gmra.mrb[0].mxu0 %v535
  %v999 = vpop.f32.mrb[0].mxu0
  %v1000 = vadd.f32 0.0, %v999
  %v1001 = vpop.f32.mrb[0].mxu0
  %v1002 = vpop.f32.mrb[0].mxu0
  %v1003 = vadd.f32 0.0, %v1002
  %v1004 = vpop.f32.mrb[0].mxu0
  %1005 = vmatprep.mubr.bf16.mxu0 %v539
  %1006 = vmatmul.mubr.bf16.gmra.mrb[0].mxu0 %v538
  %v1007 = vpop.f32.mrb[0].mxu0
  %v1008 = vadd.f32 0.0, %v1007
  %v1009 = vpop.f32.mrb[0].mxu0
  %v1010 = vpop.f32.mrb[0].mxu0
  %v1011 = vadd.f32 0.0, %v1010
  %v1012 = vpop.f32.mrb[0].mxu0
  %1013 = vmatprep.mubr.bf16.mxu0 %v542
  %1014 = vmatmul.mubr.bf16.gmra.mrb[0].mxu0 %v541
  %v1015 = vpop.f32.mrb[0].mxu0
  %v1016 = vadd.f32 0.0, %v1015
  %v1017 = vpop.f32.mrb[0].mxu0
  %v1018 = vpop.f32.mrb[0].mxu0
  %v1019 = vadd.f32 0.0, %v1018
  %v1020 = vpop.f32.mrb[0].mxu0
  %1021 = vmatprep.mubr.bf16.mxu0 %v545
  %1022 = vmatmul.mubr.bf16.gmra.mrb[0].mxu0 %v544
  %v1023 = vpop.f32.mrb[0].mxu0
  %v1024 = vadd.f32 0.0, %v1023
  %v1025 = vpop.f32.mrb[0].mxu0
  %v1026 = vpop.f32.mrb[0].mxu0
  %v1027 = vadd.f32 0.0, %v1026
  %v1028 = vpop.f32.mrb[0].mxu0
  %1029 = vmatprep.mubr.bf16.mxu0 %v548
  %1030 = vmatmul.mubr.bf16.gmra.mrb[0].mxu0 %v547
  %v1031 = vpop.f32.mrb[0].mxu0
  %v1032 = vadd.f32 0.0, %v1031
  %v1033 = vpop.f32.mrb[0].mxu0
  %v1034 = vpop.f32.mrb[0].mxu0
  %v1035 = vadd.f32 0.0, %v1034
  %v1036 = vpop.f32.mrb[0].mxu0
  %1037 = vmatprep.mubr.bf16.mxu0 %v551
  %1038 = vmatmul.mubr.bf16.gmra.mrb[0].mxu0 %v550
  %v1039 = vpop.f32.mrb[0].mxu0
  %v1040 = vadd.f32 0.0, %v1039
  %v1041 = vpop.f32.mrb[0].mxu0
  %v1042 = vpop.f32.mrb[0].mxu0
  %v1043 = vadd.f32 0.0, %v1042
  %v1044 = vpop.f32.mrb[0].mxu0
  %1045 = vmatprep.mubr.bf16.mxu0 %v554
  %1046 = vmatmul.mubr.bf16.gmra.mrb[0].mxu0 %v553
  %v1047 = vpop.f32.mrb[0].mxu0
  %v1048 = vadd.f32 0.0, %v1047
  %v1049 = vpop.f32.mrb[0].mxu0
  %v1050 = vpop.f32.mrb[0].mxu0
  %v1051 = vadd.f32 0.0, %v1050
  %v1052 = vpop.f32.mrb[0].mxu0
  %1053 = vmatprep.mubr.bf16.mxu0 %v557
  %1054 = vmatmul.mubr.bf16.gmra.mrb[0].mxu0 %v556
  %v1055 = vpop.f32.mrb[0].mxu0
  %v1056 = vadd.f32 0.0, %v1055
  %v1057 = vpop.f32.mrb[0].mxu0
  %v1058 = vpop.f32.mrb[0].mxu0
  %v1059 = vadd.f32 0.0, %v1058
  %v1060 = vpop.f32.mrb[0].mxu0
  %1061 = vmatprep.mubr.bf16.mxu0 %v560
  %1062 = vmatmul.mubr.bf16.gmra.mrb[0].mxu0 %v559
  %v1063 = vpop.f32.mrb[0].mxu0
  %v1064 = vadd.f32 0.0, %v1063
  %v1065 = vpop.f32.mrb[0].mxu0
  %v1066 = vpop.f32.mrb[0].mxu0
  %v1067 = vadd.f32 0.0, %v1066
  %v1068 = vpop.f32.mrb[0].mxu0
  %1069 = vmatprep.mubr.bf16.mxu0 %v563
  %1070 = vmatmul.mubr.bf16.gmra.mrb[0].mxu0 %v562
  %v1071 = vpop.f32.mrb[0].mxu0
  %v1072 = vadd.f32 0.0, %v1071
  %v1073 = vpop.f32.mrb[0].mxu0
  %v1074 = vpop.f32.mrb[0].mxu0
  %v1075 = vadd.f32 0.0, %v1074
  %v1076 = vpop.f32.mrb[0].mxu0
  %1077 = vmatprep.mubr.bf16.mxu0 %v566
  %1078 = vmatmul.mubr.bf16.gmra.mrb[0].mxu0 %v565
  %v1079 = vpop.f32.mrb[0].mxu0
  %v1080 = vadd.f32 0.0, %v1079
  %v1081 = vpop.f32.mrb[0].mxu0
  %v1082 = vpop.f32.mrb[0].mxu0
  %v1083 = vadd.f32 0.0, %v1082
  %v1084 = vpop.f32.mrb[0].mxu0
  %1085 = vmatprep.mubr.bf16.mxu0 %v569
  %1086 = vmatmul.mubr.bf16.gmra.mrb[0].mxu0 %v568
  %v1087 = vpop.f32.mrb[0].mxu0
  %v1088 = vadd.f32 0.0, %v1087
  %v1089 = vpop.f32.mrb[0].mxu0
  %v1090 = vpop.f32.mrb[0].mxu0
  %v1091 = vadd.f32 0.0, %v1090
  %v1092 = vpop.f32.mrb[0].mxu0
  %1093 = vmatprep.mubr.bf16.mxu0 %v572
  %1094 = vmatmul.mubr.bf16.gmra.mrb[0].mxu0 %v571
  %v1095 = vpop.f32.mrb[0].mxu0
  %v1096 = vadd.f32 0.0, %v1095
  %v1097 = vpop.f32.mrb[0].mxu0
  %v1098 = vpop.f32.mrb[0].mxu0
  %v1099 = vadd.f32 0.0, %v1098
  %v1100 = vpop.f32.mrb[0].mxu0
  %1101 = vmatprep.mubr.bf16.mxu0 %v575
  %1102 = vmatmul.mubr.bf16.gmra.mrb[0].mxu0 %v574
  %v1103 = vpop.f32.mrb[0].mxu0
  %v1104 = vadd.f32 0.0, %v1103
  %v1105 = vpop.f32.mrb[0].mxu0
  %v1106 = vpop.f32.mrb[0].mxu0
  %v1107 = vadd.f32 0.0, %v1106
  %v1108 = vpop.f32.mrb[0].mxu0
  %1109 = vmatprep.mubr.bf16.mxu0 %v578
  %1110 = vmatmul.mubr.bf16.gmra.mrb[0].mxu0 %v577
  %v1111 = vpop.f32.mrb[0].mxu0
  %v1112 = vadd.f32 0.0, %v1111
  %v1113 = vpop.f32.mrb[0].mxu0
  %v1114 = vpop.f32.mrb[0].mxu0
  %v1115 = vadd.f32 0.0, %v1114
  %v1116 = vpop.f32.mrb[0].mxu0
  %1117 = vmatprep.mubr.bf16.mxu0 %v581
  %1118 = vmatmul.mubr.bf16.gmra.mrb[0].mxu0 %v580
  %v1119 = vpop.f32.mrb[0].mxu0
  %v1120 = vadd.f32 0.0, %v1119
  %v1121 = vpop.f32.mrb[0].mxu0
  %v1122 = vpop.f32.mrb[0].mxu0
  %v1123 = vadd.f32 0.0, %v1122
  %v1124 = vpop.f32.mrb[0].mxu0
  %1125 = vmatprep.mubr.bf16.mxu0 %v584
  %1126 = vmatmul.mubr.bf16.gmra.mrb[0].mxu0 %v583
  %v1127 = vpop.f32.mrb[0].mxu0
  %v1128 = vadd.f32 0.0, %v1127
  %v1129 = vpop.f32.mrb[0].mxu0
  %v1130 = vpop.f32.mrb[0].mxu0
  %v1131 = vadd.f32 0.0, %v1130
  %v1132 = vpop.f32.mrb[0].mxu0
  %1133 = vmatprep.mubr.bf16.mxu0 %v587
  %1134 = vmatmul.mubr.bf16.gmra.mrb[0].mxu0 %v586
  %v1135 = vpop.f32.mrb[0].mxu0
  %v1136 = vadd.f32 0.0, %v1135
  %v1137 = vpop.f32.mrb[0].mxu0
  %v1138 = vpop.f32.mrb[0].mxu0
  %v1139 = vadd.f32 0.0, %v1138
  %v1140 = vpop.f32.mrb[0].mxu0
  %1141 = vmatprep.mubr.bf16.mxu0 %v590
  %1142 = vmatmul.mubr.bf16.gmra.mrb[0].mxu0 %v589
  %v1143 = vpop.f32.mrb[0].mxu0
  %v1144 = vadd.f32 0.0, %v1143
  %v1145 = vpop.f32.mrb[0].mxu0
  %v1146 = vpop.f32.mrb[0].mxu0
  %v1147 = vadd.f32 0.0, %v1146
  %v1148 = vpop.f32.mrb[0].mxu0
  %1149 = vdwg.mxu0
  %1150 = vmatprep.subr.bf16.mxu0 0
  %1151 = vmatpush1.bf16.msra.mxu0 %v744
  %1152 = vmatprep.subr.bf16.mxu0 0
  %1153 = vmatpush1.bf16.msra.mxu0 %v745
  %1154 = vmatprep.subr.bf16.mxu0 0
  %1155 = vmatpush1.bf16.msra.mxu0 0
  %1156 = vmatprep.subr.bf16.mxu0 0
  %1157 = vmatpush1.bf16.msra.mxu0 0
  %1158 = vmatprep.subr.bf16.mxu0 0
  %1159 = vmatpush1.bf16.msra.mxu0 0
  %1160 = vmatprep.subr.bf16.mxu0 0
  %1161 = vmatpush1.bf16.msra.mxu0 0
  %1162 = vmatprep.subr.bf16.mxu0 0
  %1163 = vmatpush1.bf16.msra.mxu0 0
  %1164 = vmatprep.subr.bf16.mxu0 0
  %1165 = vmatpush1.bf16.msra.mxu0 0
  %1166 = vmatprep.subr.bf16.mxu0 0
  %1167 = vmatpush1.bf16.msra.mxu0 0
  %1168 = vmatprep.subr.bf16.mxu0 0
  %1169 = vmatpush1.bf16.msra.mxu0 0
  %1170 = vmatprep.subr.bf16.mxu0 0
  %1171 = vmatpush1.bf16.msra.mxu0 0
  %1172 = vmatprep.subr.bf16.mxu0 0
  %1173 = vmatpush1.bf16.msra.mxu0 0
  %1174 = vmatprep.subr.bf16.mxu0 0
  %1175 = vmatpush1.bf16.msra.mxu0 0
  %1176 = vmatprep.subr.bf16.mxu0 0
  %1177 = vmatpush1.bf16.msra.mxu0 0
  %1178 = vmatprep.subr.bf16.mxu0 0
  %1179 = vmatpush1.bf16.msra.mxu0 0
  %1180 = vmatprep.subr.bf16.mxu0 0
  %1181 = vmatpush1.bf16.msra.mxu0 0
  %1182 = vmatprep.mubr.bf16.mxu0 0
  %1183 = vmatmul.mubr.bf16.gmra.mrb[0].mxu0 %v766
  %v1184 = vpop.f32.mrb[0].mxu0
  %v1185 = vadd.f32 %v896, %v1184
  %v1186 = vpop.f32.mrb[0].mxu0
  %v1187 = vpop.f32.mrb[0].mxu0
  %v1188 = vadd.f32 %v899, %v1187
  %v1189 = vpop.f32.mrb[0].mxu0
  %1190 = vmatprep.mubr.bf16.mxu0 0
  %1191 = vmatmul.mubr.bf16.gmra.mrb[0].mxu0 %v769
  %v1192 = vpop.f32.mrb[0].mxu0
  %v1193 = vadd.f32 %v904, %v1192
  %v1194 = vpop.f32.mrb[0].mxu0
  %v1195 = vpop.f32.mrb[0].mxu0
  %v1196 = vadd.f32 %v907, %v1195
  %v1197 = vpop.f32.mrb[0].mxu0
  %1198 = vmatprep.mubr.bf16.mxu0 0
  %1199 = vmatmul.mubr.bf16.gmra.mrb[0].mxu0 %v772
  %v1200 = vpop.f32.mrb[0].mxu0
  %v1201 = vadd.f32 %v912, %v1200
  %v1202 = vpop.f32.mrb[0].mxu0
  %v1203 = vpop.f32.mrb[0].mxu0
  %v1204 = vadd.f32 %v915, %v1203
  %v1205 = vpop.f32.mrb[0].mxu0
  %1206 = vmatprep.mubr.bf16.mxu0 0
  %1207 = vmatmul.mubr.bf16.gmra.mrb[0].mxu0 %v775
  %v1208 = vpop.f32.mrb[0].mxu0
  %v1209 = vadd.f32 %v920, %v1208
  %v1210 = vpop.f32.mrb[0].mxu0
  %v1211 = vpop.f32.mrb[0].mxu0
  %v1212 = vadd.f32 %v923, %v1211
  %v1213 = vpop.f32.mrb[0].mxu0
  %1214 = vmatprep.mubr.bf16.mxu0 0
  %1215 = vmatmul.mubr.bf16.gmra.mrb[0].mxu0 %v778
  %v1216 = vpop.f32.mrb[0].mxu0
  %v1217 = vadd.f32 %v928, %v1216
  %v1218 = vpop.f32.mrb[0].mxu0
  %v1219 = vpop.f32.mrb[0].mxu0
  %v1220 = vadd.f32 %v931, %v1219
  %v1221 = vpop.f32.mrb[0].mxu0
  %1222 = vmatprep.mubr.bf16.mxu0 0
  %1223 = vmatmul.mubr.bf16.gmra.mrb[0].mxu0 %v781
  %v1224 = vpop.f32.mrb[0].mxu0
  %v1225 = vadd.f32 %v936, %v1224
  %v1226 = vpop.f32.mrb[0].mxu0
  %v1227 = vpop.f32.mrb[0].mxu0
  %v1228 = vadd.f32 %v939, %v1227
  %v1229 = vpop.f32.mrb[0].mxu0
  %1230 = vmatprep.mubr.bf16.mxu0 0
  %1231 = vmatmul.mubr.bf16.gmra.mrb[0].mxu0 %v784
  %v1232 = vpop.f32.mrb[0].mxu0
  %v1233 = vadd.f32 %v944, %v1232
  %v1234 = vpop.f32.mrb[0].mxu0
  %v1235 = vpop.f32.mrb[0].mxu0
  %v1236 = vadd.f32 %v947, %v1235
  %v1237 = vpop.f32.mrb[0].mxu0
  %1238 = vmatprep.mubr.bf16.mxu0 0
  %1239 = vmatmul.mubr.bf16.gmra.mrb[0].mxu0 %v787
  %v1240 = vpop.f32.mrb[0].mxu0
  %v1241 = vadd.f32 %v952, %v1240
  %v1242 = vpop.f32.mrb[0].mxu0
  %v1243 = vpop.f32.mrb[0].mxu0
  %v1244 = vadd.f32 %v955, %v1243
  %v1245 = vpop.f32.mrb[0].mxu0
  %1246 = vmatprep.mubr.bf16.mxu0 0
  %1247 = vmatmul.mubr.bf16.gmra.mrb[0].mxu0 %v790
  %v1248 = vpop.f32.mrb[0].mxu0
  %v1249 = vadd.f32 %v960, %v1248
  %v1250 = vpop.f32.mrb[0].mxu0
  %v1251 = vpop.f32.mrb[0].mxu0
  %v1252 = vadd.f32 %v963, %v1251
  %v1253 = vpop.f32.mrb[0].mxu0
  %1254 = vmatprep.mubr.bf16.mxu0 0
  %1255 = vmatmul.mubr.bf16.gmra.mrb[0].mxu0 %v793
  %v1256 = vpop.f32.mrb[0].mxu0
  %v1257 = vadd.f32 %v968, %v1256
  %v1258 = vpop.f32.mrb[0].mxu0
  %v1259 = vpop.f32.mrb[0].mxu0
  %v1260 = vadd.f32 %v971, %v1259
  %v1261 = vpop.f32.mrb[0].mxu0
  %1262 = vmatprep.mubr.bf16.mxu0 0
  %1263 = vmatmul.mubr.bf16.gmra.mrb[0].mxu0 %v796
  %v1264 = vpop.f32.mrb[0].mxu0
  %v1265 = vadd.f32 %v976, %v1264
  %v1266 = vpop.f32.mrb[0].mxu0
  %v1267 = vpop.f32.mrb[0].mxu0
  %v1268 = vadd.f32 %v979, %v1267
  %v1269 = vpop.f32.mrb[0].mxu0
  %1270 = vmatprep.mubr.bf16.mxu0 0
  %1271 = vmatmul.mubr.bf16.gmra.mrb[0].mxu0 %v799
  %v1272 = vpop.f32.mrb[0].mxu0
  %v1273 = vadd.f32 %v984, %v1272
  %v1274 = vpop.f32.mrb[0].mxu0
  %v1275 = vpop.f32.mrb[0].mxu0
  %v1276 = vadd.f32 %v987, %v1275
  %v1277 = vpop.f32.mrb[0].mxu0
  %1278 = vmatprep.mubr.bf16.mxu0 0
  %1279 = vmatmul.mubr.bf16.gmra.mrb[0].mxu0 %v802
  %v1280 = vpop.f32.mrb[0].mxu0
  %v1281 = vadd.f32 %v992, %v1280
  %v1282 = vpop.f32.mrb[0].mxu0
  %v1283 = vpop.f32.mrb[0].mxu0
  %v1284 = vadd.f32 %v995, %v1283
  %v1285 = vpop.f32.mrb[0].mxu0
  %1286 = vmatprep.mubr.bf16.mxu0 0
  %1287 = vmatmul.mubr.bf16.gmra.mrb[0].mxu0 %v805
  %v1288 = vpop.f32.mrb[0].mxu0
  %v1289 = vadd.f32 %v1000, %v1288
  %v1290 = vpop.f32.mrb[0].mxu0
  %v1291 = vpop.f32.mrb[0].mxu0
  %v1292 = vadd.f32 %v1003, %v1291
  %v1293 = vpop.f32.mrb[0].mxu0
  %1294 = vmatprep.mubr.bf16.mxu0 0
  %1295 = vmatmul.mubr.bf16.gmra.mrb[0].mxu0 %v808
  %v1296 = vpop.f32.mrb[0].mxu0
  %v1297 = vadd.f32 %v1008, %v1296
  %v1298 = vpop.f32.mrb[0].mxu0
  %v1299 = vpop.f32.mrb[0].mxu0
  %v1300 = vadd.f32 %v1011, %v1299
  %v1301 = vpop.f32.mrb[0].mxu0
  %1302 = vmatprep.mubr.bf16.mxu0 0
  %1303 = vmatmul.mubr.bf16.gmra.mrb[0].mxu0 %v811
  %v1304 = vpop.f32.mrb[0].mxu0
  %v1305 = vadd.f32 %v1016, %v1304
  %v1306 = vpop.f32.mrb[0].mxu0
  %v1307 = vpop.f32.mrb[0].mxu0
  %v1308 = vadd.f32 %v1019, %v1307
  %v1309 = vpop.f32.mrb[0].mxu0
  %1310 = vmatprep.mubr.bf16.mxu0 0
  %1311 = vmatmul.mubr.bf16.gmra.mrb[0].mxu0 %v814
  %v1312 = vpop.f32.mrb[0].mxu0
  %v1313 = vadd.f32 %v1024, %v1312
  %v1314 = vpop.f32.mrb[0].mxu0
  %v1315 = vpop.f32.mrb[0].mxu0
  %v1316 = vadd.f32 %v1027, %v1315
  %v1317 = vpop.f32.mrb[0].mxu0
  %1318 = vmatprep.mubr.bf16.mxu0 0
  %1319 = vmatmul.mubr.bf16.gmra.mrb[0].mxu0 %v817
  %v1320 = vpop.f32.mrb[0].mxu0
  %v1321 = vadd.f32 %v1032, %v1320
  %v1322 = vpop.f32.mrb[0].mxu0
  %v1323 = vpop.f32.mrb[0].mxu0
  %v1324 = vadd.f32 %v1035, %v1323
  %v1325 = vpop.f32.mrb[0].mxu0
  %1326 = vmatprep.mubr.bf16.mxu0 0
  %1327 = vmatmul.mubr.bf16.gmra.mrb[0].mxu0 %v820
  %v1328 = vpop.f32.mrb[0].mxu0
  %v1329 = vadd.f32 %v1040, %v1328
  %v1330 = vpop.f32.mrb[0].mxu0
  %v1331 = vpop.f32.mrb[0].mxu0
  %v1332 = vadd.f32 %v1043, %v1331
  %v1333 = vpop.f32.mrb[0].mxu0
  %1334 = vmatprep.mubr.bf16.mxu0 0
  %1335 = vmatmul.mubr.bf16.gmra.mrb[0].mxu0 %v823
  %v1336 = vpop.f32.mrb[0].mxu0
  %v1337 = vadd.f32 %v1048, %v1336
  %v1338 = vpop.f32.mrb[0].mxu0
  %v1339 = vpop.f32.mrb[0].mxu0
  %v1340 = vadd.f32 %v1051, %v1339
  %v1341 = vpop.f32.mrb[0].mxu0
  %1342 = vmatprep.mubr.bf16.mxu0 0
  %1343 = vmatmul.mubr.bf16.gmra.mrb[0].mxu0 %v826
  %v1344 = vpop.f32.mrb[0].mxu0
  %v1345 = vadd.f32 %v1056, %v1344
  %v1346 = vpop.f32.mrb[0].mxu0
  %v1347 = vpop.f32.mrb[0].mxu0
  %v1348 = vadd.f32 %v1059, %v1347
  %v1349 = vpop.f32.mrb[0].mxu0
  %1350 = vmatprep.mubr.bf16.mxu0 0
  %1351 = vmatmul.mubr.bf16.gmra.mrb[0].mxu0 %v829
  %v1352 = vpop.f32.mrb[0].mxu0
  %v1353 = vadd.f32 %v1064, %v1352
  %v1354 = vpop.f32.mrb[0].mxu0
  %v1355 = vpop.f32.mrb[0].mxu0
  %v1356 = vadd.f32 %v1067, %v1355
  %v1357 = vpop.f32.mrb[0].mxu0
  %1358 = vmatprep.mubr.bf16.mxu0 0
  %1359 = vmatmul.mubr.bf16.gmra.mrb[0].mxu0 %v832
  %v1360 = vpop.f32.mrb[0].mxu0
  %v1361 = vadd.f32 %v1072, %v1360
  %v1362 = vpop.f32.mrb[0].mxu0
  %v1363 = vpop.f32.mrb[0].mxu0
  %v1364 = vadd.f32 %v1075, %v1363
  %v1365 = vpop.f32.mrb[0].mxu0
  %1366 = vmatprep.mubr.bf16.mxu0 0
  %1367 = vmatmul.mubr.bf16.gmra.mrb[0].mxu0 %v835
  %v1368 = vpop.f32.mrb[0].mxu0
  %v1369 = vadd.f32 %v1080, %v1368
  %v1370 = vpop.f32.mrb[0].mxu0
  %v1371 = vpop.f32.mrb[0].mxu0
  %v1372 = vadd.f32 %v1083, %v1371
  %v1373 = vpop.f32.mrb[0].mxu0
  %1374 = vmatprep.mubr.bf16.mxu0 0
  %1375 = vmatmul.mubr.bf16.gmra.mrb[0].mxu0 %v838
  %v1376 = vpop.f32.mrb[0].mxu0
  %v1377 = vadd.f32 %v1088, %v1376
  %v1378 = vpop.f32.mrb[0].mxu0
  %v1379 = vpop.f32.mrb[0].mxu0
  %v1380 = vadd.f32 %v1091, %v1379
  %v1381 = vpop.f32.mrb[0].mxu0
  %1382 = vmatprep.mubr.bf16.mxu0 0
  %1383 = vmatmul.mubr.bf16.gmra.mrb[0].mxu0 %v841
  %v1384 = vpop.f32.mrb[0].mxu0
  %v1385 = vadd.f32 %v1096, %v1384
  %v1386 = vpop.f32.mrb[0].mxu0
  %v1387 = vpop.f32.mrb[0].mxu0
  %v1388 = vadd.f32 %v1099, %v1387
  %v1389 = vpop.f32.mrb[0].mxu0
  %1390 = vmatprep.mubr.bf16.mxu0 0
  %1391 = vmatmul.mubr.bf16.gmra.mrb[0].mxu0 %v844
  %v1392 = vpop.f32.mrb[0].mxu0
  %v1393 = vadd.f32 %v1104, %v1392
  %v1394 = vpop.f32.mrb[0].mxu0
  %v1395 = vpop.f32.mrb[0].mxu0
  %v1396 = vadd.f32 %v1107, %v1395
  %v1397 = vpop.f32.mrb[0].mxu0
  %1398 = vmatprep.mubr.bf16.mxu0 0
  %1399 = vmatmul.mubr.bf16.gmra.mrb[0].mxu0 %v847
  %v1400 = vpop.f32.mrb[0].mxu0
  %v1401 = vadd.f32 %v1112, %v1400
  %v1402 = vpop.f32.mrb[0].mxu0
  %v1403 = vpop.f32.mrb[0].mxu0
  %v1404 = vadd.f32 %v1115, %v1403
  %v1405 = vpop.f32.mrb[0].mxu0
  %1406 = vmatprep.mubr.bf16.mxu0 0
  %1407 = vmatmul.mubr.bf16.gmra.mrb[0].mxu0 %v850
  %v1408 = vpop.f32.mrb[0].mxu0
  %v1409 = vadd.f32 %v1120, %v1408
  %v1410 = vpop.f32.mrb[0].mxu0
  %v1411 = vpop.f32.mrb[0].mxu0
  %v1412 = vadd.f32 %v1123, %v1411
  %v1413 = vpop.f32.mrb[0].mxu0
  %1414 = vmatprep.mubr.bf16.mxu0 0
  %1415 = vmatmul.mubr.bf16.gmra.mrb[0].mxu0 %v853
  %v1416 = vpop.f32.mrb[0].mxu0
  %v1417 = vadd.f32 %v1128, %v1416
  %v1418 = vpop.f32.mrb[0].mxu0
  %v1419 = vpop.f32.mrb[0].mxu0
  %v1420 = vadd.f32 %v1131, %v1419
  %v1421 = vpop.f32.mrb[0].mxu0
  %1422 = vmatprep.mubr.bf16.mxu0 0
  %1423 = vmatmul.mubr.bf16.gmra.mrb[0].mxu0 %v856
  %v1424 = vpop.f32.mrb[0].mxu0
  %v1425 = vadd.f32 %v1136, %v1424
  %v1426 = vpop.f32.mrb[0].mxu0
  %v1427 = vpop.f32.mrb[0].mxu0
  %v1428 = vadd.f32 %v1139, %v1427
  %v1429 = vpop.f32.mrb[0].mxu0
  %1430 = vmatprep.mubr.bf16.mxu0 0
  %1431 = vmatmul.mubr.bf16.gmra.mrb[0].mxu0 %v859
  %v1432 = vpop.f32.mrb[0].mxu0
  %v1433 = vadd.f32 %v1144, %v1432
  %v1434 = vpop.f32.mrb[0].mxu0
  %v1435 = vpop.f32.mrb[0].mxu0
  %v1436 = vadd.f32 %v1147, %v1435
  %v1437 = vpop.f32.mrb[0].mxu0
  %1438 = vdwg.mxu0
  %v1439 = vpack.c.bf16 %v1188, %v1185
  %v1440 = vpack.c.bf16 %v1196, %v1193
  %v1441 = vpack.c.bf16 %v1204, %v1201
  %v1442 = vpack.c.bf16 %v1212, %v1209
  %v1443 = vpack.c.bf16 %v1220, %v1217
  %v1444 = vpack.c.bf16 %v1228, %v1225
  %v1445 = vpack.c.bf16 %v1236, %v1233
  %v1446 = vpack.c.bf16 %v1244, %v1241
  %v1447 = vpack.c.bf16 %v1252, %v1249
  %v1448 = vpack.c.bf16 %v1260, %v1257
  %v1449 = vpack.c.bf16 %v1268, %v1265
  %v1450 = vpack.c.bf16 %v1276, %v1273
  %v1451 = vpack.c.bf16 %v1284, %v1281
  %v1452 = vpack.c.bf16 %v1292, %v1289
  %v1453 = vpack.c.bf16 %v1300, %v1297
  %v1454 = vpack.c.bf16 %v1308, %v1305
  %v1455 = vpack.c.bf16 %v1316, %v1313
  %v1456 = vpack.c.bf16 %v1324, %v1321
  %v1457 = vpack.c.bf16 %v1332, %v1329
  %v1458 = vpack.c.bf16 %v1340, %v1337
  %v1459 = vpack.c.bf16 %v1348, %v1345
  %v1460 = vpack.c.bf16 %v1356, %v1353
  %v1461 = vpack.c.bf16 %v1364, %v1361
  %v1462 = vpack.c.bf16 %v1372, %v1369
  %v1463 = vpack.c.bf16 %v1380, %v1377
  %v1464 = vpack.c.bf16 %v1388, %v1385
  %v1465 = vpack.c.bf16 %v1396, %v1393
  %v1466 = vpack.c.bf16 %v1404, %v1401
  %v1467 = vpack.c.bf16 %v1412, %v1409
  %v1468 = vpack.c.bf16 %v1420, %v1417
  %v1469 = vpack.c.bf16 %v1428, %v1425
  %v1470 = vpack.c.bf16 %v1436, %v1433
  %v1503 = vunpack.c.l.b16 %v1439
  %v1504 = vunpack.c.h.b16 %v1439
  %v1505 = vunpack.c.l.b16 %v1440
  %v1506 = vunpack.c.h.b16 %v1440
  %v1507 = vunpack.c.l.b16 %v1441
  %v1508 = vunpack.c.h.b16 %v1441
  %v1509 = vunpack.c.l.b16 %v1442
  %v1510 = vunpack.c.h.b16 %v1442
  %v1511 = vunpack.c.l.b16 %v1443
  %v1512 = vunpack.c.h.b16 %v1443
  %v1513 = vunpack.c.l.b16 %v1444
  %v1514 = vunpack.c.h.b16 %v1444
  %v1515 = vunpack.c.l.b16 %v1445
  %v1516 = vunpack.c.h.b16 %v1445
  %v1517 = vunpack.c.l.b16 %v1446
  %v1518 = vunpack.c.h.b16 %v1446
  %v1519 = vunpack.c.l.b16 %v1447
  %v1520 = vunpack.c.h.b16 %v1447
  %v1521 = vunpack.c.l.b16 %v1448
  %v1522 = vunpack.c.h.b16 %v1448
  %v1523 = vunpack.c.l.b16 %v1449
  %v1524 = vunpack.c.h.b16 %v1449
  %v1525 = vunpack.c.l.b16 %v1450
  %v1526 = vunpack.c.h.b16 %v1450
  %v1527 = vunpack.c.l.b16 %v1451
  %v1528 = vunpack.c.h.b16 %v1451
  %v1529 = vunpack.c.l.b16 %v1452
  %v1530 = vunpack.c.h.b16 %v1452
  %v1531 = vunpack.c.l.b16 %v1453
  %v1532 = vunpack.c.h.b16 %v1453
  %v1533 = vunpack.c.l.b16 %v1454
  %v1534 = vunpack.c.h.b16 %v1454
  %v1535 = vunpack.c.l.b16 %v1455
  %v1536 = vunpack.c.h.b16 %v1455
  %v1537 = vunpack.c.l.b16 %v1456
  %v1538 = vunpack.c.h.b16 %v1456
  %v1539 = vunpack.c.l.b16 %v1457
  %v1540 = vunpack.c.h.b16 %v1457
  %v1541 = vunpack.c.l.b16 %v1458
  %v1542 = vunpack.c.h.b16 %v1458
  %v1543 = vunpack.c.l.b16 %v1459
  %v1544 = vunpack.c.h.b16 %v1459
  %v1545 = vunpack.c.l.b16 %v1460
  %v1546 = vunpack.c.h.b16 %v1460
  %v1547 = vunpack.c.l.b16 %v1461
  %v1548 = vunpack.c.h.b16 %v1461
  %v1549 = vunpack.c.l.b16 %v1462
  %v1550 = vunpack.c.h.b16 %v1462
  %v1551 = vunpack.c.l.b16 %v1463
  %v1552 = vunpack.c.h.b16 %v1463
  %v1553 = vunpack.c.l.b16 %v1464
  %v1554 = vunpack.c.h.b16 %v1464
  %v1555 = vunpack.c.l.b16 %v1465
  %v1556 = vunpack.c.h.b16 %v1465
  %v1557 = vunpack.c.l.b16 %v1466
  %v1558 = vunpack.c.h.b16 %v1466
  %v1559 = vunpack.c.l.b16 %v1467
  %v1560 = vunpack.c.h.b16 %v1467
  %v1561 = vunpack.c.l.b16 %v1468
  %v1562 = vunpack.c.h.b16 %v1468
  %v1563 = vunpack.c.l.b16 %v1469
  %v1564 = vunpack.c.h.b16 %v1469
  %v1565 = vunpack.c.l.b16 %v1470
  %v1566 = vunpack.c.h.b16 %v1470
  %v1567 = vpack.c.b16 %v1503, %v1503
  %v1568 = vpack.c.b16 %v1504, %v1504
  %v1569 = vpack.c.b16 %v1505, %v1505
  %v1570 = vpack.c.b16 %v1506, %v1506
  %v1571 = vpack.c.b16 %v1507, %v1507
  %v1572 = vpack.c.b16 %v1508, %v1508
  %v1573 = vpack.c.b16 %v1509, %v1509
  %v1574 = vpack.c.b16 %v1510, %v1510
  %v1575 = vpack.c.b16 %v1511, %v1511
  %v1576 = vpack.c.b16 %v1512, %v1512
  %v1577 = vpack.c.b16 %v1513, %v1513
  %v1578 = vpack.c.b16 %v1514, %v1514
  %v1579 = vpack.c.b16 %v1515, %v1515
  %v1580 = vpack.c.b16 %v1516, %v1516
  %v1581 = vpack.c.b16 %v1517, %v1517
  %v1582 = vpack.c.b16 %v1518, %v1518
  %v1583 = vpack.c.b16 %v1519, %v1519
  %v1584 = vpack.c.b16 %v1520, %v1520
  %v1585 = vpack.c.b16 %v1521, %v1521
  %v1586 = vpack.c.b16 %v1522, %v1522
  %v1587 = vpack.c.b16 %v1523, %v1523
  %v1588 = vpack.c.b16 %v1524, %v1524
  %v1589 = vpack.c.b16 %v1525, %v1525
  %v1590 = vpack.c.b16 %v1526, %v1526
  %v1591 = vpack.c.b16 %v1527, %v1527
  %v1592 = vpack.c.b16 %v1528, %v1528
  %v1593 = vpack.c.b16 %v1529, %v1529
  %v1594 = vpack.c.b16 %v1530, %v1530
  %v1595 = vpack.c.b16 %v1531, %v1531
  %v1596 = vpack.c.b16 %v1532, %v1532
  %v1597 = vpack.c.b16 %v1533, %v1533
  %v1598 = vpack.c.b16 %v1534, %v1534
  %v1599 = vpack.c.b16 %v1535, %v1535
  %v1600 = vpack.c.b16 %v1536, %v1536
  %v1601 = vpack.c.b16 %v1537, %v1537
  %v1602 = vpack.c.b16 %v1538, %v1538
  %v1603 = vpack.c.b16 %v1539, %v1539
  %v1604 = vpack.c.b16 %v1540, %v1540
  %v1605 = vpack.c.b16 %v1541, %v1541
  %v1606 = vpack.c.b16 %v1542, %v1542
  %v1607 = vpack.c.b16 %v1543, %v1543
  %v1608 = vpack.c.b16 %v1544, %v1544
  %v1609 = vpack.c.b16 %v1545, %v1545
  %v1610 = vpack.c.b16 %v1546, %v1546
  %v1611 = vpack.c.b16 %v1547, %v1547
  %v1612 = vpack.c.b16 %v1548, %v1548
  %v1613 = vpack.c.b16 %v1549, %v1549
  %v1614 = vpack.c.b16 %v1550, %v1550
  %v1615 = vpack.c.b16 %v1551, %v1551
  %v1616 = vpack.c.b16 %v1552, %v1552
  %v1617 = vpack.c.b16 %v1553, %v1553
  %v1618 = vpack.c.b16 %v1554, %v1554
  %v1619 = vpack.c.b16 %v1555, %v1555
  %v1620 = vpack.c.b16 %v1556, %v1556
  %v1621 = vpack.c.b16 %v1557, %v1557
  %v1622 = vpack.c.b16 %v1558, %v1558
  %v1623 = vpack.c.b16 %v1559, %v1559
  %v1624 = vpack.c.b16 %v1560, %v1560
  %v1625 = vpack.c.b16 %v1561, %v1561
  %v1626 = vpack.c.b16 %v1562, %v1562
  %v1627 = vpack.c.b16 %v1563, %v1563
  %v1628 = vpack.c.b16 %v1564, %v1564
  %v1629 = vpack.c.b16 %v1565, %v1565
  %v1630 = vpack.c.b16 %v1566, %v1566
  %vm1695 = vcmask 257024
  %1696 = vst.msk [vmem:[%s2] sm:$0xf] %vm1695, %v1567
  %1697 = vst.msk [vmem:[%s2 + $0x4] sm:$0xf] %vm1695, %v1568
  %1698 = vst.msk [vmem:[%s2 + $0x8] sm:$0xf] %vm1695, %v1569
  %1699 = vst.msk [vmem:[%s2 + $0xc] sm:$0xf] %vm1695, %v1570
  %1700 = vst.msk [vmem:[%s2 + $0x10] sm:$0xf] %vm1695, %v1571
  %1701 = vst.msk [vmem:[%s2 + $0x14] sm:$0xf] %vm1695, %v1572
  %1702 = vst.msk [vmem:[%s2 + $0x18] sm:$0xf] %vm1695, %v1573
  %1703 = vst.msk [vmem:[%s2 + $0x1c] sm:$0xf] %vm1695, %v1574
  %1704 = vst.msk [vmem:[%s2 + $0x20] sm:$0xf] %vm1695, %v1575
  %1705 = vst.msk [vmem:[%s2 + $0x24] sm:$0xf] %vm1695, %v1576
  %1706 = vst.msk [vmem:[%s2 + $0x28] sm:$0xf] %vm1695, %v1577
  %1707 = vst.msk [vmem:[%s2 + $0x2c] sm:$0xf] %vm1695, %v1578
  %1708 = vst.msk [vmem:[%s2 + $0x30] sm:$0xf] %vm1695, %v1579
  %1709 = vst.msk [vmem:[%s2 + $0x34] sm:$0xf] %vm1695, %v1580
  %1710 = vst.msk [vmem:[%s2 + $0x38] sm:$0xf] %vm1695, %v1581
  %1711 = vst.msk [vmem:[%s2 + $0x3c] sm:$0xf] %vm1695, %v1582
  %1712 = vst.msk [vmem:[%s2 + $0x40] sm:$0xf] %vm1695, %v1583
  %1713 = vst.msk [vmem:[%s2 + $0x44] sm:$0xf] %vm1695, %v1584
  %1714 = vst.msk [vmem:[%s2 + $0x48] sm:$0xf] %vm1695, %v1585
  %1715 = vst.msk [vmem:[%s2 + $0x4c] sm:$0xf] %vm1695, %v1586
  %1716 = vst.msk [vmem:[%s2 + $0x50] sm:$0xf] %vm1695, %v1587
  %1717 = vst.msk [vmem:[%s2 + $0x54] sm:$0xf] %vm1695, %v1588
  %1718 = vst.msk [vmem:[%s2 + $0x58] sm:$0xf] %vm1695, %v1589
  %1719 = vst.msk [vmem:[%s2 + $0x5c] sm:$0xf] %vm1695, %v1590
  %1720 = vst.msk [vmem:[%s2 + $0x60] sm:$0xf] %vm1695, %v1591
  %1721 = vst.msk [vmem:[%s2 + $0x64] sm:$0xf] %vm1695, %v1592
  %1722 = vst.msk [vmem:[%s2 + $0x68] sm:$0xf] %vm1695, %v1593
  %1723 = vst.msk [vmem:[%s2 + $0x6c] sm:$0xf] %vm1695, %v1594
  %1724 = vst.msk [vmem:[%s2 + $0x70] sm:$0xf] %vm1695, %v1595
  %1725 = vst.msk [vmem:[%s2 + $0x74] sm:$0xf] %vm1695, %v1596
  %1726 = vst.msk [vmem:[%s2 + $0x78] sm:$0xf] %vm1695, %v1597
  %1727 = vst.msk [vmem:[%s2 + $0x7c] sm:$0xf] %vm1695, %v1598
  %1728 = vst.msk [vmem:[%s2 + $0x80] sm:$0xf] %vm1695, %v1599
  %1729 = vst.msk [vmem:[%s2 + $0x84] sm:$0xf] %vm1695, %v1600
  %1730 = vst.msk [vmem:[%s2 + $0x88] sm:$0xf] %vm1695, %v1601
  %1731 = vst.msk [vmem:[%s2 + $0x8c] sm:$0xf] %vm1695, %v1602
  %1732 = vst.msk [vmem:[%s2 + $0x90] sm:$0xf] %vm1695, %v1603
  %1733 = vst.msk [vmem:[%s2 + $0x94] sm:$0xf] %vm1695, %v1604
  %1734 = vst.msk [vmem:[%s2 + $0x98] sm:$0xf] %vm1695, %v1605
  %1735 = vst.msk [vmem:[%s2 + $0x9c] sm:$0xf] %vm1695, %v1606
  %1736 = vst.msk [vmem:[%s2 + $0xa0] sm:$0xf] %vm1695, %v1607
  %1737 = vst.msk [vmem:[%s2 + $0xa4] sm:$0xf] %vm1695, %v1608
  %1738 = vst.msk [vmem:[%s2 + $0xa8] sm:$0xf] %vm1695, %v1609
  %1739 = vst.msk [vmem:[%s2 + $0xac] sm:$0xf] %vm1695, %v1610
  %1740 = vst.msk [vmem:[%s2 + $0xb0] sm:$0xf] %vm1695, %v1611
  %1741 = vst.msk [vmem:[%s2 + $0xb4] sm:$0xf] %vm1695, %v1612
  %1742 = vst.msk [vmem:[%s2 + $0xb8] sm:$0xf] %vm1695, %v1613
  %1743 = vst.msk [vmem:[%s2 + $0xbc] sm:$0xf] %vm1695, %v1614
  %1744 = vst.msk [vmem:[%s2 + $0xc0] sm:$0xf] %vm1695, %v1615
  %1745 = vst.msk [vmem:[%s2 + $0xc4] sm:$0xf] %vm1695, %v1616
  %1746 = vst.msk [vmem:[%s2 + $0xc8] sm:$0xf] %vm1695, %v1617
  %1747 = vst.msk [vmem:[%s2 + $0xcc] sm:$0xf] %vm1695, %v1618
  %1748 = vst.msk [vmem:[%s2 + $0xd0] sm:$0xf] %vm1695, %v1619
  %1749 = vst.msk [vmem:[%s2 + $0xd4] sm:$0xf] %vm1695, %v1620
  %1750 = vst.msk [vmem:[%s2 + $0xd8] sm:$0xf] %vm1695, %v1621
  %1751 = vst.msk [vmem:[%s2 + $0xdc] sm:$0xf] %vm1695, %v1622
  %1752 = vst.msk [vmem:[%s2 + $0xe0] sm:$0xf] %vm1695, %v1623
  %1753 = vst.msk [vmem:[%s2 + $0xe4] sm:$0xf] %vm1695, %v1624
  %1754 = vst.msk [vmem:[%s2 + $0xe8] sm:$0xf] %vm1695, %v1625
  %1755 = vst.msk [vmem:[%s2 + $0xec] sm:$0xf] %vm1695, %v1626
  %1756 = vst.msk [vmem:[%s2 + $0xf0] sm:$0xf] %vm1695, %v1627
  %1757 = vst.msk [vmem:[%s2 + $0xf4] sm:$0xf] %vm1695, %v1628
  %1758 = vst.msk [vmem:[%s2 + $0xf8] sm:$0xf] %vm1695, %v1629
  %1759 = vst.msk [vmem:[%s2 + $0xfc] sm:$0xf] %vm1695, %v1630
  // Predicated region
  $region10: #{basic_block_forward.4} parent=0 // pred_check
    _
  $region11: #{basic_block_forward.4} parent=0 // pred_check_branch
    %1761 = sbr.rel (0) target = $region13
  $region12: #{basic_block_forward.4} parent=0 // pred_region
    _
  $region13: #{basic_block_forward.4} parent=0 // pred_fallthru
    _
  // Predicated region
  $region14: #{basic_block_forward.4} parent=0 // pred_check
    _
  $region15: #{basic_block_forward.4} parent=0 // pred_check_branch
    %1763 = sbr.rel (0) target = $region17
  $region16: #{basic_block_forward.4} parent=0 // pred_region
    _
  $region17: #{basic_block_forward.4} parent=0 // pred_fallthru
    _

// kernel: basic_block_forward.5
$region0: #{basic_block_forward.5}
  #allocation0 [shape = 'u32[]', space=smem, size = 0x4, offset = 0x4, fixed_abs, tag = 'smem constant byte address 0x4 - core index']
  #allocation1 [shape = 'u32[144,128]{1,0:T(1,128)}', space=vmem, size = 0x12000, scoped, tag = 'internal scratch']
  %s0 = inlined_call_operand.vmem [shape: bf16[512,32], index: 0, kind: input, shape index: {}]
  %s1 = inlined_call_operand.vmem [shape: f32[1,32], index: 1, kind: input, shape index: {}]
  %s2 = inlined_call_operand.vmem [shape: f32[1,32], index: 2, kind: input, shape index: {}]
  %s3 = inlined_call_operand.vmem [shape: bf16[512,32], index: 3, kind: output, shape index: {}]
  %s4 = sld [smem:[#allocation0]]
  $region22: #{basic_block_forward.5} parent=0
    _
  %s6 = ssub.s32 1, %s4
  %s7 = scalar_select 0, %s6, %s4
  // Predicated region
  $region2: #{basic_block_forward.5} parent=0 // pred_check
    _
  $region3: #{basic_block_forward.5} parent=0 // pred_check_branch
    %9 = sbr.rel (0) target = $region5
  $region4: #{basic_block_forward.5} parent=0 // pred_region
    _
  $region5: #{basic_block_forward.5} parent=0 // pred_fallthru
    _
  // Predicated region
  $region6: #{basic_block_forward.5} parent=0 // pred_check
    _
  $region7: #{basic_block_forward.5} parent=0 // pred_check_branch
    %11 = sbr.rel (0) target = $region9
  $region8: #{basic_block_forward.5} parent=0 // pred_region
    _
  $region9: #{basic_block_forward.5} parent=0 // pred_fallthru
    _
  // Predicated region
  $region10: #{basic_block_forward.5} parent=0 // pred_check
    _
  $region11: #{basic_block_forward.5} parent=0 // pred_check_branch
    %13 = sbr.rel (0) target = $region13
  $region12: #{basic_block_forward.5} parent=0 // pred_region
    _
  $region13: #{basic_block_forward.5} parent=0 // pred_fallthru
    _
  %v14 = vld [vmem:[%s0] sm:$0xf]
  %v15 = vld [vmem:[%s0 + $0x4] sm:$0xf]
  %v16 = vld [vmem:[%s0 + $0x8] sm:$0xf]
  %v17 = vld [vmem:[%s0 + $0xc] sm:$0xf]
  %v18 = vld [vmem:[%s0 + $0x10] sm:$0xf]
  %v19 = vld [vmem:[%s0 + $0x14] sm:$0xf]
  %v20 = vld [vmem:[%s0 + $0x18] sm:$0xf]
  %v21 = vld [vmem:[%s0 + $0x1c] sm:$0xf]
  %v22 = vld [vmem:[%s0 + $0x20] sm:$0xf]
  %v23 = vld [vmem:[%s0 + $0x24] sm:$0xf]
  %v24 = vld [vmem:[%s0 + $0x28] sm:$0xf]
  %v25 = vld [vmem:[%s0 + $0x2c] sm:$0xf]
  %v26 = vld [vmem:[%s0 + $0x30] sm:$0xf]
  %v27 = vld [vmem:[%s0 + $0x34] sm:$0xf]
  %v28 = vld [vmem:[%s0 + $0x38] sm:$0xf]
  %v29 = vld [vmem:[%s0 + $0x3c] sm:$0xf]
  %v30 = vld [vmem:[%s0 + $0x40] sm:$0xf]
  %v31 = vld [vmem:[%s0 + $0x44] sm:$0xf]
  %v32 = vld [vmem:[%s0 + $0x48] sm:$0xf]
  %v33 = vld [vmem:[%s0 + $0x4c] sm:$0xf]
  %v34 = vld [vmem:[%s0 + $0x50] sm:$0xf]
  %v35 = vld [vmem:[%s0 + $0x54] sm:$0xf]
  %v36 = vld [vmem:[%s0 + $0x58] sm:$0xf]
  %v37 = vld [vmem:[%s0 + $0x5c] sm:$0xf]
  %v38 = vld [vmem:[%s0 + $0x60] sm:$0xf]
  %v39 = vld [vmem:[%s0 + $0x64] sm:$0xf]
  %v40 = vld [vmem:[%s0 + $0x68] sm:$0xf]
  %v41 = vld [vmem:[%s0 + $0x6c] sm:$0xf]
  %v42 = vld [vmem:[%s0 + $0x70] sm:$0xf]
  %v43 = vld [vmem:[%s0 + $0x74] sm:$0xf]
  %v44 = vld [vmem:[%s0 + $0x78] sm:$0xf]
  %v45 = vld [vmem:[%s0 + $0x7c] sm:$0xf]
  %v46 = vld [vmem:[%s0 + $0x80] sm:$0xf]
  %v47 = vld [vmem:[%s0 + $0x84] sm:$0xf]
  %v48 = vld [vmem:[%s0 + $0x88] sm:$0xf]
  %v49 = vld [vmem:[%s0 + $0x8c] sm:$0xf]
  %v50 = vld [vmem:[%s0 + $0x90] sm:$0xf]
  %v51 = vld [vmem:[%s0 + $0x94] sm:$0xf]
  %v52 = vld [vmem:[%s0 + $0x98] sm:$0xf]
  %v53 = vld [vmem:[%s0 + $0x9c] sm:$0xf]
  %v54 = vld [vmem:[%s0 + $0xa0] sm:$0xf]
  %v55 = vld [vmem:[%s0 + $0xa4] sm:$0xf]
  %v56 = vld [vmem:[%s0 + $0xa8] sm:$0xf]
  %v57 = vld [vmem:[%s0 + $0xac] sm:$0xf]
  %v58 = vld [vmem:[%s0 + $0xb0] sm:$0xf]
  %v59 = vld [vmem:[%s0 + $0xb4] sm:$0xf]
  %v60 = vld [vmem:[%s0 + $0xb8] sm:$0xf]
  %v61 = vld [vmem:[%s0 + $0xbc] sm:$0xf]
  %v62 = vld [vmem:[%s0 + $0xc0] sm:$0xf]
  %v63 = vld [vmem:[%s0 + $0xc4] sm:$0xf]
  %v64 = vld [vmem:[%s0 + $0xc8] sm:$0xf]
  %v65 = vld [vmem:[%s0 + $0xcc] sm:$0xf]
  %v66 = vld [vmem:[%s0 + $0xd0] sm:$0xf]
  %v67 = vld [vmem:[%s0 + $0xd4] sm:$0xf]
  %v68 = vld [vmem:[%s0 + $0xd8] sm:$0xf]
  %v69 = vld [vmem:[%s0 + $0xdc] sm:$0xf]
  %v70 = vld [vmem:[%s0 + $0xe0] sm:$0xf]
  %v71 = vld [vmem:[%s0 + $0xe4] sm:$0xf]
  %v72 = vld [vmem:[%s0 + $0xe8] sm:$0xf]
  %v73 = vld [vmem:[%s0 + $0xec] sm:$0xf]
  %v74 = vld [vmem:[%s0 + $0xf0] sm:$0xf]
  %v75 = vld [vmem:[%s0 + $0xf4] sm:$0xf]
  %v76 = vld [vmem:[%s0 + $0xf8] sm:$0xf]
  %v77 = vld [vmem:[%s0 + $0xfc] sm:$0xf]
  %v78 = vunpack.c.l.bf16 %v14
  %v79 = vunpack.c.l.bf16 %v15
  %v80 = vunpack.c.l.bf16 %v16
  %v81 = vunpack.c.l.bf16 %v17
  %v82 = vunpack.c.l.bf16 %v18
  %v83 = vunpack.c.l.bf16 %v19
  %v84 = vunpack.c.l.bf16 %v20
  %v85 = vunpack.c.l.bf16 %v21
  %v86 = vunpack.c.l.bf16 %v22
  %v87 = vunpack.c.l.bf16 %v23
  %v88 = vunpack.c.l.bf16 %v24
  %v89 = vunpack.c.l.bf16 %v25
  %v90 = vunpack.c.l.bf16 %v26
  %v91 = vunpack.c.l.bf16 %v27
  %v92 = vunpack.c.l.bf16 %v28
  %v93 = vunpack.c.l.bf16 %v29
  %v94 = vunpack.c.l.bf16 %v30
  %v95 = vunpack.c.l.bf16 %v31
  %v96 = vunpack.c.l.bf16 %v32
  %v97 = vunpack.c.l.bf16 %v33
  %v98 = vunpack.c.l.bf16 %v34
  %v99 = vunpack.c.l.bf16 %v35
  %v100 = vunpack.c.l.bf16 %v36
  %v101 = vunpack.c.l.bf16 %v37
  %v102 = vunpack.c.l.bf16 %v38
  %v103 = vunpack.c.l.bf16 %v39
  %v104 = vunpack.c.l.bf16 %v40
  %v105 = vunpack.c.l.bf16 %v41
  %v106 = vunpack.c.l.bf16 %v42
  %v107 = vunpack.c.l.bf16 %v43
  %v108 = vunpack.c.l.bf16 %v44
  %v109 = vunpack.c.l.bf16 %v45
  %v110 = vunpack.c.l.bf16 %v46
  %v111 = vunpack.c.l.bf16 %v47
  %v112 = vunpack.c.l.bf16 %v48
  %v113 = vunpack.c.l.bf16 %v49
  %v114 = vunpack.c.l.bf16 %v50
  %v115 = vunpack.c.l.bf16 %v51
  %v116 = vunpack.c.l.bf16 %v52
  %v117 = vunpack.c.l.bf16 %v53
  %v118 = vunpack.c.l.bf16 %v54
  %v119 = vunpack.c.l.bf16 %v55
  %v120 = vunpack.c.l.bf16 %v56
  %v121 = vunpack.c.l.bf16 %v57
  %v122 = vunpack.c.l.bf16 %v58
  %v123 = vunpack.c.l.bf16 %v59
  %v124 = vunpack.c.l.bf16 %v60
  %v125 = vunpack.c.l.bf16 %v61
  %v126 = vunpack.c.l.bf16 %v62
  %v127 = vunpack.c.l.bf16 %v63
  %v128 = vunpack.c.l.bf16 %v64
  %v129 = vunpack.c.l.bf16 %v65
  %v130 = vunpack.c.l.bf16 %v66
  %v131 = vunpack.c.l.bf16 %v67
  %v132 = vunpack.c.l.bf16 %v68
  %v133 = vunpack.c.l.bf16 %v69
  %v134 = vunpack.c.l.bf16 %v70
  %v135 = vunpack.c.l.bf16 %v71
  %v136 = vunpack.c.l.bf16 %v72
  %v137 = vunpack.c.l.bf16 %v73
  %v138 = vunpack.c.l.bf16 %v74
  %v139 = vunpack.c.l.bf16 %v75
  %v140 = vunpack.c.l.bf16 %v76
  %v141 = vunpack.c.l.bf16 %v77
  %vm142 = vcmask 261120
  %v143 = vsel %vm142, %v78, 0.0
  %v144 = vsel %vm142, %v79, 0.0
  %v145 = vadd.f32 %v143, %v144
  %v146 = vsel %vm142, %v80, 0.0
  %v147 = vadd.f32 %v145, %v146
  %v148 = vsel %vm142, %v81, 0.0
  %v149 = vadd.f32 %v147, %v148
  %v150 = vsel %vm142, %v82, 0.0
  %v151 = vadd.f32 %v149, %v150
  %v152 = vsel %vm142, %v83, 0.0
  %v153 = vadd.f32 %v151, %v152
  %v154 = vsel %vm142, %v84, 0.0
  %v155 = vadd.f32 %v153, %v154
  %v156 = vsel %vm142, %v85, 0.0
  %v157 = vadd.f32 %v155, %v156
  %v158 = vsel %vm142, %v86, 0.0
  %v159 = vadd.f32 %v157, %v158
  %v160 = vsel %vm142, %v87, 0.0
  %v161 = vadd.f32 %v159, %v160
  %v162 = vsel %vm142, %v88, 0.0
  %v163 = vadd.f32 %v161, %v162
  %v164 = vsel %vm142, %v89, 0.0
  %v165 = vadd.f32 %v163, %v164
  %v166 = vsel %vm142, %v90, 0.0
  %v167 = vadd.f32 %v165, %v166
  %v168 = vsel %vm142, %v91, 0.0
  %v169 = vadd.f32 %v167, %v168
  %v170 = vsel %vm142, %v92, 0.0
  %v171 = vadd.f32 %v169, %v170
  %v172 = vsel %vm142, %v93, 0.0
  %v173 = vadd.f32 %v171, %v172
  %v174 = vsel %vm142, %v94, 0.0
  %v175 = vadd.f32 %v173, %v174
  %v176 = vsel %vm142, %v95, 0.0
  %v177 = vadd.f32 %v175, %v176
  %v178 = vsel %vm142, %v96, 0.0
  %v179 = vadd.f32 %v177, %v178
  %v180 = vsel %vm142, %v97, 0.0
  %v181 = vadd.f32 %v179, %v180
  %v182 = vsel %vm142, %v98, 0.0
  %v183 = vadd.f32 %v181, %v182
  %v184 = vsel %vm142, %v99, 0.0
  %v185 = vadd.f32 %v183, %v184
  %v186 = vsel %vm142, %v100, 0.0
  %v187 = vadd.f32 %v185, %v186
  %v188 = vsel %vm142, %v101, 0.0
  %v189 = vadd.f32 %v187, %v188
  %v190 = vsel %vm142, %v102, 0.0
  %v191 = vadd.f32 %v189, %v190
  %v192 = vsel %vm142, %v103, 0.0
  %v193 = vadd.f32 %v191, %v192
  %v194 = vsel %vm142, %v104, 0.0
  %v195 = vadd.f32 %v193, %v194
  %v196 = vsel %vm142, %v105, 0.0
  %v197 = vadd.f32 %v195, %v196
  %v198 = vsel %vm142, %v106, 0.0
  %v199 = vadd.f32 %v197, %v198
  %v200 = vsel %vm142, %v107, 0.0
  %v201 = vadd.f32 %v199, %v200
  %v202 = vsel %vm142, %v108, 0.0
  %v203 = vadd.f32 %v201, %v202
  %v204 = vsel %vm142, %v109, 0.0
  %v205 = vadd.f32 %v203, %v204
  %v206 = vsel %vm142, %v110, 0.0
  %v207 = vadd.f32 %v205, %v206
  %v208 = vsel %vm142, %v111, 0.0
  %v209 = vadd.f32 %v207, %v208
  %v210 = vsel %vm142, %v112, 0.0
  %v211 = vadd.f32 %v209, %v210
  %v212 = vsel %vm142, %v113, 0.0
  %v213 = vadd.f32 %v211, %v212
  %v214 = vsel %vm142, %v114, 0.0
  %v215 = vadd.f32 %v213, %v214
  %v216 = vsel %vm142, %v115, 0.0
  %v217 = vadd.f32 %v215, %v216
  %v218 = vsel %vm142, %v116, 0.0
  %v219 = vadd.f32 %v217, %v218
  %v220 = vsel %vm142, %v117, 0.0
  %v221 = vadd.f32 %v219, %v220
  %v222 = vsel %vm142, %v118, 0.0
  %v223 = vadd.f32 %v221, %v222
  %v224 = vsel %vm142, %v119, 0.0
  %v225 = vadd.f32 %v223, %v224
  %v226 = vsel %vm142, %v120, 0.0
  %v227 = vadd.f32 %v225, %v226
  %v228 = vsel %vm142, %v121, 0.0
  %v229 = vadd.f32 %v227, %v228
  %v230 = vsel %vm142, %v122, 0.0
  %v231 = vadd.f32 %v229, %v230
  %v232 = vsel %vm142, %v123, 0.0
  %v233 = vadd.f32 %v231, %v232
  %v234 = vsel %vm142, %v124, 0.0
  %v235 = vadd.f32 %v233, %v234
  %v236 = vsel %vm142, %v125, 0.0
  %v237 = vadd.f32 %v235, %v236
  %v238 = vsel %vm142, %v126, 0.0
  %v239 = vadd.f32 %v237, %v238
  %v240 = vsel %vm142, %v127, 0.0
  %v241 = vadd.f32 %v239, %v240
  %v242 = vsel %vm142, %v128, 0.0
  %v243 = vadd.f32 %v241, %v242
  %v244 = vsel %vm142, %v129, 0.0
  %v245 = vadd.f32 %v243, %v244
  %v246 = vsel %vm142, %v130, 0.0
  %v247 = vadd.f32 %v245, %v246
  %v248 = vsel %vm142, %v131, 0.0
  %v249 = vadd.f32 %v247, %v248
  %v250 = vsel %vm142, %v132, 0.0
  %v251 = vadd.f32 %v249, %v250
  %v252 = vsel %vm142, %v133, 0.0
  %v253 = vadd.f32 %v251, %v252
  %v254 = vsel %vm142, %v134, 0.0
  %v255 = vadd.f32 %v253, %v254
  %v256 = vsel %vm142, %v135, 0.0
  %v257 = vadd.f32 %v255, %v256
  %v258 = vsel %vm142, %v136, 0.0
  %v259 = vadd.f32 %v257, %v258
  %v260 = vsel %vm142, %v137, 0.0
  %v261 = vadd.f32 %v259, %v260
  %v262 = vsel %vm142, %v138, 0.0
  %v263 = vadd.f32 %v261, %v262
  %v264 = vsel %vm142, %v139, 0.0
  %v265 = vadd.f32 %v263, %v264
  %v266 = vsel %vm142, %v140, 0.0
  %v267 = vadd.f32 %v265, %v266
  %v268 = vsel %vm142, %v141, 0.0
  %v269 = vadd.f32 %v267, %v268
  %v270 = vrot.slane %v269, 4
  %v271 = vadd.f32 %v269, %v270
  %v272 = vrot.slane %v271, 2
  %v273 = vadd.f32 %v271, %v272
  %v274 = vrot.slane %v273, 1
  %v275 = vadd.f32 %v273, %v274
  %v276 = vrcp.pop 512.0
  %v277 = vmul.f32 %v275, %v276
  %v278 = vsub.f32 %v78, %v277
  %v279 = vsub.f32 %v79, %v277
  %v280 = vsub.f32 %v80, %v277
  %v281 = vsub.f32 %v81, %v277
  %v282 = vsub.f32 %v82, %v277
  %v283 = vsub.f32 %v83, %v277
  %v284 = vsub.f32 %v84, %v277
  %v285 = vsub.f32 %v85, %v277
  %v286 = vsub.f32 %v86, %v277
  %v287 = vsub.f32 %v87, %v277
  %v288 = vsub.f32 %v88, %v277
  %v289 = vsub.f32 %v89, %v277
  %v290 = vsub.f32 %v90, %v277
  %v291 = vsub.f32 %v91, %v277
  %v292 = vsub.f32 %v92, %v277
  %v293 = vsub.f32 %v93, %v277
  %v294 = vsub.f32 %v94, %v277
  %v295 = vsub.f32 %v95, %v277
  %v296 = vsub.f32 %v96, %v277
  %v297 = vsub.f32 %v97, %v277
  %v298 = vsub.f32 %v98, %v277
  %v299 = vsub.f32 %v99, %v277
  %v300 = vsub.f32 %v100, %v277
  %v301 = vsub.f32 %v101, %v277
  %v302 = vsub.f32 %v102, %v277
  %v303 = vsub.f32 %v103, %v277
  %v304 = vsub.f32 %v104, %v277
  %v305 = vsub.f32 %v105, %v277
  %v306 = vsub.f32 %v106, %v277
  %v307 = vsub.f32 %v107, %v277
  %v308 = vsub.f32 %v108, %v277
  %v309 = vsub.f32 %v109, %v277
  %v310 = vsub.f32 %v110, %v277
  %v311 = vsub.f32 %v111, %v277
  %v312 = vsub.f32 %v112, %v277
  %v313 = vsub.f32 %v113, %v277
  %v314 = vsub.f32 %v114, %v277
  %v315 = vsub.f32 %v115, %v277
  %v316 = vsub.f32 %v116, %v277
  %v317 = vsub.f32 %v117, %v277
  %v318 = vsub.f32 %v118, %v277
  %v319 = vsub.f32 %v119, %v277
  %v320 = vsub.f32 %v120, %v277
  %v321 = vsub.f32 %v121, %v277
  %v322 = vsub.f32 %v122, %v277
  %v323 = vsub.f32 %v123, %v277
  %v324 = vsub.f32 %v124, %v277
  %v325 = vsub.f32 %v125, %v277
  %v326 = vsub.f32 %v126, %v277
  %v327 = vsub.f32 %v127, %v277
  %v328 = vsub.f32 %v128, %v277
  %v329 = vsub.f32 %v129, %v277
  %v330 = vsub.f32 %v130, %v277
  %v331 = vsub.f32 %v131, %v277
  %v332 = vsub.f32 %v132, %v277
  %v333 = vsub.f32 %v133, %v277
  %v334 = vsub.f32 %v134, %v277
  %v335 = vsub.f32 %v135, %v277
  %v336 = vsub.f32 %v136, %v277
  %v337 = vsub.f32 %v137, %v277
  %v338 = vsub.f32 %v138, %v277
  %v339 = vsub.f32 %v139, %v277
  %v340 = vsub.f32 %v140, %v277
  %v341 = vsub.f32 %v141, %v277
  %v342 = vmul.f32 %v278, %v278
  %v343 = vmul.f32 %v279, %v279
  %v344 = vmul.f32 %v280, %v280
  %v345 = vmul.f32 %v281, %v281
  %v346 = vmul.f32 %v282, %v282
  %v347 = vmul.f32 %v283, %v283
  %v348 = vmul.f32 %v284, %v284
  %v349 = vmul.f32 %v285, %v285
  %v350 = vmul.f32 %v286, %v286
  %v351 = vmul.f32 %v287, %v287
  %v352 = vmul.f32 %v288, %v288
  %v353 = vmul.f32 %v289, %v289
  %v354 = vmul.f32 %v290, %v290
  %v355 = vmul.f32 %v291, %v291
  %v356 = vmul.f32 %v292, %v292
  %v357 = vmul.f32 %v293, %v293
  %v358 = vmul.f32 %v294, %v294
  %v359 = vmul.f32 %v295, %v295
  %v360 = vmul.f32 %v296, %v296
  %v361 = vmul.f32 %v297, %v297
  %v362 = vmul.f32 %v298, %v298
  %v363 = vmul.f32 %v299, %v299
  %v364 = vmul.f32 %v300, %v300
  %v365 = vmul.f32 %v301, %v301
  %v366 = vmul.f32 %v302, %v302
  %v367 = vmul.f32 %v303, %v303
  %v368 = vmul.f32 %v304, %v304
  %v369 = vmul.f32 %v305, %v305
  %v370 = vmul.f32 %v306, %v306
  %v371 = vmul.f32 %v307, %v307
  %v372 = vmul.f32 %v308, %v308
  %v373 = vmul.f32 %v309, %v309
  %v374 = vmul.f32 %v310, %v310
  %v375 = vmul.f32 %v311, %v311
  %v376 = vmul.f32 %v312, %v312
  %v377 = vmul.f32 %v313, %v313
  %v378 = vmul.f32 %v314, %v314
  %v379 = vmul.f32 %v315, %v315
  %v380 = vmul.f32 %v316, %v316
  %v381 = vmul.f32 %v317, %v317
  %v382 = vmul.f32 %v318, %v318
  %v383 = vmul.f32 %v319, %v319
  %v384 = vmul.f32 %v320, %v320
  %v385 = vmul.f32 %v321, %v321
  %v386 = vmul.f32 %v322, %v322
  %v387 = vmul.f32 %v323, %v323
  %v388 = vmul.f32 %v324, %v324
  %v389 = vmul.f32 %v325, %v325
  %v390 = vmul.f32 %v326, %v326
  %v391 = vmul.f32 %v327, %v327
  %v392 = vmul.f32 %v328, %v328
  %v393 = vmul.f32 %v329, %v329
  %v394 = vmul.f32 %v330, %v330
  %v395 = vmul.f32 %v331, %v331
  %v396 = vmul.f32 %v332, %v332
  %v397 = vmul.f32 %v333, %v333
  %v398 = vmul.f32 %v334, %v334
  %v399 = vmul.f32 %v335, %v335
  %v400 = vmul.f32 %v336, %v336
  %v401 = vmul.f32 %v337, %v337
  %v402 = vmul.f32 %v338, %v338
  %v403 = vmul.f32 %v339, %v339
  %v404 = vmul.f32 %v340, %v340
  %v405 = vmul.f32 %v341, %v341
  %v406 = vsel %vm142, %v342, 0.0
  %v407 = vsel %vm142, %v343, 0.0
  %v408 = vadd.f32 %v406, %v407
  %v409 = vsel %vm142, %v344, 0.0
  %v410 = vadd.f32 %v408, %v409
  %v411 = vsel %vm142, %v345, 0.0
  %v412 = vadd.f32 %v410, %v411
  %v413 = vsel %vm142, %v346, 0.0
  %v414 = vadd.f32 %v412, %v413
  %v415 = vsel %vm142, %v347, 0.0
  %v416 = vadd.f32 %v414, %v415
  %v417 = vsel %vm142, %v348, 0.0
  %v418 = vadd.f32 %v416, %v417
  %v419 = vsel %vm142, %v349, 0.0
  %v420 = vadd.f32 %v418, %v419
  %v421 = vsel %vm142, %v350, 0.0
  %v422 = vadd.f32 %v420, %v421
  %v423 = vsel %vm142, %v351, 0.0
  %v424 = vadd.f32 %v422, %v423
  %v425 = vsel %vm142, %v352, 0.0
  %v426 = vadd.f32 %v424, %v425
  %v427 = vsel %vm142, %v353, 0.0
  %v428 = vadd.f32 %v426, %v427
  %v429 = vsel %vm142, %v354, 0.0
  %v430 = vadd.f32 %v428, %v429
  %v431 = vsel %vm142, %v355, 0.0
  %v432 = vadd.f32 %v430, %v431
  %v433 = vsel %vm142, %v356, 0.0
  %v434 = vadd.f32 %v432, %v433
  %v435 = vsel %vm142, %v357, 0.0
  %v436 = vadd.f32 %v434, %v435
  %v437 = vsel %vm142, %v358, 0.0
  %v438 = vadd.f32 %v436, %v437
  %v439 = vsel %vm142, %v359, 0.0
  %v440 = vadd.f32 %v438, %v439
  %v441 = vsel %vm142, %v360, 0.0
  %v442 = vadd.f32 %v440, %v441
  %v443 = vsel %vm142, %v361, 0.0
  %v444 = vadd.f32 %v442, %v443
  %v445 = vsel %vm142, %v362, 0.0
  %v446 = vadd.f32 %v444, %v445
  %v447 = vsel %vm142, %v363, 0.0
  %v448 = vadd.f32 %v446, %v447
  %v449 = vsel %vm142, %v364, 0.0
  %v450 = vadd.f32 %v448, %v449
  %v451 = vsel %vm142, %v365, 0.0
  %v452 = vadd.f32 %v450, %v451
  %v453 = vsel %vm142, %v366, 0.0
  %v454 = vadd.f32 %v452, %v453
  %v455 = vsel %vm142, %v367, 0.0
  %v456 = vadd.f32 %v454, %v455
  %v457 = vsel %vm142, %v368, 0.0
  %v458 = vadd.f32 %v456, %v457
  %v459 = vsel %vm142, %v369, 0.0
  %v460 = vadd.f32 %v458, %v459
  %v461 = vsel %vm142, %v370, 0.0
  %v462 = vadd.f32 %v460, %v461
  %v463 = vsel %vm142, %v371, 0.0
  %v464 = vadd.f32 %v462, %v463
  %v465 = vsel %vm142, %v372, 0.0
  %v466 = vadd.f32 %v464, %v465
  %v467 = vsel %vm142, %v373, 0.0
  %v468 = vadd.f32 %v466, %v467
  %v469 = vsel %vm142, %v374, 0.0
  %v470 = vadd.f32 %v468, %v469
  %v471 = vsel %vm142, %v375, 0.0
  %v472 = vadd.f32 %v470, %v471
  %v473 = vsel %vm142, %v376, 0.0
  %v474 = vadd.f32 %v472, %v473
  %v475 = vsel %vm142, %v377, 0.0
  %v476 = vadd.f32 %v474, %v475
  %v477 = vsel %vm142, %v378, 0.0
  %v478 = vadd.f32 %v476, %v477
  %v479 = vsel %vm142, %v379, 0.0
  %v480 = vadd.f32 %v478, %v479
  %v481 = vsel %vm142, %v380, 0.0
  %v482 = vadd.f32 %v480, %v481
  %v483 = vsel %vm142, %v381, 0.0
  %v484 = vadd.f32 %v482, %v483
  %v485 = vsel %vm142, %v382, 0.0
  %v486 = vadd.f32 %v484, %v485
  %v487 = vsel %vm142, %v383, 0.0
  %v488 = vadd.f32 %v486, %v487
  %v489 = vsel %vm142, %v384, 0.0
  %v490 = vadd.f32 %v488, %v489
  %v491 = vsel %vm142, %v385, 0.0
  %v492 = vadd.f32 %v490, %v491
  %v493 = vsel %vm142, %v386, 0.0
  %v494 = vadd.f32 %v492, %v493
  %v495 = vsel %vm142, %v387, 0.0
  %v496 = vadd.f32 %v494, %v495
  %v497 = vsel %vm142, %v388, 0.0
  %v498 = vadd.f32 %v496, %v497
  %v499 = vsel %vm142, %v389, 0.0
  %v500 = vadd.f32 %v498, %v499
  %v501 = vsel %vm142, %v390, 0.0
  %v502 = vadd.f32 %v500, %v501
  %v503 = vsel %vm142, %v391, 0.0
  %v504 = vadd.f32 %v502, %v503
  %v505 = vsel %vm142, %v392, 0.0
  %v506 = vadd.f32 %v504, %v505
  %v507 = vsel %vm142, %v393, 0.0
  %v508 = vadd.f32 %v506, %v507
  %v509 = vsel %vm142, %v394, 0.0
  %v510 = vadd.f32 %v508, %v509
  %v511 = vsel %vm142, %v395, 0.0
  %v512 = vadd.f32 %v510, %v511
  %v513 = vsel %vm142, %v396, 0.0
  %v514 = vadd.f32 %v512, %v513
  %v515 = vsel %vm142, %v397, 0.0
  %v516 = vadd.f32 %v514, %v515
  %v517 = vsel %vm142, %v398, 0.0
  %v518 = vadd.f32 %v516, %v517
  %v519 = vsel %vm142, %v399, 0.0
  %v520 = vadd.f32 %v518, %v519
  %v521 = vsel %vm142, %v400, 0.0
  %v522 = vadd.f32 %v520, %v521
  %v523 = vsel %vm142, %v401, 0.0
  %v524 = vadd.f32 %v522, %v523
  %v525 = vsel %vm142, %v402, 0.0
  %v526 = vadd.f32 %v524, %v525
  %v527 = vsel %vm142, %v403, 0.0
  %v528 = vadd.f32 %v526, %v527
  %v529 = vsel %vm142, %v404, 0.0
  %v530 = vadd.f32 %v528, %v529
  %v531 = vsel %vm142, %v405, 0.0
  %v532 = vadd.f32 %v530, %v531
  %v533 = vrot.slane %v532, 4
  %v534 = vadd.f32 %v532, %v533
  %v535 = vrot.slane %v534, 2
  %v536 = vadd.f32 %v534, %v535
  %v537 = vrot.slane %v536, 1
  %v538 = vadd.f32 %v536, %v537
  %v539 = vmul.f32 %v538, %v276
  %v540 = vadd.f32 %v539, 1e-05
  %v541 = vrsqrt.pop %v540
  %v542 = vmul.f32 %v278, %v541
  %v543 = vmul.f32 %v279, %v541
  %v544 = vmul.f32 %v280, %v541
  %v545 = vmul.f32 %v281, %v541
  %v546 = vmul.f32 %v282, %v541
  %v547 = vmul.f32 %v283, %v541
  %v548 = vmul.f32 %v284, %v541
  %v549 = vmul.f32 %v285, %v541
  %v550 = vmul.f32 %v286, %v541
  %v551 = vmul.f32 %v287, %v541
  %v552 = vmul.f32 %v288, %v541
  %v553 = vmul.f32 %v289, %v541
  %v554 = vmul.f32 %v290, %v541
  %v555 = vmul.f32 %v291, %v541
  %v556 = vmul.f32 %v292, %v541
  %v557 = vmul.f32 %v293, %v541
  %v558 = vmul.f32 %v294, %v541
  %v559 = vmul.f32 %v295, %v541
  %v560 = vmul.f32 %v296, %v541
  %v561 = vmul.f32 %v297, %v541
  %v562 = vmul.f32 %v298, %v541
  %v563 = vmul.f32 %v299, %v541
  %v564 = vmul.f32 %v300, %v541
  %v565 = vmul.f32 %v301, %v541
  %v566 = vmul.f32 %v302, %v541
  %v567 = vmul.f32 %v303, %v541
  %v568 = vmul.f32 %v304, %v541
  %v569 = vmul.f32 %v305, %v541
  %v570 = vmul.f32 %v306, %v541
  %v571 = vmul.f32 %v307, %v541
  %v572 = vmul.f32 %v308, %v541
  %v573 = vmul.f32 %v309, %v541
  %v574 = vmul.f32 %v310, %v541
  %v575 = vmul.f32 %v311, %v541
  %v576 = vmul.f32 %v312, %v541
  %v577 = vmul.f32 %v313, %v541
  %v578 = vmul.f32 %v314, %v541
  %v579 = vmul.f32 %v315, %v541
  %v580 = vmul.f32 %v316, %v541
  %v581 = vmul.f32 %v317, %v541
  %v582 = vmul.f32 %v318, %v541
  %v583 = vmul.f32 %v319, %v541
  %v584 = vmul.f32 %v320, %v541
  %v585 = vmul.f32 %v321, %v541
  %v586 = vmul.f32 %v322, %v541
  %v587 = vmul.f32 %v323, %v541
  %v588 = vmul.f32 %v324, %v541
  %v589 = vmul.f32 %v325, %v541
  %v590 = vmul.f32 %v326, %v541
  %v591 = vmul.f32 %v327, %v541
  %v592 = vmul.f32 %v328, %v541
  %v593 = vmul.f32 %v329, %v541
  %v594 = vmul.f32 %v330, %v541
  %v595 = vmul.f32 %v331, %v541
  %v596 = vmul.f32 %v332, %v541
  %v597 = vmul.f32 %v333, %v541
  %v598 = vmul.f32 %v334, %v541
  %v599 = vmul.f32 %v335, %v541
  %v600 = vmul.f32 %v336, %v541
  %v601 = vmul.f32 %v337, %v541
  %v602 = vmul.f32 %v338, %v541
  %v603 = vmul.f32 %v339, %v541
  %v604 = vmul.f32 %v340, %v541
  %v605 = vmul.f32 %v341, %v541
  %v606 = vld [vmem:[%s1] sm:$0x1]
  %v608 = vlaneseq
  %v609 = vshrl.u32 %v608, 7
  %v610 = vsub.s32 0, %v609
  %v611 = vrot.slane %v606, %v610
  %v613 = vmul.f32 %v542, %v611
  %v614 = vmul.f32 %v543, %v611
  %v615 = vmul.f32 %v544, %v611
  %v616 = vmul.f32 %v545, %v611
  %v617 = vmul.f32 %v546, %v611
  %v618 = vmul.f32 %v547, %v611
  %v619 = vmul.f32 %v548, %v611
  %v620 = vmul.f32 %v549, %v611
  %v621 = vmul.f32 %v550, %v611
  %v622 = vmul.f32 %v551, %v611
  %v623 = vmul.f32 %v552, %v611
  %v624 = vmul.f32 %v553, %v611
  %v625 = vmul.f32 %v554, %v611
  %v626 = vmul.f32 %v555, %v611
  %v627 = vmul.f32 %v556, %v611
  %v628 = vmul.f32 %v557, %v611
  %v629 = vmul.f32 %v558, %v611
  %v630 = vmul.f32 %v559, %v611
  %v631 = vmul.f32 %v560, %v611
  %v632 = vmul.f32 %v561, %v611
  %v633 = vmul.f32 %v562, %v611
  %v634 = vmul.f32 %v563, %v611
  %v635 = vmul.f32 %v564, %v611
  %v636 = vmul.f32 %v565, %v611
  %v637 = vmul.f32 %v566, %v611
  %v638 = vmul.f32 %v567, %v611
  %v639 = vmul.f32 %v568, %v611
  %v640 = vmul.f32 %v569, %v611
  %v641 = vmul.f32 %v570, %v611
  %v642 = vmul.f32 %v571, %v611
  %v643 = vmul.f32 %v572, %v611
  %v644 = vmul.f32 %v573, %v611
  %v645 = vmul.f32 %v574, %v611
  %v646 = vmul.f32 %v575, %v611
  %v647 = vmul.f32 %v576, %v611
  %v648 = vmul.f32 %v577, %v611
  %v649 = vmul.f32 %v578, %v611
  %v650 = vmul.f32 %v579, %v611
  %v651 = vmul.f32 %v580, %v611
  %v652 = vmul.f32 %v581, %v611
  %v653 = vmul.f32 %v582, %v611
  %v654 = vmul.f32 %v583, %v611
  %v655 = vmul.f32 %v584, %v611
  %v656 = vmul.f32 %v585, %v611
  %v657 = vmul.f32 %v586, %v611
  %v658 = vmul.f32 %v587, %v611
  %v659 = vmul.f32 %v588, %v611
  %v660 = vmul.f32 %v589, %v611
  %v661 = vmul.f32 %v590, %v611
  %v662 = vmul.f32 %v591, %v611
  %v663 = vmul.f32 %v592, %v611
  %v664 = vmul.f32 %v593, %v611
  %v665 = vmul.f32 %v594, %v611
  %v666 = vmul.f32 %v595, %v611
  %v667 = vmul.f32 %v596, %v611
  %v668 = vmul.f32 %v597, %v611
  %v669 = vmul.f32 %v598, %v611
  %v670 = vmul.f32 %v599, %v611
  %v671 = vmul.f32 %v600, %v611
  %v672 = vmul.f32 %v601, %v611
  %v673 = vmul.f32 %v602, %v611
  %v674 = vmul.f32 %v603, %v611
  %v675 = vmul.f32 %v604, %v611
  %v676 = vmul.f32 %v605, %v611
  %v677 = vld [vmem:[%s2] sm:$0x1]
  %v679 = vlaneseq
  %v680 = vshrl.u32 %v679, 7
  %v681 = vsub.s32 0, %v680
  %v682 = vrot.slane %v677, %v681
  %v684 = vadd.f32 %v613, %v682
  %v685 = vadd.f32 %v614, %v682
  %v686 = vadd.f32 %v615, %v682
  %v687 = vadd.f32 %v616, %v682
  %v688 = vadd.f32 %v617, %v682
  %v689 = vadd.f32 %v618, %v682
  %v690 = vadd.f32 %v619, %v682
  %v691 = vadd.f32 %v620, %v682
  %v692 = vadd.f32 %v621, %v682
  %v693 = vadd.f32 %v622, %v682
  %v694 = vadd.f32 %v623, %v682
  %v695 = vadd.f32 %v624, %v682
  %v696 = vadd.f32 %v625, %v682
  %v697 = vadd.f32 %v626, %v682
  %v698 = vadd.f32 %v627, %v682
  %v699 = vadd.f32 %v628, %v682
  %v700 = vadd.f32 %v629, %v682
  %v701 = vadd.f32 %v630, %v682
  %v702 = vadd.f32 %v631, %v682
  %v703 = vadd.f32 %v632, %v682
  %v704 = vadd.f32 %v633, %v682
  %v705 = vadd.f32 %v634, %v682
  %v706 = vadd.f32 %v635, %v682
  %v707 = vadd.f32 %v636, %v682
  %v708 = vadd.f32 %v637, %v682
  %v709 = vadd.f32 %v638, %v682
  %v710 = vadd.f32 %v639, %v682
  %v711 = vadd.f32 %v640, %v682
  %v712 = vadd.f32 %v641, %v682
  %v713 = vadd.f32 %v642, %v682
  %v714 = vadd.f32 %v643, %v682
  %v715 = vadd.f32 %v644, %v682
  %v716 = vadd.f32 %v645, %v682
  %v717 = vadd.f32 %v646, %v682
  %v718 = vadd.f32 %v647, %v682
  %v719 = vadd.f32 %v648, %v682
  %v720 = vadd.f32 %v649, %v682
  %v721 = vadd.f32 %v650, %v682
  %v722 = vadd.f32 %v651, %v682
  %v723 = vadd.f32 %v652, %v682
  %v724 = vadd.f32 %v653, %v682
  %v725 = vadd.f32 %v654, %v682
  %v726 = vadd.f32 %v655, %v682
  %v727 = vadd.f32 %v656, %v682
  %v728 = vadd.f32 %v657, %v682
  %v729 = vadd.f32 %v658, %v682
  %v730 = vadd.f32 %v659, %v682
  %v731 = vadd.f32 %v660, %v682
  %v732 = vadd.f32 %v661, %v682
  %v733 = vadd.f32 %v662, %v682
  %v734 = vadd.f32 %v663, %v682
  %v735 = vadd.f32 %v664, %v682
  %v736 = vadd.f32 %v665, %v682
  %v737 = vadd.f32 %v666, %v682
  %v738 = vadd.f32 %v667, %v682
  %v739 = vadd.f32 %v668, %v682
  %v740 = vadd.f32 %v669, %v682
  %v741 = vadd.f32 %v670, %v682
  %v742 = vadd.f32 %v671, %v682
  %v743 = vadd.f32 %v672, %v682
  %v744 = vadd.f32 %v673, %v682
  %v745 = vadd.f32 %v674, %v682
  %v746 = vadd.f32 %v675, %v682
  %v747 = vadd.f32 %v676, %v682
  %v748 = vmax.f32 %v684, 0.0
  %v749 = vmax.f32 %v685, 0.0
  %v750 = vmax.f32 %v686, 0.0
  %v751 = vmax.f32 %v687, 0.0
  %v752 = vmax.f32 %v688, 0.0
  %v753 = vmax.f32 %v689, 0.0
  %v754 = vmax.f32 %v690, 0.0
  %v755 = vmax.f32 %v691, 0.0
  %v756 = vmax.f32 %v692, 0.0
  %v757 = vmax.f32 %v693, 0.0
  %v758 = vmax.f32 %v694, 0.0
  %v759 = vmax.f32 %v695, 0.0
  %v760 = vmax.f32 %v696, 0.0
  %v761 = vmax.f32 %v697, 0.0
  %v762 = vmax.f32 %v698, 0.0
  %v763 = vmax.f32 %v699, 0.0
  %v764 = vmax.f32 %v700, 0.0
  %v765 = vmax.f32 %v701, 0.0
  %v766 = vmax.f32 %v702, 0.0
  %v767 = vmax.f32 %v703, 0.0
  %v768 = vmax.f32 %v704, 0.0
  %v769 = vmax.f32 %v705, 0.0
  %v770 = vmax.f32 %v706, 0.0
  %v771 = vmax.f32 %v707, 0.0
  %v772 = vmax.f32 %v708, 0.0
  %v773 = vmax.f32 %v709, 0.0
  %v774 = vmax.f32 %v710, 0.0
  %v775 = vmax.f32 %v711, 0.0
  %v776 = vmax.f32 %v712, 0.0
  %v777 = vmax.f32 %v713, 0.0
  %v778 = vmax.f32 %v714, 0.0
  %v779 = vmax.f32 %v715, 0.0
  %v780 = vmax.f32 %v716, 0.0
  %v781 = vmax.f32 %v717, 0.0
  %v782 = vmax.f32 %v718, 0.0
  %v783 = vmax.f32 %v719, 0.0
  %v784 = vmax.f32 %v720, 0.0
  %v785 = vmax.f32 %v721, 0.0
  %v786 = vmax.f32 %v722, 0.0
  %v787 = vmax.f32 %v723, 0.0
  %v788 = vmax.f32 %v724, 0.0
  %v789 = vmax.f32 %v725, 0.0
  %v790 = vmax.f32 %v726, 0.0
  %v791 = vmax.f32 %v727, 0.0
  %v792 = vmax.f32 %v728, 0.0
  %v793 = vmax.f32 %v729, 0.0
  %v794 = vmax.f32 %v730, 0.0
  %v795 = vmax.f32 %v731, 0.0
  %v796 = vmax.f32 %v732, 0.0
  %v797 = vmax.f32 %v733, 0.0
  %v798 = vmax.f32 %v734, 0.0
  %v799 = vmax.f32 %v735, 0.0
  %v800 = vmax.f32 %v736, 0.0
  %v801 = vmax.f32 %v737, 0.0
  %v802 = vmax.f32 %v738, 0.0
  %v803 = vmax.f32 %v739, 0.0
  %v804 = vmax.f32 %v740, 0.0
  %v805 = vmax.f32 %v741, 0.0
  %v806 = vmax.f32 %v742, 0.0
  %v807 = vmax.f32 %v743, 0.0
  %v808 = vmax.f32 %v744, 0.0
  %v809 = vmax.f32 %v745, 0.0
  %v810 = vmax.f32 %v746, 0.0
  %v811 = vmax.f32 %v747, 0.0
  %v812 = vpack.c.bf16 %v749, %v748
  %v813 = vpack.c.bf16 %v751, %v750
  %v814 = vpack.c.bf16 %v753, %v752
  %v815 = vpack.c.bf16 %v755, %v754
  %v816 = vpack.c.bf16 %v757, %v756
  %v817 = vpack.c.bf16 %v759, %v758
  %v818 = vpack.c.bf16 %v761, %v760
  %v819 = vpack.c.bf16 %v763, %v762
  %v820 = vpack.c.bf16 %v765, %v764
  %v821 = vpack.c.bf16 %v767, %v766
  %v822 = vpack.c.bf16 %v769, %v768
  %v823 = vpack.c.bf16 %v771, %v770
  %v824 = vpack.c.bf16 %v773, %v772
  %v825 = vpack.c.bf16 %v775, %v774
  %v826 = vpack.c.bf16 %v777, %v776
  %v827 = vpack.c.bf16 %v779, %v778
  %v828 = vpack.c.bf16 %v781, %v780
  %v829 = vpack.c.bf16 %v783, %v782
  %v830 = vpack.c.bf16 %v785, %v784
  %v831 = vpack.c.bf16 %v787, %v786
  %v832 = vpack.c.bf16 %v789, %v788
  %v833 = vpack.c.bf16 %v791, %v790
  %v834 = vpack.c.bf16 %v793, %v792
  %v835 = vpack.c.bf16 %v795, %v794
  %v836 = vpack.c.bf16 %v797, %v796
  %v837 = vpack.c.bf16 %v799, %v798
  %v838 = vpack.c.bf16 %v801, %v800
  %v839 = vpack.c.bf16 %v803, %v802
  %v840 = vpack.c.bf16 %v805, %v804
  %v841 = vpack.c.bf16 %v807, %v806
  %v842 = vpack.c.bf16 %v809, %v808
  %v843 = vpack.c.bf16 %v811, %v810
  %v876 = vunpack.c.l.b16 %v812
  %v877 = vunpack.c.h.b16 %v812
  %v878 = vunpack.c.l.b16 %v813
  %v879 = vunpack.c.h.b16 %v813
  %v880 = vunpack.c.l.b16 %v814
  %v881 = vunpack.c.h.b16 %v814
  %v882 = vunpack.c.l.b16 %v815
  %v883 = vunpack.c.h.b16 %v815
  %v884 = vunpack.c.l.b16 %v816
  %v885 = vunpack.c.h.b16 %v816
  %v886 = vunpack.c.l.b16 %v817
  %v887 = vunpack.c.h.b16 %v817
  %v888 = vunpack.c.l.b16 %v818
  %v889 = vunpack.c.h.b16 %v818
  %v890 = vunpack.c.l.b16 %v819
  %v891 = vunpack.c.h.b16 %v819
  %v892 = vunpack.c.l.b16 %v820
  %v893 = vunpack.c.h.b16 %v820
  %v894 = vunpack.c.l.b16 %v821
  %v895 = vunpack.c.h.b16 %v821
  %v896 = vunpack.c.l.b16 %v822
  %v897 = vunpack.c.h.b16 %v822
  %v898 = vunpack.c.l.b16 %v823
  %v899 = vunpack.c.h.b16 %v823
  %v900 = vunpack.c.l.b16 %v824
  %v901 = vunpack.c.h.b16 %v824
  %v902 = vunpack.c.l.b16 %v825
  %v903 = vunpack.c.h.b16 %v825
  %v904 = vunpack.c.l.b16 %v826
  %v905 = vunpack.c.h.b16 %v826
  %v906 = vunpack.c.l.b16 %v827
  %v907 = vunpack.c.h.b16 %v827
  %v908 = vunpack.c.l.b16 %v828
  %v909 = vunpack.c.h.b16 %v828
  %v910 = vunpack.c.l.b16 %v829
  %v911 = vunpack.c.h.b16 %v829
  %v912 = vunpack.c.l.b16 %v830
  %v913 = vunpack.c.h.b16 %v830
  %v914 = vunpack.c.l.b16 %v831
  %v915 = vunpack.c.h.b16 %v831
  %v916 = vunpack.c.l.b16 %v832
  %v917 = vunpack.c.h.b16 %v832
  %v918 = vunpack.c.l.b16 %v833
  %v919 = vunpack.c.h.b16 %v833
  %v920 = vunpack.c.l.b16 %v834
  %v921 = vunpack.c.h.b16 %v834
  %v922 = vunpack.c.l.b16 %v835
  %v923 = vunpack.c.h.b16 %v835
  %v924 = vunpack.c.l.b16 %v836
  %v925 = vunpack.c.h.b16 %v836
  %v926 = vunpack.c.l.b16 %v837
  %v927 = vunpack.c.h.b16 %v837
  %v928 = vunpack.c.l.b16 %v838
  %v929 = vunpack.c.h.b16 %v838
  %v930 = vunpack.c.l.b16 %v839
  %v931 = vunpack.c.h.b16 %v839
  %v932 = vunpack.c.l.b16 %v840
  %v933 = vunpack.c.h.b16 %v840
  %v934 = vunpack.c.l.b16 %v841
  %v935 = vunpack.c.h.b16 %v841
  %v936 = vunpack.c.l.b16 %v842
  %v937 = vunpack.c.h.b16 %v842
  %v938 = vunpack.c.l.b16 %v843
  %v939 = vunpack.c.h.b16 %v843
  %v940 = vpack.c.b16 %v876, %v876
  %v941 = vpack.c.b16 %v877, %v877
  %v942 = vpack.c.b16 %v878, %v878
  %v943 = vpack.c.b16 %v879, %v879
  %v944 = vpack.c.b16 %v880, %v880
  %v945 = vpack.c.b16 %v881, %v881
  %v946 = vpack.c.b16 %v882, %v882
  %v947 = vpack.c.b16 %v883, %v883
  %v948 = vpack.c.b16 %v884, %v884
  %v949 = vpack.c.b16 %v885, %v885
  %v950 = vpack.c.b16 %v886, %v886
  %v951 = vpack.c.b16 %v887, %v887
  %v952 = vpack.c.b16 %v888, %v888
  %v953 = vpack.c.b16 %v889, %v889
  %v954 = vpack.c.b16 %v890, %v890
  %v955 = vpack.c.b16 %v891, %v891
  %v956 = vpack.c.b16 %v892, %v892
  %v957 = vpack.c.b16 %v893, %v893
  %v958 = vpack.c.b16 %v894, %v894
  %v959 = vpack.c.b16 %v895, %v895
  %v960 = vpack.c.b16 %v896, %v896
  %v961 = vpack.c.b16 %v897, %v897
  %v962 = vpack.c.b16 %v898, %v898
  %v963 = vpack.c.b16 %v899, %v899
  %v964 = vpack.c.b16 %v900, %v900
  %v965 = vpack.c.b16 %v901, %v901
  %v966 = vpack.c.b16 %v902, %v902
  %v967 = vpack.c.b16 %v903, %v903
  %v968 = vpack.c.b16 %v904, %v904
  %v969 = vpack.c.b16 %v905, %v905
  %v970 = vpack.c.b16 %v906, %v906
  %v971 = vpack.c.b16 %v907, %v907
  %v972 = vpack.c.b16 %v908, %v908
  %v973 = vpack.c.b16 %v909, %v909
  %v974 = vpack.c.b16 %v910, %v910
  %v975 = vpack.c.b16 %v911, %v911
  %v976 = vpack.c.b16 %v912, %v912
  %v977 = vpack.c.b16 %v913, %v913
  %v978 = vpack.c.b16 %v914, %v914
  %v979 = vpack.c.b16 %v915, %v915
  %v980 = vpack.c.b16 %v916, %v916
  %v981 = vpack.c.b16 %v917, %v917
  %v982 = vpack.c.b16 %v918, %v918
  %v983 = vpack.c.b16 %v919, %v919
  %v984 = vpack.c.b16 %v920, %v920
  %v985 = vpack.c.b16 %v921, %v921
  %v986 = vpack.c.b16 %v922, %v922
  %v987 = vpack.c.b16 %v923, %v923
  %v988 = vpack.c.b16 %v924, %v924
  %v989 = vpack.c.b16 %v925, %v925
  %v990 = vpack.c.b16 %v926, %v926
  %v991 = vpack.c.b16 %v927, %v927
  %v992 = vpack.c.b16 %v928, %v928
  %v993 = vpack.c.b16 %v929, %v929
  %v994 = vpack.c.b16 %v930, %v930
  %v995 = vpack.c.b16 %v931, %v931
  %v996 = vpack.c.b16 %v932, %v932
  %v997 = vpack.c.b16 %v933, %v933
  %v998 = vpack.c.b16 %v934, %v934
  %v999 = vpack.c.b16 %v935, %v935
  %v1000 = vpack.c.b16 %v936, %v936
  %v1001 = vpack.c.b16 %v937, %v937
  %v1002 = vpack.c.b16 %v938, %v938
  %v1003 = vpack.c.b16 %v939, %v939
  %vm1068 = vcmask 257024
  %1069 = vst.msk [vmem:[%s3] sm:$0xf] %vm1068, %v940
  %1070 = vst.msk [vmem:[%s3 + $0x4] sm:$0xf] %vm1068, %v941
  %1071 = vst.msk [vmem:[%s3 + $0x8] sm:$0xf] %vm1068, %v942
  %1072 = vst.msk [vmem:[%s3 + $0xc] sm:$0xf] %vm1068, %v943
  %1073 = vst.msk [vmem:[%s3 + $0x10] sm:$0xf] %vm1068, %v944
  %1074 = vst.msk [vmem:[%s3 + $0x14] sm:$0xf] %vm1068, %v945
  %1075 = vst.msk [vmem:[%s3 + $0x18] sm:$0xf] %vm1068, %v946
  %1076 = vst.msk [vmem:[%s3 + $0x1c] sm:$0xf] %vm1068, %v947
  %1077 = vst.msk [vmem:[%s3 + $0x20] sm:$0xf] %vm1068, %v948
  %1078 = vst.msk [vmem:[%s3 + $0x24] sm:$0xf] %vm1068, %v949
  %1079 = vst.msk [vmem:[%s3 + $0x28] sm:$0xf] %vm1068, %v950
  %1080 = vst.msk [vmem:[%s3 + $0x2c] sm:$0xf] %vm1068, %v951
  %1081 = vst.msk [vmem:[%s3 + $0x30] sm:$0xf] %vm1068, %v952
  %1082 = vst.msk [vmem:[%s3 + $0x34] sm:$0xf] %vm1068, %v953
  %1083 = vst.msk [vmem:[%s3 + $0x38] sm:$0xf] %vm1068, %v954
  %1084 = vst.msk [vmem:[%s3 + $0x3c] sm:$0xf] %vm1068, %v955
  %1085 = vst.msk [vmem:[%s3 + $0x40] sm:$0xf] %vm1068, %v956
  %1086 = vst.msk [vmem:[%s3 + $0x44] sm:$0xf] %vm1068, %v957
  %1087 = vst.msk [vmem:[%s3 + $0x48] sm:$0xf] %vm1068, %v958
  %1088 = vst.msk [vmem:[%s3 + $0x4c] sm:$0xf] %vm1068, %v959
  %1089 = vst.msk [vmem:[%s3 + $0x50] sm:$0xf] %vm1068, %v960
  %1090 = vst.msk [vmem:[%s3 + $0x54] sm:$0xf] %vm1068, %v961
  %1091 = vst.msk [vmem:[%s3 + $0x58] sm:$0xf] %vm1068, %v962
  %1092 = vst.msk [vmem:[%s3 + $0x5c] sm:$0xf] %vm1068, %v963
  %1093 = vst.msk [vmem:[%s3 + $0x60] sm:$0xf] %vm1068, %v964
  %1094 = vst.msk [vmem:[%s3 + $0x64] sm:$0xf] %vm1068, %v965
  %1095 = vst.msk [vmem:[%s3 + $0x68] sm:$0xf] %vm1068, %v966
  %1096 = vst.msk [vmem:[%s3 + $0x6c] sm:$0xf] %vm1068, %v967
  %1097 = vst.msk [vmem:[%s3 + $0x70] sm:$0xf] %vm1068, %v968
  %1098 = vst.msk [vmem:[%s3 + $0x74] sm:$0xf] %vm1068, %v969
  %1099 = vst.msk [vmem:[%s3 + $0x78] sm:$0xf] %vm1068, %v970
  %1100 = vst.msk [vmem:[%s3 + $0x7c] sm:$0xf] %vm1068, %v971
  %1101 = vst.msk [vmem:[%s3 + $0x80] sm:$0xf] %vm1068, %v972
  %1102 = vst.msk [vmem:[%s3 + $0x84] sm:$0xf] %vm1068, %v973
  %1103 = vst.msk [vmem:[%s3 + $0x88] sm:$0xf] %vm1068, %v974
  %1104 = vst.msk [vmem:[%s3 + $0x8c] sm:$0xf] %vm1068, %v975
  %1105 = vst.msk [vmem:[%s3 + $0x90] sm:$0xf] %vm1068, %v976
  %1106 = vst.msk [vmem:[%s3 + $0x94] sm:$0xf] %vm1068, %v977
  %1107 = vst.msk [vmem:[%s3 + $0x98] sm:$0xf] %vm1068, %v978
  %1108 = vst.msk [vmem:[%s3 + $0x9c] sm:$0xf] %vm1068, %v979
  %1109 = vst.msk [vmem:[%s3 + $0xa0] sm:$0xf] %vm1068, %v980
  %1110 = vst.msk [vmem:[%s3 + $0xa4] sm:$0xf] %vm1068, %v981
  %1111 = vst.msk [vmem:[%s3 + $0xa8] sm:$0xf] %vm1068, %v982
  %1112 = vst.msk [vmem:[%s3 + $0xac] sm:$0xf] %vm1068, %v983
  %1113 = vst.msk [vmem:[%s3 + $0xb0] sm:$0xf] %vm1068, %v984
  %1114 = vst.msk [vmem:[%s3 + $0xb4] sm:$0xf] %vm1068, %v985
  %1115 = vst.msk [vmem:[%s3 + $0xb8] sm:$0xf] %vm1068, %v986
  %1116 = vst.msk [vmem:[%s3 + $0xbc] sm:$0xf] %vm1068, %v987
  %1117 = vst.msk [vmem:[%s3 + $0xc0] sm:$0xf] %vm1068, %v988
  %1118 = vst.msk [vmem:[%s3 + $0xc4] sm:$0xf] %vm1068, %v989
  %1119 = vst.msk [vmem:[%s3 + $0xc8] sm:$0xf] %vm1068, %v990
  %1120 = vst.msk [vmem:[%s3 + $0xcc] sm:$0xf] %vm1068, %v991
  %1121 = vst.msk [vmem:[%s3 + $0xd0] sm:$0xf] %vm1068, %v992
  %1122 = vst.msk [vmem:[%s3 + $0xd4] sm:$0xf] %vm1068, %v993
  %1123 = vst.msk [vmem:[%s3 + $0xd8] sm:$0xf] %vm1068, %v994
  %1124 = vst.msk [vmem:[%s3 + $0xdc] sm:$0xf] %vm1068, %v995
  %1125 = vst.msk [vmem:[%s3 + $0xe0] sm:$0xf] %vm1068, %v996
  %1126 = vst.msk [vmem:[%s3 + $0xe4] sm:$0xf] %vm1068, %v997
  %1127 = vst.msk [vmem:[%s3 + $0xe8] sm:$0xf] %vm1068, %v998
  %1128 = vst.msk [vmem:[%s3 + $0xec] sm:$0xf] %vm1068, %v999
  %1129 = vst.msk [vmem:[%s3 + $0xf0] sm:$0xf] %vm1068, %v1000
  %1130 = vst.msk [vmem:[%s3 + $0xf4] sm:$0xf] %vm1068, %v1001
  %1131 = vst.msk [vmem:[%s3 + $0xf8] sm:$0xf] %vm1068, %v1002
  %1132 = vst.msk [vmem:[%s3 + $0xfc] sm:$0xf] %vm1068, %v1003
  // Predicated region
  $region14: #{basic_block_forward.5} parent=0 // pred_check
    _
  $region15: #{basic_block_forward.5} parent=0 // pred_check_branch
    %1134 = sbr.rel (0) target = $region17
  $region16: #{basic_block_forward.5} parent=0 // pred_region
    _
  $region17: #{basic_block_forward.5} parent=0 // pred_fallthru
    _
  // Predicated region
  $region18: #{basic_block_forward.5} parent=0 // pred_check
    _
  $region19: #{basic_block_forward.5} parent=0 // pred_check_branch
    %1136 = sbr.rel (0) target = $region21
  $region20: #{basic_block_forward.5} parent=0 // pred_region
    _
  $region21: #{basic_block_forward.5} parent=0 // pred_fallthru
    _

// kernel: basic_block_forward.7
$region0: #{basic_block_forward.7}
  #allocation0 [shape = 'u32[]', space=smem, size = 0x4, offset = 0x4, fixed_abs, tag = 'smem constant byte address 0x4 - core index']
  #allocation1 [shape = 'u32[144,128]{1,0:T(1,128)}', space=vmem, size = 0x12000, scoped, tag = 'internal scratch']
  %s0 = inlined_call_operand.vmem [shape: bf16[512,32], index: 0, kind: input, shape index: {}]
  %s1 = inlined_call_operand.vmem [shape: f32[1,32], index: 1, kind: input, shape index: {}]
  %s2 = inlined_call_operand.vmem [shape: f32[1,32], index: 2, kind: input, shape index: {}]
  %s3 = inlined_call_operand.vmem [shape: bf16[512,32], index: 3, kind: input, shape index: {}]
  %s4 = inlined_call_operand.hbm [shape: bf16[512,32], index: 4, kind: output, shape index: {}]
  %s5 = sld [smem:[#allocation0]]
  $region26: #{basic_block_forward.7} parent=0
    _
  %s7 = ssub.s32 1, %s5
  %s8 = scalar_select 0, %s7, %s5
  $region1: #{basic_block_forward.7} parent=0
    #allocation2 [shape = 'u8[131072]{0}', space=vmem, size = 0x20000, scoped, tag = 'output window, operand 0, single buffered']
    #allocation3 [shape = 's32[1]{0}', space=sflag, size = 0x4, scoped, tag = 'scoped memory for basic_block_forward.7']
    %9 = vsyncpa [#allocation3], 0
    // Predicated region
    $region2: #{basic_block_forward.7} parent=1 // pred_check
      _
    $region3: #{basic_block_forward.7} parent=1 // pred_check_branch
      %11 = sbr.rel (0) target = $region5
    $region4: #{basic_block_forward.7} parent=1 // pred_region
      _
    $region5: #{basic_block_forward.7} parent=1 // pred_fallthru
      _
    // Predicated region
    $region6: #{basic_block_forward.7} parent=1 // pred_check
      _
    $region7: #{basic_block_forward.7} parent=1 // pred_check_branch
      %13 = sbr.rel (0) target = $region9
    $region8: #{basic_block_forward.7} parent=1 // pred_region
      _
    $region9: #{basic_block_forward.7} parent=1 // pred_fallthru
      _
    // Predicated region
    $region10: #{basic_block_forward.7} parent=1 // pred_check
      _
    $region11: #{basic_block_forward.7} parent=1 // pred_check_branch
      %15 = sbr.rel (0) target = $region13
    $region12: #{basic_block_forward.7} parent=1 // pred_region
      _
    $region13: #{basic_block_forward.7} parent=1 // pred_fallthru
      _
    // Predicated region
    $region14: #{basic_block_forward.7} parent=1 // pred_check
      _
    $region15: #{basic_block_forward.7} parent=1 // pred_check_branch
      %17 = sbr.rel (0) target = $region17
    $region16: #{basic_block_forward.7} parent=1 // pred_region
      _
    $region17: #{basic_block_forward.7} parent=1 // pred_fallthru
      _
    %v18 = vld [vmem:[%s0] sm:$0xf]
    %v19 = vld [vmem:[%s0 + $0x4] sm:$0xf]
    %v20 = vld [vmem:[%s0 + $0x8] sm:$0xf]
    %v21 = vld [vmem:[%s0 + $0xc] sm:$0xf]
    %v22 = vld [vmem:[%s0 + $0x10] sm:$0xf]
    %v23 = vld [vmem:[%s0 + $0x14] sm:$0xf]
    %v24 = vld [vmem:[%s0 + $0x18] sm:$0xf]
    %v25 = vld [vmem:[%s0 + $0x1c] sm:$0xf]
    %v26 = vld [vmem:[%s0 + $0x20] sm:$0xf]
    %v27 = vld [vmem:[%s0 + $0x24] sm:$0xf]
    %v28 = vld [vmem:[%s0 + $0x28] sm:$0xf]
    %v29 = vld [vmem:[%s0 + $0x2c] sm:$0xf]
    %v30 = vld [vmem:[%s0 + $0x30] sm:$0xf]
    %v31 = vld [vmem:[%s0 + $0x34] sm:$0xf]
    %v32 = vld [vmem:[%s0 + $0x38] sm:$0xf]
    %v33 = vld [vmem:[%s0 + $0x3c] sm:$0xf]
    %v34 = vld [vmem:[%s0 + $0x40] sm:$0xf]
    %v35 = vld [vmem:[%s0 + $0x44] sm:$0xf]
    %v36 = vld [vmem:[%s0 + $0x48] sm:$0xf]
    %v37 = vld [vmem:[%s0 + $0x4c] sm:$0xf]
    %v38 = vld [vmem:[%s0 + $0x50] sm:$0xf]
    %v39 = vld [vmem:[%s0 + $0x54] sm:$0xf]
    %v40 = vld [vmem:[%s0 + $0x58] sm:$0xf]
    %v41 = vld [vmem:[%s0 + $0x5c] sm:$0xf]
    %v42 = vld [vmem:[%s0 + $0x60] sm:$0xf]
    %v43 = vld [vmem:[%s0 + $0x64] sm:$0xf]
    %v44 = vld [vmem:[%s0 + $0x68] sm:$0xf]
    %v45 = vld [vmem:[%s0 + $0x6c] sm:$0xf]
    %v46 = vld [vmem:[%s0 + $0x70] sm:$0xf]
    %v47 = vld [vmem:[%s0 + $0x74] sm:$0xf]
    %v48 = vld [vmem:[%s0 + $0x78] sm:$0xf]
    %v49 = vld [vmem:[%s0 + $0x7c] sm:$0xf]
    %v50 = vld [vmem:[%s0 + $0x80] sm:$0xf]
    %v51 = vld [vmem:[%s0 + $0x84] sm:$0xf]
    %v52 = vld [vmem:[%s0 + $0x88] sm:$0xf]
    %v53 = vld [vmem:[%s0 + $0x8c] sm:$0xf]
    %v54 = vld [vmem:[%s0 + $0x90] sm:$0xf]
    %v55 = vld [vmem:[%s0 + $0x94] sm:$0xf]
    %v56 = vld [vmem:[%s0 + $0x98] sm:$0xf]
    %v57 = vld [vmem:[%s0 + $0x9c] sm:$0xf]
    %v58 = vld [vmem:[%s0 + $0xa0] sm:$0xf]
    %v59 = vld [vmem:[%s0 + $0xa4] sm:$0xf]
    %v60 = vld [vmem:[%s0 + $0xa8] sm:$0xf]
    %v61 = vld [vmem:[%s0 + $0xac] sm:$0xf]
    %v62 = vld [vmem:[%s0 + $0xb0] sm:$0xf]
    %v63 = vld [vmem:[%s0 + $0xb4] sm:$0xf]
    %v64 = vld [vmem:[%s0 + $0xb8] sm:$0xf]
    %v65 = vld [vmem:[%s0 + $0xbc] sm:$0xf]
    %v66 = vld [vmem:[%s0 + $0xc0] sm:$0xf]
    %v67 = vld [vmem:[%s0 + $0xc4] sm:$0xf]
    %v68 = vld [vmem:[%s0 + $0xc8] sm:$0xf]
    %v69 = vld [vmem:[%s0 + $0xcc] sm:$0xf]
    %v70 = vld [vmem:[%s0 + $0xd0] sm:$0xf]
    %v71 = vld [vmem:[%s0 + $0xd4] sm:$0xf]
    %v72 = vld [vmem:[%s0 + $0xd8] sm:$0xf]
    %v73 = vld [vmem:[%s0 + $0xdc] sm:$0xf]
    %v74 = vld [vmem:[%s0 + $0xe0] sm:$0xf]
    %v75 = vld [vmem:[%s0 + $0xe4] sm:$0xf]
    %v76 = vld [vmem:[%s0 + $0xe8] sm:$0xf]
    %v77 = vld [vmem:[%s0 + $0xec] sm:$0xf]
    %v78 = vld [vmem:[%s0 + $0xf0] sm:$0xf]
    %v79 = vld [vmem:[%s0 + $0xf4] sm:$0xf]
    %v80 = vld [vmem:[%s0 + $0xf8] sm:$0xf]
    %v81 = vld [vmem:[%s0 + $0xfc] sm:$0xf]
    %v82 = vunpack.c.l.bf16 %v18
    %v83 = vunpack.c.l.bf16 %v19
    %v84 = vunpack.c.l.bf16 %v20
    %v85 = vunpack.c.l.bf16 %v21
    %v86 = vunpack.c.l.bf16 %v22
    %v87 = vunpack.c.l.bf16 %v23
    %v88 = vunpack.c.l.bf16 %v24
    %v89 = vunpack.c.l.bf16 %v25
    %v90 = vunpack.c.l.bf16 %v26
    %v91 = vunpack.c.l.bf16 %v27
    %v92 = vunpack.c.l.bf16 %v28
    %v93 = vunpack.c.l.bf16 %v29
    %v94 = vunpack.c.l.bf16 %v30
    %v95 = vunpack.c.l.bf16 %v31
    %v96 = vunpack.c.l.bf16 %v32
    %v97 = vunpack.c.l.bf16 %v33
    %v98 = vunpack.c.l.bf16 %v34
    %v99 = vunpack.c.l.bf16 %v35
    %v100 = vunpack.c.l.bf16 %v36
    %v101 = vunpack.c.l.bf16 %v37
    %v102 = vunpack.c.l.bf16 %v38
    %v103 = vunpack.c.l.bf16 %v39
    %v104 = vunpack.c.l.bf16 %v40
    %v105 = vunpack.c.l.bf16 %v41
    %v106 = vunpack.c.l.bf16 %v42
    %v107 = vunpack.c.l.bf16 %v43
    %v108 = vunpack.c.l.bf16 %v44
    %v109 = vunpack.c.l.bf16 %v45
    %v110 = vunpack.c.l.bf16 %v46
    %v111 = vunpack.c.l.bf16 %v47
    %v112 = vunpack.c.l.bf16 %v48
    %v113 = vunpack.c.l.bf16 %v49
    %v114 = vunpack.c.l.bf16 %v50
    %v115 = vunpack.c.l.bf16 %v51
    %v116 = vunpack.c.l.bf16 %v52
    %v117 = vunpack.c.l.bf16 %v53
    %v118 = vunpack.c.l.bf16 %v54
    %v119 = vunpack.c.l.bf16 %v55
    %v120 = vunpack.c.l.bf16 %v56
    %v121 = vunpack.c.l.bf16 %v57
    %v122 = vunpack.c.l.bf16 %v58
    %v123 = vunpack.c.l.bf16 %v59
    %v124 = vunpack.c.l.bf16 %v60
    %v125 = vunpack.c.l.bf16 %v61
    %v126 = vunpack.c.l.bf16 %v62
    %v127 = vunpack.c.l.bf16 %v63
    %v128 = vunpack.c.l.bf16 %v64
    %v129 = vunpack.c.l.bf16 %v65
    %v130 = vunpack.c.l.bf16 %v66
    %v131 = vunpack.c.l.bf16 %v67
    %v132 = vunpack.c.l.bf16 %v68
    %v133 = vunpack.c.l.bf16 %v69
    %v134 = vunpack.c.l.bf16 %v70
    %v135 = vunpack.c.l.bf16 %v71
    %v136 = vunpack.c.l.bf16 %v72
    %v137 = vunpack.c.l.bf16 %v73
    %v138 = vunpack.c.l.bf16 %v74
    %v139 = vunpack.c.l.bf16 %v75
    %v140 = vunpack.c.l.bf16 %v76
    %v141 = vunpack.c.l.bf16 %v77
    %v142 = vunpack.c.l.bf16 %v78
    %v143 = vunpack.c.l.bf16 %v79
    %v144 = vunpack.c.l.bf16 %v80
    %v145 = vunpack.c.l.bf16 %v81
    %vm146 = vcmask 261120
    %v147 = vsel %vm146, %v82, 0.0
    %v148 = vsel %vm146, %v83, 0.0
    %v149 = vadd.f32 %v147, %v148
    %v150 = vsel %vm146, %v84, 0.0
    %v151 = vadd.f32 %v149, %v150
    %v152 = vsel %vm146, %v85, 0.0
    %v153 = vadd.f32 %v151, %v152
    %v154 = vsel %vm146, %v86, 0.0
    %v155 = vadd.f32 %v153, %v154
    %v156 = vsel %vm146, %v87, 0.0
    %v157 = vadd.f32 %v155, %v156
    %v158 = vsel %vm146, %v88, 0.0
    %v159 = vadd.f32 %v157, %v158
    %v160 = vsel %vm146, %v89, 0.0
    %v161 = vadd.f32 %v159, %v160
    %v162 = vsel %vm146, %v90, 0.0
    %v163 = vadd.f32 %v161, %v162
    %v164 = vsel %vm146, %v91, 0.0
    %v165 = vadd.f32 %v163, %v164
    %v166 = vsel %vm146, %v92, 0.0
    %v167 = vadd.f32 %v165, %v166
    %v168 = vsel %vm146, %v93, 0.0
    %v169 = vadd.f32 %v167, %v168
    %v170 = vsel %vm146, %v94, 0.0
    %v171 = vadd.f32 %v169, %v170
    %v172 = vsel %vm146, %v95, 0.0
    %v173 = vadd.f32 %v171, %v172
    %v174 = vsel %vm146, %v96, 0.0
    %v175 = vadd.f32 %v173, %v174
    %v176 = vsel %vm146, %v97, 0.0
    %v177 = vadd.f32 %v175, %v176
    %v178 = vsel %vm146, %v98, 0.0
    %v179 = vadd.f32 %v177, %v178
    %v180 = vsel %vm146, %v99, 0.0
    %v181 = vadd.f32 %v179, %v180
    %v182 = vsel %vm146, %v100, 0.0
    %v183 = vadd.f32 %v181, %v182
    %v184 = vsel %vm146, %v101, 0.0
    %v185 = vadd.f32 %v183, %v184
    %v186 = vsel %vm146, %v102, 0.0
    %v187 = vadd.f32 %v185, %v186
    %v188 = vsel %vm146, %v103, 0.0
    %v189 = vadd.f32 %v187, %v188
    %v190 = vsel %vm146, %v104, 0.0
    %v191 = vadd.f32 %v189, %v190
    %v192 = vsel %vm146, %v105, 0.0
    %v193 = vadd.f32 %v191, %v192
    %v194 = vsel %vm146, %v106, 0.0
    %v195 = vadd.f32 %v193, %v194
    %v196 = vsel %vm146, %v107, 0.0
    %v197 = vadd.f32 %v195, %v196
    %v198 = vsel %vm146, %v108, 0.0
    %v199 = vadd.f32 %v197, %v198
    %v200 = vsel %vm146, %v109, 0.0
    %v201 = vadd.f32 %v199, %v200
    %v202 = vsel %vm146, %v110, 0.0
    %v203 = vadd.f32 %v201, %v202
    %v204 = vsel %vm146, %v111, 0.0
    %v205 = vadd.f32 %v203, %v204
    %v206 = vsel %vm146, %v112, 0.0
    %v207 = vadd.f32 %v205, %v206
    %v208 = vsel %vm146, %v113, 0.0
    %v209 = vadd.f32 %v207, %v208
    %v210 = vsel %vm146, %v114, 0.0
    %v211 = vadd.f32 %v209, %v210
    %v212 = vsel %vm146, %v115, 0.0
    %v213 = vadd.f32 %v211, %v212
    %v214 = vsel %vm146, %v116, 0.0
    %v215 = vadd.f32 %v213, %v214
    %v216 = vsel %vm146, %v117, 0.0
    %v217 = vadd.f32 %v215, %v216
    %v218 = vsel %vm146, %v118, 0.0
    %v219 = vadd.f32 %v217, %v218
    %v220 = vsel %vm146, %v119, 0.0
    %v221 = vadd.f32 %v219, %v220
    %v222 = vsel %vm146, %v120, 0.0
    %v223 = vadd.f32 %v221, %v222
    %v224 = vsel %vm146, %v121, 0.0
    %v225 = vadd.f32 %v223, %v224
    %v226 = vsel %vm146, %v122, 0.0
    %v227 = vadd.f32 %v225, %v226
    %v228 = vsel %vm146, %v123, 0.0
    %v229 = vadd.f32 %v227, %v228
    %v230 = vsel %vm146, %v124, 0.0
    %v231 = vadd.f32 %v229, %v230
    %v232 = vsel %vm146, %v125, 0.0
    %v233 = vadd.f32 %v231, %v232
    %v234 = vsel %vm146, %v126, 0.0
    %v235 = vadd.f32 %v233, %v234
    %v236 = vsel %vm146, %v127, 0.0
    %v237 = vadd.f32 %v235, %v236
    %v238 = vsel %vm146, %v128, 0.0
    %v239 = vadd.f32 %v237, %v238
    %v240 = vsel %vm146, %v129, 0.0
    %v241 = vadd.f32 %v239, %v240
    %v242 = vsel %vm146, %v130, 0.0
    %v243 = vadd.f32 %v241, %v242
    %v244 = vsel %vm146, %v131, 0.0
    %v245 = vadd.f32 %v243, %v244
    %v246 = vsel %vm146, %v132, 0.0
    %v247 = vadd.f32 %v245, %v246
    %v248 = vsel %vm146, %v133, 0.0
    %v249 = vadd.f32 %v247, %v248
    %v250 = vsel %vm146, %v134, 0.0
    %v251 = vadd.f32 %v249, %v250
    %v252 = vsel %vm146, %v135, 0.0
    %v253 = vadd.f32 %v251, %v252
    %v254 = vsel %vm146, %v136, 0.0
    %v255 = vadd.f32 %v253, %v254
    %v256 = vsel %vm146, %v137, 0.0
    %v257 = vadd.f32 %v255, %v256
    %v258 = vsel %vm146, %v138, 0.0
    %v259 = vadd.f32 %v257, %v258
    %v260 = vsel %vm146, %v139, 0.0
    %v261 = vadd.f32 %v259, %v260
    %v262 = vsel %vm146, %v140, 0.0
    %v263 = vadd.f32 %v261, %v262
    %v264 = vsel %vm146, %v141, 0.0
    %v265 = vadd.f32 %v263, %v264
    %v266 = vsel %vm146, %v142, 0.0
    %v267 = vadd.f32 %v265, %v266
    %v268 = vsel %vm146, %v143, 0.0
    %v269 = vadd.f32 %v267, %v268
    %v270 = vsel %vm146, %v144, 0.0
    %v271 = vadd.f32 %v269, %v270
    %v272 = vsel %vm146, %v145, 0.0
    %v273 = vadd.f32 %v271, %v272
    %v274 = vrot.slane %v273, 4
    %v275 = vadd.f32 %v273, %v274
    %v276 = vrot.slane %v275, 2
    %v277 = vadd.f32 %v275, %v276
    %v278 = vrot.slane %v277, 1
    %v279 = vadd.f32 %v277, %v278
    %v280 = vrcp.pop 512.0
    %v281 = vmul.f32 %v279, %v280
    %v282 = vsub.f32 %v82, %v281
    %v283 = vsub.f32 %v83, %v281
    %v284 = vsub.f32 %v84, %v281
    %v285 = vsub.f32 %v85, %v281
    %v286 = vsub.f32 %v86, %v281
    %v287 = vsub.f32 %v87, %v281
    %v288 = vsub.f32 %v88, %v281
    %v289 = vsub.f32 %v89, %v281
    %v290 = vsub.f32 %v90, %v281
    %v291 = vsub.f32 %v91, %v281
    %v292 = vsub.f32 %v92, %v281
    %v293 = vsub.f32 %v93, %v281
    %v294 = vsub.f32 %v94, %v281
    %v295 = vsub.f32 %v95, %v281
    %v296 = vsub.f32 %v96, %v281
    %v297 = vsub.f32 %v97, %v281
    %v298 = vsub.f32 %v98, %v281
    %v299 = vsub.f32 %v99, %v281
    %v300 = vsub.f32 %v100, %v281
    %v301 = vsub.f32 %v101, %v281
    %v302 = vsub.f32 %v102, %v281
    %v303 = vsub.f32 %v103, %v281
    %v304 = vsub.f32 %v104, %v281
    %v305 = vsub.f32 %v105, %v281
    %v306 = vsub.f32 %v106, %v281
    %v307 = vsub.f32 %v107, %v281
    %v308 = vsub.f32 %v108, %v281
    %v309 = vsub.f32 %v109, %v281
    %v310 = vsub.f32 %v110, %v281
    %v311 = vsub.f32 %v111, %v281
    %v312 = vsub.f32 %v112, %v281
    %v313 = vsub.f32 %v113, %v281
    %v314 = vsub.f32 %v114, %v281
    %v315 = vsub.f32 %v115, %v281
    %v316 = vsub.f32 %v116, %v281
    %v317 = vsub.f32 %v117, %v281
    %v318 = vsub.f32 %v118, %v281
    %v319 = vsub.f32 %v119, %v281
    %v320 = vsub.f32 %v120, %v281
    %v321 = vsub.f32 %v121, %v281
    %v322 = vsub.f32 %v122, %v281
    %v323 = vsub.f32 %v123, %v281
    %v324 = vsub.f32 %v124, %v281
    %v325 = vsub.f32 %v125, %v281
    %v326 = vsub.f32 %v126, %v281
    %v327 = vsub.f32 %v127, %v281
    %v328 = vsub.f32 %v128, %v281
    %v329 = vsub.f32 %v129, %v281
    %v330 = vsub.f32 %v130, %v281
    %v331 = vsub.f32 %v131, %v281
    %v332 = vsub.f32 %v132, %v281
    %v333 = vsub.f32 %v133, %v281
    %v334 = vsub.f32 %v134, %v281
    %v335 = vsub.f32 %v135, %v281
    %v336 = vsub.f32 %v136, %v281
    %v337 = vsub.f32 %v137, %v281
    %v338 = vsub.f32 %v138, %v281
    %v339 = vsub.f32 %v139, %v281
    %v340 = vsub.f32 %v140, %v281
    %v341 = vsub.f32 %v141, %v281
    %v342 = vsub.f32 %v142, %v281
    %v343 = vsub.f32 %v143, %v281
    %v344 = vsub.f32 %v144, %v281
    %v345 = vsub.f32 %v145, %v281
    %v346 = vmul.f32 %v282, %v282
    %v347 = vmul.f32 %v283, %v283
    %v348 = vmul.f32 %v284, %v284
    %v349 = vmul.f32 %v285, %v285
    %v350 = vmul.f32 %v286, %v286
    %v351 = vmul.f32 %v287, %v287
    %v352 = vmul.f32 %v288, %v288
    %v353 = vmul.f32 %v289, %v289
    %v354 = vmul.f32 %v290, %v290
    %v355 = vmul.f32 %v291, %v291
    %v356 = vmul.f32 %v292, %v292
    %v357 = vmul.f32 %v293, %v293
    %v358 = vmul.f32 %v294, %v294
    %v359 = vmul.f32 %v295, %v295
    %v360 = vmul.f32 %v296, %v296
    %v361 = vmul.f32 %v297, %v297
    %v362 = vmul.f32 %v298, %v298
    %v363 = vmul.f32 %v299, %v299
    %v364 = vmul.f32 %v300, %v300
    %v365 = vmul.f32 %v301, %v301
    %v366 = vmul.f32 %v302, %v302
    %v367 = vmul.f32 %v303, %v303
    %v368 = vmul.f32 %v304, %v304
    %v369 = vmul.f32 %v305, %v305
    %v370 = vmul.f32 %v306, %v306
    %v371 = vmul.f32 %v307, %v307
    %v372 = vmul.f32 %v308, %v308
    %v373 = vmul.f32 %v309, %v309
    %v374 = vmul.f32 %v310, %v310
    %v375 = vmul.f32 %v311, %v311
    %v376 = vmul.f32 %v312, %v312
    %v377 = vmul.f32 %v313, %v313
    %v378 = vmul.f32 %v314, %v314
    %v379 = vmul.f32 %v315, %v315
    %v380 = vmul.f32 %v316, %v316
    %v381 = vmul.f32 %v317, %v317
    %v382 = vmul.f32 %v318, %v318
    %v383 = vmul.f32 %v319, %v319
    %v384 = vmul.f32 %v320, %v320
    %v385 = vmul.f32 %v321, %v321
    %v386 = vmul.f32 %v322, %v322
    %v387 = vmul.f32 %v323, %v323
    %v388 = vmul.f32 %v324, %v324
    %v389 = vmul.f32 %v325, %v325
    %v390 = vmul.f32 %v326, %v326
    %v391 = vmul.f32 %v327, %v327
    %v392 = vmul.f32 %v328, %v328
    %v393 = vmul.f32 %v329, %v329
    %v394 = vmul.f32 %v330, %v330
    %v395 = vmul.f32 %v331, %v331
    %v396 = vmul.f32 %v332, %v332
    %v397 = vmul.f32 %v333, %v333
    %v398 = vmul.f32 %v334, %v334
    %v399 = vmul.f32 %v335, %v335
    %v400 = vmul.f32 %v336, %v336
    %v401 = vmul.f32 %v337, %v337
    %v402 = vmul.f32 %v338, %v338
    %v403 = vmul.f32 %v339, %v339
    %v404 = vmul.f32 %v340, %v340
    %v405 = vmul.f32 %v341, %v341
    %v406 = vmul.f32 %v342, %v342
    %v407 = vmul.f32 %v343, %v343
    %v408 = vmul.f32 %v344, %v344
    %v409 = vmul.f32 %v345, %v345
    %v410 = vsel %vm146, %v346, 0.0
    %v411 = vsel %vm146, %v347, 0.0
    %v412 = vadd.f32 %v410, %v411
    %v413 = vsel %vm146, %v348, 0.0
    %v414 = vadd.f32 %v412, %v413
    %v415 = vsel %vm146, %v349, 0.0
    %v416 = vadd.f32 %v414, %v415
    %v417 = vsel %vm146, %v350, 0.0
    %v418 = vadd.f32 %v416, %v417
    %v419 = vsel %vm146, %v351, 0.0
    %v420 = vadd.f32 %v418, %v419
    %v421 = vsel %vm146, %v352, 0.0
    %v422 = vadd.f32 %v420, %v421
    %v423 = vsel %vm146, %v353, 0.0
    %v424 = vadd.f32 %v422, %v423
    %v425 = vsel %vm146, %v354, 0.0
    %v426 = vadd.f32 %v424, %v425
    %v427 = vsel %vm146, %v355, 0.0
    %v428 = vadd.f32 %v426, %v427
    %v429 = vsel %vm146, %v356, 0.0
    %v430 = vadd.f32 %v428, %v429
    %v431 = vsel %vm146, %v357, 0.0
    %v432 = vadd.f32 %v430, %v431
    %v433 = vsel %vm146, %v358, 0.0
    %v434 = vadd.f32 %v432, %v433
    %v435 = vsel %vm146, %v359, 0.0
    %v436 = vadd.f32 %v434, %v435
    %v437 = vsel %vm146, %v360, 0.0
    %v438 = vadd.f32 %v436, %v437
    %v439 = vsel %vm146, %v361, 0.0
    %v440 = vadd.f32 %v438, %v439
    %v441 = vsel %vm146, %v362, 0.0
    %v442 = vadd.f32 %v440, %v441
    %v443 = vsel %vm146, %v363, 0.0
    %v444 = vadd.f32 %v442, %v443
    %v445 = vsel %vm146, %v364, 0.0
    %v446 = vadd.f32 %v444, %v445
    %v447 = vsel %vm146, %v365, 0.0
    %v448 = vadd.f32 %v446, %v447
    %v449 = vsel %vm146, %v366, 0.0
    %v450 = vadd.f32 %v448, %v449
    %v451 = vsel %vm146, %v367, 0.0
    %v452 = vadd.f32 %v450, %v451
    %v453 = vsel %vm146, %v368, 0.0
    %v454 = vadd.f32 %v452, %v453
    %v455 = vsel %vm146, %v369, 0.0
    %v456 = vadd.f32 %v454, %v455
    %v457 = vsel %vm146, %v370, 0.0
    %v458 = vadd.f32 %v456, %v457
    %v459 = vsel %vm146, %v371, 0.0
    %v460 = vadd.f32 %v458, %v459
    %v461 = vsel %vm146, %v372, 0.0
    %v462 = vadd.f32 %v460, %v461
    %v463 = vsel %vm146, %v373, 0.0
    %v464 = vadd.f32 %v462, %v463
    %v465 = vsel %vm146, %v374, 0.0
    %v466 = vadd.f32 %v464, %v465
    %v467 = vsel %vm146, %v375, 0.0
    %v468 = vadd.f32 %v466, %v467
    %v469 = vsel %vm146, %v376, 0.0
    %v470 = vadd.f32 %v468, %v469
    %v471 = vsel %vm146, %v377, 0.0
    %v472 = vadd.f32 %v470, %v471
    %v473 = vsel %vm146, %v378, 0.0
    %v474 = vadd.f32 %v472, %v473
    %v475 = vsel %vm146, %v379, 0.0
    %v476 = vadd.f32 %v474, %v475
    %v477 = vsel %vm146, %v380, 0.0
    %v478 = vadd.f32 %v476, %v477
    %v479 = vsel %vm146, %v381, 0.0
    %v480 = vadd.f32 %v478, %v479
    %v481 = vsel %vm146, %v382, 0.0
    %v482 = vadd.f32 %v480, %v481
    %v483 = vsel %vm146, %v383, 0.0
    %v484 = vadd.f32 %v482, %v483
    %v485 = vsel %vm146, %v384, 0.0
    %v486 = vadd.f32 %v484, %v485
    %v487 = vsel %vm146, %v385, 0.0
    %v488 = vadd.f32 %v486, %v487
    %v489 = vsel %vm146, %v386, 0.0
    %v490 = vadd.f32 %v488, %v489
    %v491 = vsel %vm146, %v387, 0.0
    %v492 = vadd.f32 %v490, %v491
    %v493 = vsel %vm146, %v388, 0.0
    %v494 = vadd.f32 %v492, %v493
    %v495 = vsel %vm146, %v389, 0.0
    %v496 = vadd.f32 %v494, %v495
    %v497 = vsel %vm146, %v390, 0.0
    %v498 = vadd.f32 %v496, %v497
    %v499 = vsel %vm146, %v391, 0.0
    %v500 = vadd.f32 %v498, %v499
    %v501 = vsel %vm146, %v392, 0.0
    %v502 = vadd.f32 %v500, %v501
    %v503 = vsel %vm146, %v393, 0.0
    %v504 = vadd.f32 %v502, %v503
    %v505 = vsel %vm146, %v394, 0.0
    %v506 = vadd.f32 %v504, %v505
    %v507 = vsel %vm146, %v395, 0.0
    %v508 = vadd.f32 %v506, %v507
    %v509 = vsel %vm146, %v396, 0.0
    %v510 = vadd.f32 %v508, %v509
    %v511 = vsel %vm146, %v397, 0.0
    %v512 = vadd.f32 %v510, %v511
    %v513 = vsel %vm146, %v398, 0.0
    %v514 = vadd.f32 %v512, %v513
    %v515 = vsel %vm146, %v399, 0.0
    %v516 = vadd.f32 %v514, %v515
    %v517 = vsel %vm146, %v400, 0.0
    %v518 = vadd.f32 %v516, %v517
    %v519 = vsel %vm146, %v401, 0.0
    %v520 = vadd.f32 %v518, %v519
    %v521 = vsel %vm146, %v402, 0.0
    %v522 = vadd.f32 %v520, %v521
    %v523 = vsel %vm146, %v403, 0.0
    %v524 = vadd.f32 %v522, %v523
    %v525 = vsel %vm146, %v404, 0.0
    %v526 = vadd.f32 %v524, %v525
    %v527 = vsel %vm146, %v405, 0.0
    %v528 = vadd.f32 %v526, %v527
    %v529 = vsel %vm146, %v406, 0.0
    %v530 = vadd.f32 %v528, %v529
    %v531 = vsel %vm146, %v407, 0.0
    %v532 = vadd.f32 %v530, %v531
    %v533 = vsel %vm146, %v408, 0.0
    %v534 = vadd.f32 %v532, %v533
    %v535 = vsel %vm146, %v409, 0.0
    %v536 = vadd.f32 %v534, %v535
    %v537 = vrot.slane %v536, 4
    %v538 = vadd.f32 %v536, %v537
    %v539 = vrot.slane %v538, 2
    %v540 = vadd.f32 %v538, %v539
    %v541 = vrot.slane %v540, 1
    %v542 = vadd.f32 %v540, %v541
    %v543 = vmul.f32 %v542, %v280
    %v544 = vadd.f32 %v543, 1e-05
    %v545 = vrsqrt.pop %v544
    %v546 = vmul.f32 %v282, %v545
    %v547 = vmul.f32 %v283, %v545
    %v548 = vmul.f32 %v284, %v545
    %v549 = vmul.f32 %v285, %v545
    %v550 = vmul.f32 %v286, %v545
    %v551 = vmul.f32 %v287, %v545
    %v552 = vmul.f32 %v288, %v545
    %v553 = vmul.f32 %v289, %v545
    %v554 = vmul.f32 %v290, %v545
    %v555 = vmul.f32 %v291, %v545
    %v556 = vmul.f32 %v292, %v545
    %v557 = vmul.f32 %v293, %v545
    %v558 = vmul.f32 %v294, %v545
    %v559 = vmul.f32 %v295, %v545
    %v560 = vmul.f32 %v296, %v545
    %v561 = vmul.f32 %v297, %v545
    %v562 = vmul.f32 %v298, %v545
    %v563 = vmul.f32 %v299, %v545
    %v564 = vmul.f32 %v300, %v545
    %v565 = vmul.f32 %v301, %v545
    %v566 = vmul.f32 %v302, %v545
    %v567 = vmul.f32 %v303, %v545
    %v568 = vmul.f32 %v304, %v545
    %v569 = vmul.f32 %v305, %v545
    %v570 = vmul.f32 %v306, %v545
    %v571 = vmul.f32 %v307, %v545
    %v572 = vmul.f32 %v308, %v545
    %v573 = vmul.f32 %v309, %v545
    %v574 = vmul.f32 %v310, %v545
    %v575 = vmul.f32 %v311, %v545
    %v576 = vmul.f32 %v312, %v545
    %v577 = vmul.f32 %v313, %v545
    %v578 = vmul.f32 %v314, %v545
    %v579 = vmul.f32 %v315, %v545
    %v580 = vmul.f32 %v316, %v545
    %v581 = vmul.f32 %v317, %v545
    %v582 = vmul.f32 %v318, %v545
    %v583 = vmul.f32 %v319, %v545
    %v584 = vmul.f32 %v320, %v545
    %v585 = vmul.f32 %v321, %v545
    %v586 = vmul.f32 %v322, %v545
    %v587 = vmul.f32 %v323, %v545
    %v588 = vmul.f32 %v324, %v545
    %v589 = vmul.f32 %v325, %v545
    %v590 = vmul.f32 %v326, %v545
    %v591 = vmul.f32 %v327, %v545
    %v592 = vmul.f32 %v328, %v545
    %v593 = vmul.f32 %v329, %v545
    %v594 = vmul.f32 %v330, %v545
    %v595 = vmul.f32 %v331, %v545
    %v596 = vmul.f32 %v332, %v545
    %v597 = vmul.f32 %v333, %v545
    %v598 = vmul.f32 %v334, %v545
    %v599 = vmul.f32 %v335, %v545
    %v600 = vmul.f32 %v336, %v545
    %v601 = vmul.f32 %v337, %v545
    %v602 = vmul.f32 %v338, %v545
    %v603 = vmul.f32 %v339, %v545
    %v604 = vmul.f32 %v340, %v545
    %v605 = vmul.f32 %v341, %v545
    %v606 = vmul.f32 %v342, %v545
    %v607 = vmul.f32 %v343, %v545
    %v608 = vmul.f32 %v344, %v545
    %v609 = vmul.f32 %v345, %v545
    %v610 = vld [vmem:[%s1] sm:$0x1]
    %v612 = vlaneseq
    %v613 = vshrl.u32 %v612, 7
    %v614 = vsub.s32 0, %v613
    %v615 = vrot.slane %v610, %v614
    %v617 = vmul.f32 %v546, %v615
    %v618 = vmul.f32 %v547, %v615
    %v619 = vmul.f32 %v548, %v615
    %v620 = vmul.f32 %v549, %v615
    %v621 = vmul.f32 %v550, %v615
    %v622 = vmul.f32 %v551, %v615
    %v623 = vmul.f32 %v552, %v615
    %v624 = vmul.f32 %v553, %v615
    %v625 = vmul.f32 %v554, %v615
    %v626 = vmul.f32 %v555, %v615
    %v627 = vmul.f32 %v556, %v615
    %v628 = vmul.f32 %v557, %v615
    %v629 = vmul.f32 %v558, %v615
    %v630 = vmul.f32 %v559, %v615
    %v631 = vmul.f32 %v560, %v615
    %v632 = vmul.f32 %v561, %v615
    %v633 = vmul.f32 %v562, %v615
    %v634 = vmul.f32 %v563, %v615
    %v635 = vmul.f32 %v564, %v615
    %v636 = vmul.f32 %v565, %v615
    %v637 = vmul.f32 %v566, %v615
    %v638 = vmul.f32 %v567, %v615
    %v639 = vmul.f32 %v568, %v615
    %v640 = vmul.f32 %v569, %v615
    %v641 = vmul.f32 %v570, %v615
    %v642 = vmul.f32 %v571, %v615
    %v643 = vmul.f32 %v572, %v615
    %v644 = vmul.f32 %v573, %v615
    %v645 = vmul.f32 %v574, %v615
    %v646 = vmul.f32 %v575, %v615
    %v647 = vmul.f32 %v576, %v615
    %v648 = vmul.f32 %v577, %v615
    %v649 = vmul.f32 %v578, %v615
    %v650 = vmul.f32 %v579, %v615
    %v651 = vmul.f32 %v580, %v615
    %v652 = vmul.f32 %v581, %v615
    %v653 = vmul.f32 %v582, %v615
    %v654 = vmul.f32 %v583, %v615
    %v655 = vmul.f32 %v584, %v615
    %v656 = vmul.f32 %v585, %v615
    %v657 = vmul.f32 %v586, %v615
    %v658 = vmul.f32 %v587, %v615
    %v659 = vmul.f32 %v588, %v615
    %v660 = vmul.f32 %v589, %v615
    %v661 = vmul.f32 %v590, %v615
    %v662 = vmul.f32 %v591, %v615
    %v663 = vmul.f32 %v592, %v615
    %v664 = vmul.f32 %v593, %v615
    %v665 = vmul.f32 %v594, %v615
    %v666 = vmul.f32 %v595, %v615
    %v667 = vmul.f32 %v596, %v615
    %v668 = vmul.f32 %v597, %v615
    %v669 = vmul.f32 %v598, %v615
    %v670 = vmul.f32 %v599, %v615
    %v671 = vmul.f32 %v600, %v615
    %v672 = vmul.f32 %v601, %v615
    %v673 = vmul.f32 %v602, %v615
    %v674 = vmul.f32 %v603, %v615
    %v675 = vmul.f32 %v604, %v615
    %v676 = vmul.f32 %v605, %v615
    %v677 = vmul.f32 %v606, %v615
    %v678 = vmul.f32 %v607, %v615
    %v679 = vmul.f32 %v608, %v615
    %v680 = vmul.f32 %v609, %v615
    %v681 = vld [vmem:[%s2] sm:$0x1]
    %v683 = vlaneseq
    %v684 = vshrl.u32 %v683, 7
    %v685 = vsub.s32 0, %v684
    %v686 = vrot.slane %v681, %v685
    %v688 = vadd.f32 %v617, %v686
    %v689 = vadd.f32 %v618, %v686
    %v690 = vadd.f32 %v619, %v686
    %v691 = vadd.f32 %v620, %v686
    %v692 = vadd.f32 %v621, %v686
    %v693 = vadd.f32 %v622, %v686
    %v694 = vadd.f32 %v623, %v686
    %v695 = vadd.f32 %v624, %v686
    %v696 = vadd.f32 %v625, %v686
    %v697 = vadd.f32 %v626, %v686
    %v698 = vadd.f32 %v627, %v686
    %v699 = vadd.f32 %v628, %v686
    %v700 = vadd.f32 %v629, %v686
    %v701 = vadd.f32 %v630, %v686
    %v702 = vadd.f32 %v631, %v686
    %v703 = vadd.f32 %v632, %v686
    %v704 = vadd.f32 %v633, %v686
    %v705 = vadd.f32 %v634, %v686
    %v706 = vadd.f32 %v635, %v686
    %v707 = vadd.f32 %v636, %v686
    %v708 = vadd.f32 %v637, %v686
    %v709 = vadd.f32 %v638, %v686
    %v710 = vadd.f32 %v639, %v686
    %v711 = vadd.f32 %v640, %v686
    %v712 = vadd.f32 %v641, %v686
    %v713 = vadd.f32 %v642, %v686
    %v714 = vadd.f32 %v643, %v686
    %v715 = vadd.f32 %v644, %v686
    %v716 = vadd.f32 %v645, %v686
    %v717 = vadd.f32 %v646, %v686
    %v718 = vadd.f32 %v647, %v686
    %v719 = vadd.f32 %v648, %v686
    %v720 = vadd.f32 %v649, %v686
    %v721 = vadd.f32 %v650, %v686
    %v722 = vadd.f32 %v651, %v686
    %v723 = vadd.f32 %v652, %v686
    %v724 = vadd.f32 %v653, %v686
    %v725 = vadd.f32 %v654, %v686
    %v726 = vadd.f32 %v655, %v686
    %v727 = vadd.f32 %v656, %v686
    %v728 = vadd.f32 %v657, %v686
    %v729 = vadd.f32 %v658, %v686
    %v730 = vadd.f32 %v659, %v686
    %v731 = vadd.f32 %v660, %v686
    %v732 = vadd.f32 %v661, %v686
    %v733 = vadd.f32 %v662, %v686
    %v734 = vadd.f32 %v663, %v686
    %v735 = vadd.f32 %v664, %v686
    %v736 = vadd.f32 %v665, %v686
    %v737 = vadd.f32 %v666, %v686
    %v738 = vadd.f32 %v667, %v686
    %v739 = vadd.f32 %v668, %v686
    %v740 = vadd.f32 %v669, %v686
    %v741 = vadd.f32 %v670, %v686
    %v742 = vadd.f32 %v671, %v686
    %v743 = vadd.f32 %v672, %v686
    %v744 = vadd.f32 %v673, %v686
    %v745 = vadd.f32 %v674, %v686
    %v746 = vadd.f32 %v675, %v686
    %v747 = vadd.f32 %v676, %v686
    %v748 = vadd.f32 %v677, %v686
    %v749 = vadd.f32 %v678, %v686
    %v750 = vadd.f32 %v679, %v686
    %v751 = vadd.f32 %v680, %v686
    %v752 = vld [vmem:[%s3] sm:$0xf]
    %v753 = vld [vmem:[%s3 + $0x4] sm:$0xf]
    %v754 = vld [vmem:[%s3 + $0x8] sm:$0xf]
    %v755 = vld [vmem:[%s3 + $0xc] sm:$0xf]
    %v756 = vld [vmem:[%s3 + $0x10] sm:$0xf]
    %v757 = vld [vmem:[%s3 + $0x14] sm:$0xf]
    %v758 = vld [vmem:[%s3 + $0x18] sm:$0xf]
    %v759 = vld [vmem:[%s3 + $0x1c] sm:$0xf]
    %v760 = vld [vmem:[%s3 + $0x20] sm:$0xf]
    %v761 = vld [vmem:[%s3 + $0x24] sm:$0xf]
    %v762 = vld [vmem:[%s3 + $0x28] sm:$0xf]
    %v763 = vld [vmem:[%s3 + $0x2c] sm:$0xf]
    %v764 = vld [vmem:[%s3 + $0x30] sm:$0xf]
    %v765 = vld [vmem:[%s3 + $0x34] sm:$0xf]
    %v766 = vld [vmem:[%s3 + $0x38] sm:$0xf]
    %v767 = vld [vmem:[%s3 + $0x3c] sm:$0xf]
    %v768 = vld [vmem:[%s3 + $0x40] sm:$0xf]
    %v769 = vld [vmem:[%s3 + $0x44] sm:$0xf]
    %v770 = vld [vmem:[%s3 + $0x48] sm:$0xf]
    %v771 = vld [vmem:[%s3 + $0x4c] sm:$0xf]
    %v772 = vld [vmem:[%s3 + $0x50] sm:$0xf]
    %v773 = vld [vmem:[%s3 + $0x54] sm:$0xf]
    %v774 = vld [vmem:[%s3 + $0x58] sm:$0xf]
    %v775 = vld [vmem:[%s3 + $0x5c] sm:$0xf]
    %v776 = vld [vmem:[%s3 + $0x60] sm:$0xf]
    %v777 = vld [vmem:[%s3 + $0x64] sm:$0xf]
    %v778 = vld [vmem:[%s3 + $0x68] sm:$0xf]
    %v779 = vld [vmem:[%s3 + $0x6c] sm:$0xf]
    %v780 = vld [vmem:[%s3 + $0x70] sm:$0xf]
    %v781 = vld [vmem:[%s3 + $0x74] sm:$0xf]
    %v782 = vld [vmem:[%s3 + $0x78] sm:$0xf]
    %v783 = vld [vmem:[%s3 + $0x7c] sm:$0xf]
    %v784 = vld [vmem:[%s3 + $0x80] sm:$0xf]
    %v785 = vld [vmem:[%s3 + $0x84] sm:$0xf]
    %v786 = vld [vmem:[%s3 + $0x88] sm:$0xf]
    %v787 = vld [vmem:[%s3 + $0x8c] sm:$0xf]
    %v788 = vld [vmem:[%s3 + $0x90] sm:$0xf]
    %v789 = vld [vmem:[%s3 + $0x94] sm:$0xf]
    %v790 = vld [vmem:[%s3 + $0x98] sm:$0xf]
    %v791 = vld [vmem:[%s3 + $0x9c] sm:$0xf]
    %v792 = vld [vmem:[%s3 + $0xa0] sm:$0xf]
    %v793 = vld [vmem:[%s3 + $0xa4] sm:$0xf]
    %v794 = vld [vmem:[%s3 + $0xa8] sm:$0xf]
    %v795 = vld [vmem:[%s3 + $0xac] sm:$0xf]
    %v796 = vld [vmem:[%s3 + $0xb0] sm:$0xf]
    %v797 = vld [vmem:[%s3 + $0xb4] sm:$0xf]
    %v798 = vld [vmem:[%s3 + $0xb8] sm:$0xf]
    %v799 = vld [vmem:[%s3 + $0xbc] sm:$0xf]
    %v800 = vld [vmem:[%s3 + $0xc0] sm:$0xf]
    %v801 = vld [vmem:[%s3 + $0xc4] sm:$0xf]
    %v802 = vld [vmem:[%s3 + $0xc8] sm:$0xf]
    %v803 = vld [vmem:[%s3 + $0xcc] sm:$0xf]
    %v804 = vld [vmem:[%s3 + $0xd0] sm:$0xf]
    %v805 = vld [vmem:[%s3 + $0xd4] sm:$0xf]
    %v806 = vld [vmem:[%s3 + $0xd8] sm:$0xf]
    %v807 = vld [vmem:[%s3 + $0xdc] sm:$0xf]
    %v808 = vld [vmem:[%s3 + $0xe0] sm:$0xf]
    %v809 = vld [vmem:[%s3 + $0xe4] sm:$0xf]
    %v810 = vld [vmem:[%s3 + $0xe8] sm:$0xf]
    %v811 = vld [vmem:[%s3 + $0xec] sm:$0xf]
    %v812 = vld [vmem:[%s3 + $0xf0] sm:$0xf]
    %v813 = vld [vmem:[%s3 + $0xf4] sm:$0xf]
    %v814 = vld [vmem:[%s3 + $0xf8] sm:$0xf]
    %v815 = vld [vmem:[%s3 + $0xfc] sm:$0xf]
    %v816 = vunpack.c.l.bf16 %v752
    %v817 = vunpack.c.l.bf16 %v753
    %v818 = vunpack.c.l.bf16 %v754
    %v819 = vunpack.c.l.bf16 %v755
    %v820 = vunpack.c.l.bf16 %v756
    %v821 = vunpack.c.l.bf16 %v757
    %v822 = vunpack.c.l.bf16 %v758
    %v823 = vunpack.c.l.bf16 %v759
    %v824 = vunpack.c.l.bf16 %v760
    %v825 = vunpack.c.l.bf16 %v761
    %v826 = vunpack.c.l.bf16 %v762
    %v827 = vunpack.c.l.bf16 %v763
    %v828 = vunpack.c.l.bf16 %v764
    %v829 = vunpack.c.l.bf16 %v765
    %v830 = vunpack.c.l.bf16 %v766
    %v831 = vunpack.c.l.bf16 %v767
    %v832 = vunpack.c.l.bf16 %v768
    %v833 = vunpack.c.l.bf16 %v769
    %v834 = vunpack.c.l.bf16 %v770
    %v835 = vunpack.c.l.bf16 %v771
    %v836 = vunpack.c.l.bf16 %v772
    %v837 = vunpack.c.l.bf16 %v773
    %v838 = vunpack.c.l.bf16 %v774
    %v839 = vunpack.c.l.bf16 %v775
    %v840 = vunpack.c.l.bf16 %v776
    %v841 = vunpack.c.l.bf16 %v777
    %v842 = vunpack.c.l.bf16 %v778
    %v843 = vunpack.c.l.bf16 %v779
    %v844 = vunpack.c.l.bf16 %v780
    %v845 = vunpack.c.l.bf16 %v781
    %v846 = vunpack.c.l.bf16 %v782
    %v847 = vunpack.c.l.bf16 %v783
    %v848 = vunpack.c.l.bf16 %v784
    %v849 = vunpack.c.l.bf16 %v785
    %v850 = vunpack.c.l.bf16 %v786
    %v851 = vunpack.c.l.bf16 %v787
    %v852 = vunpack.c.l.bf16 %v788
    %v853 = vunpack.c.l.bf16 %v789
    %v854 = vunpack.c.l.bf16 %v790
    %v855 = vunpack.c.l.bf16 %v791
    %v856 = vunpack.c.l.bf16 %v792
    %v857 = vunpack.c.l.bf16 %v793
    %v858 = vunpack.c.l.bf16 %v794
    %v859 = vunpack.c.l.bf16 %v795
    %v860 = vunpack.c.l.bf16 %v796
    %v861 = vunpack.c.l.bf16 %v797
    %v862 = vunpack.c.l.bf16 %v798
    %v863 = vunpack.c.l.bf16 %v799
    %v864 = vunpack.c.l.bf16 %v800
    %v865 = vunpack.c.l.bf16 %v801
    %v866 = vunpack.c.l.bf16 %v802
    %v867 = vunpack.c.l.bf16 %v803
    %v868 = vunpack.c.l.bf16 %v804
    %v869 = vunpack.c.l.bf16 %v805
    %v870 = vunpack.c.l.bf16 %v806
    %v871 = vunpack.c.l.bf16 %v807
    %v872 = vunpack.c.l.bf16 %v808
    %v873 = vunpack.c.l.bf16 %v809
    %v874 = vunpack.c.l.bf16 %v810
    %v875 = vunpack.c.l.bf16 %v811
    %v876 = vunpack.c.l.bf16 %v812
    %v877 = vunpack.c.l.bf16 %v813
    %v878 = vunpack.c.l.bf16 %v814
    %v879 = vunpack.c.l.bf16 %v815
    %v880 = vadd.f32 %v688, %v816
    %v881 = vadd.f32 %v689, %v817
    %v882 = vadd.f32 %v690, %v818
    %v883 = vadd.f32 %v691, %v819
    %v884 = vadd.f32 %v692, %v820
    %v885 = vadd.f32 %v693, %v821
    %v886 = vadd.f32 %v694, %v822
    %v887 = vadd.f32 %v695, %v823
    %v888 = vadd.f32 %v696, %v824
    %v889 = vadd.f32 %v697, %v825
    %v890 = vadd.f32 %v698, %v826
    %v891 = vadd.f32 %v699, %v827
    %v892 = vadd.f32 %v700, %v828
    %v893 = vadd.f32 %v701, %v829
    %v894 = vadd.f32 %v702, %v830
    %v895 = vadd.f32 %v703, %v831
    %v896 = vadd.f32 %v704, %v832
    %v897 = vadd.f32 %v705, %v833
    %v898 = vadd.f32 %v706, %v834
    %v899 = vadd.f32 %v707, %v835
    %v900 = vadd.f32 %v708, %v836
    %v901 = vadd.f32 %v709, %v837
    %v902 = vadd.f32 %v710, %v838
    %v903 = vadd.f32 %v711, %v839
    %v904 = vadd.f32 %v712, %v840
    %v905 = vadd.f32 %v713, %v841
    %v906 = vadd.f32 %v714, %v842
    %v907 = vadd.f32 %v715, %v843
    %v908 = vadd.f32 %v716, %v844
    %v909 = vadd.f32 %v717, %v845
    %v910 = vadd.f32 %v718, %v846
    %v911 = vadd.f32 %v719, %v847
    %v912 = vadd.f32 %v720, %v848
    %v913 = vadd.f32 %v721, %v849
    %v914 = vadd.f32 %v722, %v850
    %v915 = vadd.f32 %v723, %v851
    %v916 = vadd.f32 %v724, %v852
    %v917 = vadd.f32 %v725, %v853
    %v918 = vadd.f32 %v726, %v854
    %v919 = vadd.f32 %v727, %v855
    %v920 = vadd.f32 %v728, %v856
    %v921 = vadd.f32 %v729, %v857
    %v922 = vadd.f32 %v730, %v858
    %v923 = vadd.f32 %v731, %v859
    %v924 = vadd.f32 %v732, %v860
    %v925 = vadd.f32 %v733, %v861
    %v926 = vadd.f32 %v734, %v862
    %v927 = vadd.f32 %v735, %v863
    %v928 = vadd.f32 %v736, %v864
    %v929 = vadd.f32 %v737, %v865
    %v930 = vadd.f32 %v738, %v866
    %v931 = vadd.f32 %v739, %v867
    %v932 = vadd.f32 %v740, %v868
    %v933 = vadd.f32 %v741, %v869
    %v934 = vadd.f32 %v742, %v870
    %v935 = vadd.f32 %v743, %v871
    %v936 = vadd.f32 %v744, %v872
    %v937 = vadd.f32 %v745, %v873
    %v938 = vadd.f32 %v746, %v874
    %v939 = vadd.f32 %v747, %v875
    %v940 = vadd.f32 %v748, %v876
    %v941 = vadd.f32 %v749, %v877
    %v942 = vadd.f32 %v750, %v878
    %v943 = vadd.f32 %v751, %v879
    %v944 = vmax.f32 %v880, 0.0
    %v945 = vmax.f32 %v881, 0.0
    %v946 = vmax.f32 %v882, 0.0
    %v947 = vmax.f32 %v883, 0.0
    %v948 = vmax.f32 %v884, 0.0
    %v949 = vmax.f32 %v885, 0.0
    %v950 = vmax.f32 %v886, 0.0
    %v951 = vmax.f32 %v887, 0.0
    %v952 = vmax.f32 %v888, 0.0
    %v953 = vmax.f32 %v889, 0.0
    %v954 = vmax.f32 %v890, 0.0
    %v955 = vmax.f32 %v891, 0.0
    %v956 = vmax.f32 %v892, 0.0
    %v957 = vmax.f32 %v893, 0.0
    %v958 = vmax.f32 %v894, 0.0
    %v959 = vmax.f32 %v895, 0.0
    %v960 = vmax.f32 %v896, 0.0
    %v961 = vmax.f32 %v897, 0.0
    %v962 = vmax.f32 %v898, 0.0
    %v963 = vmax.f32 %v899, 0.0
    %v964 = vmax.f32 %v900, 0.0
    %v965 = vmax.f32 %v901, 0.0
    %v966 = vmax.f32 %v902, 0.0
    %v967 = vmax.f32 %v903, 0.0
    %v968 = vmax.f32 %v904, 0.0
    %v969 = vmax.f32 %v905, 0.0
    %v970 = vmax.f32 %v906, 0.0
    %v971 = vmax.f32 %v907, 0.0
    %v972 = vmax.f32 %v908, 0.0
    %v973 = vmax.f32 %v909, 0.0
    %v974 = vmax.f32 %v910, 0.0
    %v975 = vmax.f32 %v911, 0.0
    %v976 = vmax.f32 %v912, 0.0
    %v977 = vmax.f32 %v913, 0.0
    %v978 = vmax.f32 %v914, 0.0
    %v979 = vmax.f32 %v915, 0.0
    %v980 = vmax.f32 %v916, 0.0
    %v981 = vmax.f32 %v917, 0.0
    %v982 = vmax.f32 %v918, 0.0
    %v983 = vmax.f32 %v919, 0.0
    %v984 = vmax.f32 %v920, 0.0
    %v985 = vmax.f32 %v921, 0.0
    %v986 = vmax.f32 %v922, 0.0
    %v987 = vmax.f32 %v923, 0.0
    %v988 = vmax.f32 %v924, 0.0
    %v989 = vmax.f32 %v925, 0.0
    %v990 = vmax.f32 %v926, 0.0
    %v991 = vmax.f32 %v927, 0.0
    %v992 = vmax.f32 %v928, 0.0
    %v993 = vmax.f32 %v929, 0.0
    %v994 = vmax.f32 %v930, 0.0
    %v995 = vmax.f32 %v931, 0.0
    %v996 = vmax.f32 %v932, 0.0
    %v997 = vmax.f32 %v933, 0.0
    %v998 = vmax.f32 %v934, 0.0
    %v999 = vmax.f32 %v935, 0.0
    %v1000 = vmax.f32 %v936, 0.0
    %v1001 = vmax.f32 %v937, 0.0
    %v1002 = vmax.f32 %v938, 0.0
    %v1003 = vmax.f32 %v939, 0.0
    %v1004 = vmax.f32 %v940, 0.0
    %v1005 = vmax.f32 %v941, 0.0
    %v1006 = vmax.f32 %v942, 0.0
    %v1007 = vmax.f32 %v943, 0.0
    %v1008 = vpack.c.bf16 %v945, %v944
    %v1009 = vpack.c.bf16 %v947, %v946
    %v1010 = vpack.c.bf16 %v949, %v948
    %v1011 = vpack.c.bf16 %v951, %v950
    %v1012 = vpack.c.bf16 %v953, %v952
    %v1013 = vpack.c.bf16 %v955, %v954
    %v1014 = vpack.c.bf16 %v957, %v956
    %v1015 = vpack.c.bf16 %v959, %v958
    %v1016 = vpack.c.bf16 %v961, %v960
    %v1017 = vpack.c.bf16 %v963, %v962
    %v1018 = vpack.c.bf16 %v965, %v964
    %v1019 = vpack.c.bf16 %v967, %v966
    %v1020 = vpack.c.bf16 %v969, %v968
    %v1021 = vpack.c.bf16 %v971, %v970
    %v1022 = vpack.c.bf16 %v973, %v972
    %v1023 = vpack.c.bf16 %v975, %v974
    %v1024 = vpack.c.bf16 %v977, %v976
    %v1025 = vpack.c.bf16 %v979, %v978
    %v1026 = vpack.c.bf16 %v981, %v980
    %v1027 = vpack.c.bf16 %v983, %v982
    %v1028 = vpack.c.bf16 %v985, %v984
    %v1029 = vpack.c.bf16 %v987, %v986
    %v1030 = vpack.c.bf16 %v989, %v988
    %v1031 = vpack.c.bf16 %v991, %v990
    %v1032 = vpack.c.bf16 %v993, %v992
    %v1033 = vpack.c.bf16 %v995, %v994
    %v1034 = vpack.c.bf16 %v997, %v996
    %v1035 = vpack.c.bf16 %v999, %v998
    %v1036 = vpack.c.bf16 %v1001, %v1000
    %v1037 = vpack.c.bf16 %v1003, %v1002
    %v1038 = vpack.c.bf16 %v1005, %v1004
    %v1039 = vpack.c.bf16 %v1007, %v1006
    %v1072 = vunpack.c.l.b16 %v1008
    %v1073 = vunpack.c.h.b16 %v1008
    %v1074 = vunpack.c.l.b16 %v1009
    %v1075 = vunpack.c.h.b16 %v1009
    %v1076 = vunpack.c.l.b16 %v1010
    %v1077 = vunpack.c.h.b16 %v1010
    %v1078 = vunpack.c.l.b16 %v1011
    %v1079 = vunpack.c.h.b16 %v1011
    %v1080 = vunpack.c.l.b16 %v1012
    %v1081 = vunpack.c.h.b16 %v1012
    %v1082 = vunpack.c.l.b16 %v1013
    %v1083 = vunpack.c.h.b16 %v1013
    %v1084 = vunpack.c.l.b16 %v1014
    %v1085 = vunpack.c.h.b16 %v1014
    %v1086 = vunpack.c.l.b16 %v1015
    %v1087 = vunpack.c.h.b16 %v1015
    %v1088 = vunpack.c.l.b16 %v1016
    %v1089 = vunpack.c.h.b16 %v1016
    %v1090 = vunpack.c.l.b16 %v1017
    %v1091 = vunpack.c.h.b16 %v1017
    %v1092 = vunpack.c.l.b16 %v1018
    %v1093 = vunpack.c.h.b16 %v1018
    %v1094 = vunpack.c.l.b16 %v1019
    %v1095 = vunpack.c.h.b16 %v1019
    %v1096 = vunpack.c.l.b16 %v1020
    %v1097 = vunpack.c.h.b16 %v1020
    %v1098 = vunpack.c.l.b16 %v1021
    %v1099 = vunpack.c.h.b16 %v1021
    %v1100 = vunpack.c.l.b16 %v1022
    %v1101 = vunpack.c.h.b16 %v1022
    %v1102 = vunpack.c.l.b16 %v1023
    %v1103 = vunpack.c.h.b16 %v1023
    %v1104 = vunpack.c.l.b16 %v1024
    %v1105 = vunpack.c.h.b16 %v1024
    %v1106 = vunpack.c.l.b16 %v1025
    %v1107 = vunpack.c.h.b16 %v1025
    %v1108 = vunpack.c.l.b16 %v1026
    %v1109 = vunpack.c.h.b16 %v1026
    %v1110 = vunpack.c.l.b16 %v1027
    %v1111 = vunpack.c.h.b16 %v1027
    %v1112 = vunpack.c.l.b16 %v1028
    %v1113 = vunpack.c.h.b16 %v1028
    %v1114 = vunpack.c.l.b16 %v1029
    %v1115 = vunpack.c.h.b16 %v1029
    %v1116 = vunpack.c.l.b16 %v1030
    %v1117 = vunpack.c.h.b16 %v1030
    %v1118 = vunpack.c.l.b16 %v1031
    %v1119 = vunpack.c.h.b16 %v1031
    %v1120 = vunpack.c.l.b16 %v1032
    %v1121 = vunpack.c.h.b16 %v1032
    %v1122 = vunpack.c.l.b16 %v1033
    %v1123 = vunpack.c.h.b16 %v1033
    %v1124 = vunpack.c.l.b16 %v1034
    %v1125 = vunpack.c.h.b16 %v1034
    %v1126 = vunpack.c.l.b16 %v1035
    %v1127 = vunpack.c.h.b16 %v1035
    %v1128 = vunpack.c.l.b16 %v1036
    %v1129 = vunpack.c.h.b16 %v1036
    %v1130 = vunpack.c.l.b16 %v1037
    %v1131 = vunpack.c.h.b16 %v1037
    %v1132 = vunpack.c.l.b16 %v1038
    %v1133 = vunpack.c.h.b16 %v1038
    %v1134 = vunpack.c.l.b16 %v1039
    %v1135 = vunpack.c.h.b16 %v1039
    %v1136 = vpack.c.b16 %v1072, %v1072
    %v1137 = vpack.c.b16 %v1073, %v1073
    %v1138 = vpack.c.b16 %v1074, %v1074
    %v1139 = vpack.c.b16 %v1075, %v1075
    %v1140 = vpack.c.b16 %v1076, %v1076
    %v1141 = vpack.c.b16 %v1077, %v1077
    %v1142 = vpack.c.b16 %v1078, %v1078
    %v1143 = vpack.c.b16 %v1079, %v1079
    %v1144 = vpack.c.b16 %v1080, %v1080
    %v1145 = vpack.c.b16 %v1081, %v1081
    %v1146 = vpack.c.b16 %v1082, %v1082
    %v1147 = vpack.c.b16 %v1083, %v1083
    %v1148 = vpack.c.b16 %v1084, %v1084
    %v1149 = vpack.c.b16 %v1085, %v1085
    %v1150 = vpack.c.b16 %v1086, %v1086
    %v1151 = vpack.c.b16 %v1087, %v1087
    %v1152 = vpack.c.b16 %v1088, %v1088
    %v1153 = vpack.c.b16 %v1089, %v1089
    %v1154 = vpack.c.b16 %v1090, %v1090
    %v1155 = vpack.c.b16 %v1091, %v1091
    %v1156 = vpack.c.b16 %v1092, %v1092
    %v1157 = vpack.c.b16 %v1093, %v1093
    %v1158 = vpack.c.b16 %v1094, %v1094
    %v1159 = vpack.c.b16 %v1095, %v1095
    %v1160 = vpack.c.b16 %v1096, %v1096
    %v1161 = vpack.c.b16 %v1097, %v1097
    %v1162 = vpack.c.b16 %v1098, %v1098
    %v1163 = vpack.c.b16 %v1099, %v1099
    %v1164 = vpack.c.b16 %v1100, %v1100
    %v1165 = vpack.c.b16 %v1101, %v1101
    %v1166 = vpack.c.b16 %v1102, %v1102
    %v1167 = vpack.c.b16 %v1103, %v1103
    %v1168 = vpack.c.b16 %v1104, %v1104
    %v1169 = vpack.c.b16 %v1105, %v1105
    %v1170 = vpack.c.b16 %v1106, %v1106
    %v1171 = vpack.c.b16 %v1107, %v1107
    %v1172 = vpack.c.b16 %v1108, %v1108
    %v1173 = vpack.c.b16 %v1109, %v1109
    %v1174 = vpack.c.b16 %v1110, %v1110
    %v1175 = vpack.c.b16 %v1111, %v1111
    %v1176 = vpack.c.b16 %v1112, %v1112
    %v1177 = vpack.c.b16 %v1113, %v1113
    %v1178 = vpack.c.b16 %v1114, %v1114
    %v1179 = vpack.c.b16 %v1115, %v1115
    %v1180 = vpack.c.b16 %v1116, %v1116
    %v1181 = vpack.c.b16 %v1117, %v1117
    %v1182 = vpack.c.b16 %v1118, %v1118
    %v1183 = vpack.c.b16 %v1119, %v1119
    %v1184 = vpack.c.b16 %v1120, %v1120
    %v1185 = vpack.c.b16 %v1121, %v1121
    %v1186 = vpack.c.b16 %v1122, %v1122
    %v1187 = vpack.c.b16 %v1123, %v1123
    %v1188 = vpack.c.b16 %v1124, %v1124
    %v1189 = vpack.c.b16 %v1125, %v1125
    %v1190 = vpack.c.b16 %v1126, %v1126
    %v1191 = vpack.c.b16 %v1127, %v1127
    %v1192 = vpack.c.b16 %v1128, %v1128
    %v1193 = vpack.c.b16 %v1129, %v1129
    %v1194 = vpack.c.b16 %v1130, %v1130
    %v1195 = vpack.c.b16 %v1131, %v1131
    %v1196 = vpack.c.b16 %v1132, %v1132
    %v1197 = vpack.c.b16 %v1133, %v1133
    %v1198 = vpack.c.b16 %v1134, %v1134
    %v1199 = vpack.c.b16 %v1135, %v1135
    %vm1264 = vcmask 257024
    %1265 = vst.msk [vmem:[#allocation2] sm:$0xf] %vm1264, %v1136
    %1266 = vst.msk [vmem:[#allocation2 + $0x4] sm:$0xf] %vm1264, %v1137
    %1267 = vst.msk [vmem:[#allocation2 + $0x8] sm:$0xf] %vm1264, %v1138
    %1268 = vst.msk [vmem:[#allocation2 + $0xc] sm:$0xf] %vm1264, %v1139
    %1269 = vst.msk [vmem:[#allocation2 + $0x10] sm:$0xf] %vm1264, %v1140
    %1270 = vst.msk [vmem:[#allocation2 + $0x14] sm:$0xf] %vm1264, %v1141
    %1271 = vst.msk [vmem:[#allocation2 + $0x18] sm:$0xf] %vm1264, %v1142
    %1272 = vst.msk [vmem:[#allocation2 + $0x1c] sm:$0xf] %vm1264, %v1143
    %1273 = vst.msk [vmem:[#allocation2 + $0x20] sm:$0xf] %vm1264, %v1144
    %1274 = vst.msk [vmem:[#allocation2 + $0x24] sm:$0xf] %vm1264, %v1145
    %1275 = vst.msk [vmem:[#allocation2 + $0x28] sm:$0xf] %vm1264, %v1146
    %1276 = vst.msk [vmem:[#allocation2 + $0x2c] sm:$0xf] %vm1264, %v1147
    %1277 = vst.msk [vmem:[#allocation2 + $0x30] sm:$0xf] %vm1264, %v1148
    %1278 = vst.msk [vmem:[#allocation2 + $0x34] sm:$0xf] %vm1264, %v1149
    %1279 = vst.msk [vmem:[#allocation2 + $0x38] sm:$0xf] %vm1264, %v1150
    %1280 = vst.msk [vmem:[#allocation2 + $0x3c] sm:$0xf] %vm1264, %v1151
    %1281 = vst.msk [vmem:[#allocation2 + $0x40] sm:$0xf] %vm1264, %v1152
    %1282 = vst.msk [vmem:[#allocation2 + $0x44] sm:$0xf] %vm1264, %v1153
    %1283 = vst.msk [vmem:[#allocation2 + $0x48] sm:$0xf] %vm1264, %v1154
    %1284 = vst.msk [vmem:[#allocation2 + $0x4c] sm:$0xf] %vm1264, %v1155
    %1285 = vst.msk [vmem:[#allocation2 + $0x50] sm:$0xf] %vm1264, %v1156
    %1286 = vst.msk [vmem:[#allocation2 + $0x54] sm:$0xf] %vm1264, %v1157
    %1287 = vst.msk [vmem:[#allocation2 + $0x58] sm:$0xf] %vm1264, %v1158
    %1288 = vst.msk [vmem:[#allocation2 + $0x5c] sm:$0xf] %vm1264, %v1159
    %1289 = vst.msk [vmem:[#allocation2 + $0x60] sm:$0xf] %vm1264, %v1160
    %1290 = vst.msk [vmem:[#allocation2 + $0x64] sm:$0xf] %vm1264, %v1161
    %1291 = vst.msk [vmem:[#allocation2 + $0x68] sm:$0xf] %vm1264, %v1162
    %1292 = vst.msk [vmem:[#allocation2 + $0x6c] sm:$0xf] %vm1264, %v1163
    %1293 = vst.msk [vmem:[#allocation2 + $0x70] sm:$0xf] %vm1264, %v1164
    %1294 = vst.msk [vmem:[#allocation2 + $0x74] sm:$0xf] %vm1264, %v1165
    %1295 = vst.msk [vmem:[#allocation2 + $0x78] sm:$0xf] %vm1264, %v1166
    %1296 = vst.msk [vmem:[#allocation2 + $0x7c] sm:$0xf] %vm1264, %v1167
    %1297 = vst.msk [vmem:[#allocation2 + $0x80] sm:$0xf] %vm1264, %v1168
    %1298 = vst.msk [vmem:[#allocation2 + $0x84] sm:$0xf] %vm1264, %v1169
    %1299 = vst.msk [vmem:[#allocation2 + $0x88] sm:$0xf] %vm1264, %v1170
    %1300 = vst.msk [vmem:[#allocation2 + $0x8c] sm:$0xf] %vm1264, %v1171
    %1301 = vst.msk [vmem:[#allocation2 + $0x90] sm:$0xf] %vm1264, %v1172
    %1302 = vst.msk [vmem:[#allocation2 + $0x94] sm:$0xf] %vm1264, %v1173
    %1303 = vst.msk [vmem:[#allocation2 + $0x98] sm:$0xf] %vm1264, %v1174
    %1304 = vst.msk [vmem:[#allocation2 + $0x9c] sm:$0xf] %vm1264, %v1175
    %1305 = vst.msk [vmem:[#allocation2 + $0xa0] sm:$0xf] %vm1264, %v1176
    %1306 = vst.msk [vmem:[#allocation2 + $0xa4] sm:$0xf] %vm1264, %v1177
    %1307 = vst.msk [vmem:[#allocation2 + $0xa8] sm:$0xf] %vm1264, %v1178
    %1308 = vst.msk [vmem:[#allocation2 + $0xac] sm:$0xf] %vm1264, %v1179
    %1309 = vst.msk [vmem:[#allocation2 + $0xb0] sm:$0xf] %vm1264, %v1180
    %1310 = vst.msk [vmem:[#allocation2 + $0xb4] sm:$0xf] %vm1264, %v1181
    %1311 = vst.msk [vmem:[#allocation2 + $0xb8] sm:$0xf] %vm1264, %v1182
    %1312 = vst.msk [vmem:[#allocation2 + $0xbc] sm:$0xf] %vm1264, %v1183
    %1313 = vst.msk [vmem:[#allocation2 + $0xc0] sm:$0xf] %vm1264, %v1184
    %1314 = vst.msk [vmem:[#allocation2 + $0xc4] sm:$0xf] %vm1264, %v1185
    %1315 = vst.msk [vmem:[#allocation2 + $0xc8] sm:$0xf] %vm1264, %v1186
    %1316 = vst.msk [vmem:[#allocation2 + $0xcc] sm:$0xf] %vm1264, %v1187
    %1317 = vst.msk [vmem:[#allocation2 + $0xd0] sm:$0xf] %vm1264, %v1188
    %1318 = vst.msk [vmem:[#allocation2 + $0xd4] sm:$0xf] %vm1264, %v1189
    %1319 = vst.msk [vmem:[#allocation2 + $0xd8] sm:$0xf] %vm1264, %v1190
    %1320 = vst.msk [vmem:[#allocation2 + $0xdc] sm:$0xf] %vm1264, %v1191
    %1321 = vst.msk [vmem:[#allocation2 + $0xe0] sm:$0xf] %vm1264, %v1192
    %1322 = vst.msk [vmem:[#allocation2 + $0xe4] sm:$0xf] %vm1264, %v1193
    %1323 = vst.msk [vmem:[#allocation2 + $0xe8] sm:$0xf] %vm1264, %v1194
    %1324 = vst.msk [vmem:[#allocation2 + $0xec] sm:$0xf] %vm1264, %v1195
    %1325 = vst.msk [vmem:[#allocation2 + $0xf0] sm:$0xf] %vm1264, %v1196
    %1326 = vst.msk [vmem:[#allocation2 + $0xf4] sm:$0xf] %vm1264, %v1197
    %1327 = vst.msk [vmem:[#allocation2 + $0xf8] sm:$0xf] %vm1264, %v1198
    %1328 = vst.msk [vmem:[#allocation2 + $0xfc] sm:$0xf] %vm1264, %v1199
    // Predicated region
    $region18: #{basic_block_forward.7} parent=1 // pred_check
      _
    $region19: #{basic_block_forward.7} parent=1 // pred_check_branch
      %1330 = sbr.rel (0) target = $region21
    $region20: #{basic_block_forward.7} parent=1 // pred_region
      %s1332 = ssub.s32 4096, 4096
      %1333 = vsyncadd [#allocation3], %s1332
      %s1334 = sshll.u32 [#allocation2], 4
      %s1335 = int_to_ptr.vmem [resolvable:$true] %s1334
      %1340 = dma.vmem_to_hbm [thread:$0]  %s1335, 4096, %s4, [#allocation3], 64, 64, 4
    $region21: #{basic_block_forward.7} parent=1 // pred_fallthru
      _
    // Predicated region
    $region22: #{basic_block_forward.7} parent=1 // pred_check
      _
    $region23: #{basic_block_forward.7} parent=1 // pred_check_branch
      %1342 = sbr.rel (0) target = $region25
    $region24: #{basic_block_forward.7} parent=1 // pred_region
      %1343 = dma.done [#allocation3], 4096
    $region25: #{basic_block_forward.7} parent=1 // pred_fallthru
      _
    %1344 = vsyncpa [#allocation3], 1

</llo_original>
